<compile_context>
chip_gen: v6e
topology: v6e:2x2x1
jax: 0.10.0
libtpu: 0.0.40
codegen_flags: <defaults>
</compile_context>

<pallas_src>
import numpy as np
import jax
import jax.numpy as jnp
from jax.experimental import pallas as pl
from jax.experimental.pallas import tpu as pltpu


# ---------------------------------------------------------------------------
# align_corners=True interpolation tables (trace-time constants)
# ---------------------------------------------------------------------------
def _align_corners_matrix(in_size, out_size):
    """(out_size, in_size) interpolation matrix, torch Upsample(align_corners=True)."""
    A = np.zeros((out_size, in_size), dtype=np.float32)
    if in_size == 1:
        A[:, 0] = 1.0
        return A
    src = np.arange(out_size, dtype=np.float64) * (in_size - 1) / (out_size - 1)
    i0 = np.clip(np.floor(src).astype(np.int64), 0, in_size - 1)
    i1 = np.minimum(i0 + 1, in_size - 1)
    f = (src - i0).astype(np.float32)
    for o in range(out_size):
        A[o, i0[o]] += 1.0 - f[o]
        A[o, i1[o]] += f[o]
    return A


def _align_corners_rows(in_size, out_size):
    """Static per-output-row (row0, row1, frac) blend tables for the H direction."""
    if in_size == 1:
        return [0] * out_size, [0] * out_size, [0.0] * out_size
    src = np.arange(out_size, dtype=np.float64) * (in_size - 1) / (out_size - 1)
    i0 = np.clip(np.floor(src).astype(np.int64), 0, in_size - 1)
    i1 = np.minimum(i0 + 1, in_size - 1)
    f = src - i0
    return [int(v) for v in i0], [int(v) for v in i1], [float(v) for v in f]


# ---------------------------------------------------------------------------
# Fused UUp kernel (one batch element per grid step)
# ---------------------------------------------------------------------------
def _make_uup_kernel(H, W, Cin, Cout, rows0, rows1, fracs):
    H2, W2 = 2 * H, 2 * W
    Ctot = Cin + Cout

    def kernel(x1_ref, x2_ref, awt_ref, w1_ref, b1_ref, w2_ref, b2_ref,
               o_ref, xpad_ref, h1pad_ref):
        # x1_ref : (1, H, W, Cin)      low-res input (to be upsampled)
        # x2_ref : (1, 2H, 2W, Cout)   skip connection
        # awt_ref: (2W, W)             align_corners W-upsample matrix
        # w1_ref : (9*Ctot, Cout)      conv1 im2col weights   b1_ref: (1, Cout)
        # w2_ref : (9*Cout, Cout)      conv2 im2col weights   b2_ref: (1, Cout)
        # o_ref  : (1, 2H, 2W, Cout)
        # xpad_ref : VMEM (2H+2, 2W+2, Ctot)  padded concat([x2, up(x1)]) buffer
        # h1pad_ref: VMEM (2H+2, 2W+2, Cout)  padded intermediate activation
        f32 = jnp.float32

        # --- zero only the 1-pixel border of the pad scratches (the interior is
        # always fully overwritten).  Done every step: with a "parallel" batch
        # axis each core gets its own (uninitialized) scratch buffers.
        xpad_ref[0:1, :, :] = jnp.zeros((1, W2 + 2, Ctot), f32)
        xpad_ref[H2 + 1:H2 + 2, :, :] = jnp.zeros((1, W2 + 2, Ctot), f32)
        xpad_ref[:, 0:1, :] = jnp.zeros((H2 + 2, 1, Ctot), f32)
        xpad_ref[:, W2 + 1:W2 + 2, :] = jnp.zeros((H2 + 2, 1, Ctot), f32)
        h1pad_ref[0:1, :, :] = jnp.zeros((1, W2 + 2, Cout), f32)
        h1pad_ref[H2 + 1:H2 + 2, :, :] = jnp.zeros((1, W2 + 2, Cout), f32)
        h1pad_ref[:, 0:1, :] = jnp.zeros((H2 + 2, 1, Cout), f32)
        h1pad_ref[:, W2 + 1:W2 + 2, :] = jnp.zeros((H2 + 2, 1, Cout), f32)

        # --- bilinear x2 upsample of x1 (align_corners=True) + channel concat
        # with x2, written row-by-row into the padded concat buffer.
        # W direction: channel-preserving matmul (2W, W) @ (W, Cin) per input row.
        # H direction: static <=2-row blend (weights are Python constants).
        awt = awt_ref[...]                                   # (2W, W)
        x1v = x1_ref[0]                                      # (H, W, Cin)
        x2v = x2_ref[0]                                      # (2H, 2W, Cout)
        wup = [jnp.dot(awt, x1v[h], preferred_element_type=f32) for h in range(H)]
        for i in range(H2):
            r0, r1, fr = rows0[i], rows1[i], fracs[i]
            if fr == 0.0 or r0 == r1:
                up_row = wup[r0]                             # (2W, Cin)
            else:
                up_row = wup[r0] * (1.0 - fr) + wup[r1] * fr
            # full-channel-width store: [x2 channels | upsampled x1 channels]
            xpad_ref[1 + i, 1:W2 + 1, :] = jnp.concatenate([x2v[i], up_row], axis=-1)

        # --- conv1: 3x3 / pad 1, im2col -> single matmul (K = 9*Ctot), + bias, ReLU
        xv = xpad_ref[...]                                   # (2H+2, 2W+2, Ctot)
        cw = jnp.concatenate(
            [xv[:, 0:W2, :], xv[:, 1:W2 + 1, :], xv[:, 2:W2 + 2, :]], axis=-1)
        col1 = jnp.concatenate([cw[0:H2], cw[1:H2 + 1], cw[2:H2 + 2]], axis=-1)
        col1 = col1.reshape(H2 * W2, 9 * Ctot)
        h1 = jnp.maximum(
            jnp.dot(col1, w1_ref[...], preferred_element_type=f32) + b1_ref[...], 0.0)
        h1pad_ref[1:H2 + 1, 1:W2 + 1, :] = h1.reshape(H2, W2, Cout)

        # --- conv2: 3x3 / pad 1, im2col -> single matmul (K = 9*Cout), + bias, ReLU
        hv = h1pad_ref[...]                                  # (2H+2, 2W+2, Cout)
        cw2 = jnp.concatenate(
            [hv[:, 0:W2, :], hv[:, 1:W2 + 1, :], hv[:, 2:W2 + 2, :]], axis=-1)
        col2 = jnp.concatenate([cw2[0:H2], cw2[1:H2 + 1], cw2[2:H2 + 2]], axis=-1)
        col2 = col2.reshape(H2 * W2, 9 * Cout)
        y = jnp.maximum(
            jnp.dot(col2, w2_ref[...], preferred_element_type=f32) + b2_ref[...], 0.0)
        o_ref[0] = y.reshape(H2, W2, Cout)

    return kernel


# ---------------------------------------------------------------------------
# UUp module: params + forward (NCHW in / NCHW out, like PyTorch)
# ---------------------------------------------------------------------------
def init_uup_params(key, in_channels, out_channels):
    cin_tot = in_channels + out_channels
    k1, k2, k3, k4 = jax.random.split(key, 4)
    s1 = 1.0 / np.sqrt(cin_tot * 9)
    s2 = 1.0 / np.sqrt(out_channels * 9)
    return dict(
        w1=jax.random.uniform(k1, (3, 3, cin_tot, out_channels), jnp.float32, -s1, s1),
        b1=jax.random.uniform(k2, (out_channels,), jnp.float32, -s1, s1),
        w2=jax.random.uniform(k3, (3, 3, out_channels, out_channels), jnp.float32, -s2, s2),
        b2=jax.random.uniform(k4, (out_channels,), jnp.float32, -s2, s2),
    )


def uup_forward(params, x1_nchw, x2_nchw):
    # x1: (N, in_channels, H, W), x2: (N, out_channels, 2H, 2W) -> (N, out_channels, 2H, 2W)
    N, Cin, H, W = x1_nchw.shape
    _, Cout, H2, W2 = x2_nchw.shape
    assert H2 == 2 * H and W2 == 2 * W
    Ctot = Cin + Cout

    x1 = jnp.transpose(x1_nchw, (0, 2, 3, 1))        # NHWC (small)
    x2 = jnp.transpose(x2_nchw, (0, 2, 3, 1))        # NHWC

    a_w_up = jnp.asarray(_align_corners_matrix(W, W2))          # (2W, W)
    rows0, rows1, fracs = _align_corners_rows(H, H2)

    # im2col weight packing: row index = (dh*3 + dw)*Cin_tot + c, input-channel
    # order [x2 channels, x1 channels] == torch.cat([x2, x1], dim=1).
    w1p = params["w1"].reshape(9 * Ctot, Cout)
    b1r = params["b1"].reshape(1, Cout)
    w2p = params["w2"].reshape(9 * Cout, Cout)
    b2r = params["b2"].reshape(1, Cout)

    kernel = _make_uup_kernel(H, W, Cin, Cout, rows0, rows1, fracs)

    out_nhwc = pl.pallas_call(
        kernel,
        out_shape=jax.ShapeDtypeStruct((N, H2, W2, Cout), jnp.float32),
        grid_spec=pltpu.PrefetchScalarGridSpec(
            num_scalar_prefetch=0,
            grid=(N,),
            in_specs=[
                pl.BlockSpec((1, H, W, Cin), lambda n: (n, 0, 0, 0)),
                pl.BlockSpec((1, H2, W2, Cout), lambda n: (n, 0, 0, 0)),
                pl.BlockSpec((W2, W), lambda n: (0, 0)),
                pl.BlockSpec((9 * Ctot, Cout), lambda n: (0, 0)),
                pl.BlockSpec((1, Cout), lambda n: (0, 0)),
                pl.BlockSpec((9 * Cout, Cout), lambda n: (0, 0)),
                pl.BlockSpec((1, Cout), lambda n: (0, 0)),
            ],
            out_specs=pl.BlockSpec((1, H2, W2, Cout), lambda n: (n, 0, 0, 0)),
            scratch_shapes=[
                pltpu.VMEM((H2 + 2, W2 + 2, Ctot), jnp.float32),
                pltpu.VMEM((H2 + 2, W2 + 2, Cout), jnp.float32),
            ],
        ),
        compiler_params=pltpu.CompilerParams(
            dimension_semantics=("parallel",),     # batch elems independent (v7x megacore)
            vmem_limit_bytes=32 * 1024 * 1024,
        ),
    )(x1, x2, a_w_up, w1p, b1r, w2p, b2r)

    return jnp.transpose(out_nhwc, (0, 3, 1, 2))


# ---------------------------------------------------------------------------
# Pure-JAX reference for validation
# ---------------------------------------------------------------------------
def _ref_bilinear_up_x2(x):  # NCHW
    N, C, H, W = x.shape
    H2, W2 = 2 * H, 2 * W
    sh = jnp.arange(H2) * (H - 1) / (H2 - 1)
    i0 = jnp.floor(sh).astype(jnp.int32)
    i1 = jnp.minimum(i0 + 1, H - 1)
    fh = (sh - i0).astype(jnp.float32)
    xh = (x[:, :, i0, :] * (1 - fh)[None, None, :, None]
          + x[:, :, i1, :] * fh[None, None, :, None])
    sw = jnp.arange(W2) * (W - 1) / (W2 - 1)
    j0 = jnp.floor(sw).astype(jnp.int32)
    j1 = jnp.minimum(j0 + 1, W - 1)
    fw = (sw - j0).astype(jnp.float32)
    return xh[:, :, :, j0] * (1 - fw) + xh[:, :, :, j1] * fw


def _ref_uup(params, x1, x2):
    x1u = _ref_bilinear_up_x2(x1)
    x = jnp.concatenate([x2, x1u], axis=1)
    w1 = jnp.transpose(params["w1"], (3, 2, 0, 1))  # HWIO -> OIHW
    y = jax.lax.conv_general_dilated(x, w1, (1, 1), ((1, 1), (1, 1)),
                                     dimension_numbers=("NCHW", "OIHW", "NCHW"))
    y = jnp.maximum(y + params["b1"][None, :, None, None], 0.0)
    w2 = jnp.transpose(params["w2"], (3, 2, 0, 1))
    y = jax.lax.conv_general_dilated(y, w2, (1, 1), ((1, 1), (1, 1)),
                                     dimension_numbers=("NCHW", "OIHW", "NCHW"))
    return jnp.maximum(y + params["b2"][None, :, None, None], 0.0)


if __name__ == "__main__":
    in_channels, out_channels = 4, 8
    N, H, W = 2, 8, 8

    key = jax.random.PRNGKey(0)
    kp, kx1, kx2 = jax.random.split(key, 3)
    params = init_uup_params(kp, in_channels, out_channels)
    x1 = jax.random.normal(kx1, (N, in_channels, H, W), jnp.float32)
    x2 = jax.random.normal(kx2, (N, out_channels, 2 * H, 2 * W), jnp.float32)

    out = jax.jit(uup_forward)(params, x1, x2)
    out = jax.block_until_ready(out)

    ref = _ref_uup(params, x1, x2)
    assert out.shape == (N, out_channels, 2 * H, 2 * W)
    np.testing.assert_allclose(np.asarray(out), np.asarray(ref), rtol=2e-4, atol=2e-4)
    print("KERNEL_OK")
</pallas_src>

<mosaic_0001>
module attributes {stable_mosaic.version = 11 : i64} {
  func.func @kernel(%arg0: i32, %arg1: memref<1x8x8x4xf32, #tpu.memory_space<vmem>>, %arg2: memref<1x16x16x8xf32, #tpu.memory_space<vmem>>, %arg3: memref<16x8xf32, #tpu.memory_space<vmem>>, %arg4: memref<108x8xf32, #tpu.memory_space<vmem>>, %arg5: memref<1x8xf32, #tpu.memory_space<vmem>>, %arg6: memref<72x8xf32, #tpu.memory_space<vmem>>, %arg7: memref<1x8xf32, #tpu.memory_space<vmem>>, %arg8: memref<1x16x16x8xf32, #tpu.memory_space<vmem>>, %arg9: memref<18x18x12xf32, #tpu.memory_space<vmem>>, %arg10: memref<18x18x8xf32, #tpu.memory_space<vmem>>) attributes {dimension_semantics = [#tpu.dimension_semantics<parallel>], iteration_bounds = array<i64: 2>, scalar_prefetch = 0 : i64, scratch_operands = 2 : i64, tpu.core_type = #tpu.core_type<tc>, window_params = [{transform_indices = @transform_0, window_bounds = array<i64: 1, 8, 8, 4>}, {transform_indices = @transform_1, window_bounds = array<i64: 1, 16, 16, 8>}, {pipeline_mode = #tpu.pipeline_mode<synchronous>, transform_indices = @transform_2, window_bounds = array<i64: 16, 8>}, {pipeline_mode = #tpu.pipeline_mode<synchronous>, transform_indices = @transform_3, window_bounds = array<i64: 108, 8>}, {pipeline_mode = #tpu.pipeline_mode<synchronous>, transform_indices = @transform_4, window_bounds = array<i64: 1, 8>}, {pipeline_mode = #tpu.pipeline_mode<synchronous>, transform_indices = @transform_5, window_bounds = array<i64: 72, 8>}, {pipeline_mode = #tpu.pipeline_mode<synchronous>, transform_indices = @transform_6, window_bounds = array<i64: 1, 8>}, {transform_indices = @transform_7, window_bounds = array<i64: 1, 16, 16, 8>}]} {
    %cst = arith.constant 0.000000e+00 : f32
    %0 = vector.broadcast %cst : f32 to vector<1x18x12xf32>
    %c0 = arith.constant 0 : index
    %c0_0 = arith.constant 0 : index
    %c0_1 = arith.constant 0 : index
    %1 = vector.load %arg9[%c0, %c0_0, %c0_1] : memref<18x18x12xf32, #tpu.memory_space<vmem>>, vector<1x18x12xf32>
    tpu.vector_store %arg9[%c0, %c0_0, %c0_1], %0 {strides = array<i32>} : memref<18x18x12xf32, #tpu.memory_space<vmem>>, vector<1x18x12xf32>,
    %cst_2 = arith.constant 0.000000e+00 : f32
    %2 = vector.broadcast %cst_2 : f32 to vector<1x18x12xf32>
    %c17 = arith.constant 17 : index
    %c0_3 = arith.constant 0 : index
    %c0_4 = arith.constant 0 : index
    %3 = vector.load %arg9[%c17, %c0_3, %c0_4] : memref<18x18x12xf32, #tpu.memory_space<vmem>>, vector<1x18x12xf32>
    tpu.vector_store %arg9[%c17, %c0_3, %c0_4], %2 {strides = array<i32>} : memref<18x18x12xf32, #tpu.memory_space<vmem>>, vector<1x18x12xf32>,
    %cst_5 = arith.constant 0.000000e+00 : f32
    %4 = vector.broadcast %cst_5 : f32 to vector<18x1x12xf32>
    %c0_6 = arith.constant 0 : index
    %c0_7 = arith.constant 0 : index
    %c0_8 = arith.constant 0 : index
    %5 = vector.load %arg9[%c0_6, %c0_7, %c0_8] : memref<18x18x12xf32, #tpu.memory_space<vmem>>, vector<18x1x12xf32>
    tpu.vector_store %arg9[%c0_6, %c0_7, %c0_8], %4 {strides = array<i32>} : memref<18x18x12xf32, #tpu.memory_space<vmem>>, vector<18x1x12xf32>,
    %cst_9 = arith.constant 0.000000e+00 : f32
    %6 = vector.broadcast %cst_9 : f32 to vector<18x1x12xf32>
    %c0_10 = arith.constant 0 : index
    %c17_11 = arith.constant 17 : index
    %c0_12 = arith.constant 0 : index
    %7 = vector.load %arg9[%c0_10, %c17_11, %c0_12] : memref<18x18x12xf32, #tpu.memory_space<vmem>>, vector<18x1x12xf32>
    tpu.vector_store %arg9[%c0_10, %c17_11, %c0_12], %6 {strides = array<i32>} : memref<18x18x12xf32, #tpu.memory_space<vmem>>, vector<18x1x12xf32>,
    %cst_13 = arith.constant 0.000000e+00 : f32
    %8 = vector.broadcast %cst_13 : f32 to vector<1x18x8xf32>
    %c0_14 = arith.constant 0 : index
    %c0_15 = arith.constant 0 : index
    %c0_16 = arith.constant 0 : index
    %9 = vector.load %arg10[%c0_14, %c0_15, %c0_16] : memref<18x18x8xf32, #tpu.memory_space<vmem>>, vector<1x18x8xf32>
    tpu.vector_store %arg10[%c0_14, %c0_15, %c0_16], %8 {strides = array<i32>} : memref<18x18x8xf32, #tpu.memory_space<vmem>>, vector<1x18x8xf32>,
    %cst_17 = arith.constant 0.000000e+00 : f32
    %10 = vector.broadcast %cst_17 : f32 to vector<1x18x8xf32>
    %c17_18 = arith.constant 17 : index
    %c0_19 = arith.constant 0 : index
    %c0_20 = arith.constant 0 : index
    %11 = vector.load %arg10[%c17_18, %c0_19, %c0_20] : memref<18x18x8xf32, #tpu.memory_space<vmem>>, vector<1x18x8xf32>
    tpu.vector_store %arg10[%c17_18, %c0_19, %c0_20], %10 {strides = array<i32>} : memref<18x18x8xf32, #tpu.memory_space<vmem>>, vector<1x18x8xf32>,
    %cst_21 = arith.constant 0.000000e+00 : f32
    %12 = vector.broadcast %cst_21 : f32 to vector<18x1x8xf32>
    %c0_22 = arith.constant 0 : index
    %c0_23 = arith.constant 0 : index
    %c0_24 = arith.constant 0 : index
    %13 = vector.load %arg10[%c0_22, %c0_23, %c0_24] : memref<18x18x8xf32, #tpu.memory_space<vmem>>, vector<18x1x8xf32>
    tpu.vector_store %arg10[%c0_22, %c0_23, %c0_24], %12 {strides = array<i32>} : memref<18x18x8xf32, #tpu.memory_space<vmem>>, vector<18x1x8xf32>,
    %cst_25 = arith.constant 0.000000e+00 : f32
    %14 = vector.broadcast %cst_25 : f32 to vector<18x1x8xf32>
    %c0_26 = arith.constant 0 : index
    %c17_27 = arith.constant 17 : index
    %c0_28 = arith.constant 0 : index
    %15 = vector.load %arg10[%c0_26, %c17_27, %c0_28] : memref<18x18x8xf32, #tpu.memory_space<vmem>>, vector<18x1x8xf32>
    tpu.vector_store %arg10[%c0_26, %c17_27, %c0_28], %14 {strides = array<i32>} : memref<18x18x8xf32, #tpu.memory_space<vmem>>, vector<18x1x8xf32>,
    %c0_29 = arith.constant 0 : index
    %c0_30 = arith.constant 0 : index
    %16 = vector.load %arg3[%c0_29, %c0_30] : memref<16x8xf32, #tpu.memory_space<vmem>>, vector<16x8xf32>
    %c0_31 = arith.constant 0 : index
    %c0_32 = arith.constant 0 : index
    %c0_33 = arith.constant 0 : index
    %c0_34 = arith.constant 0 : index
    %17 = vector.load %arg1[%c0_31, %c0_32, %c0_33, %c0_34] : memref<1x8x8x4xf32, #tpu.memory_space<vmem>>, vector<1x8x8x4xf32>
    %18 = vector.shape_cast %17 : vector<1x8x8x4xf32> to vector<8x8x4xf32>
    %c0_35 = arith.constant 0 : index
    %c0_36 = arith.constant 0 : index
    %c0_37 = arith.constant 0 : index
    %c0_38 = arith.constant 0 : index
    %19 = vector.load %arg2[%c0_35, %c0_36, %c0_37, %c0_38] : memref<1x16x16x8xf32, #tpu.memory_space<vmem>>, vector<1x16x16x8xf32>
    %20 = vector.shape_cast %19 : vector<1x16x16x8xf32> to vector<16x16x8xf32>
    %21 = vector.extract_strided_slice %18 {offsets = [0, 0, 0], sizes = [1, 8, 4], strides = [1, 1, 1]} : vector<8x8x4xf32> to vector<1x8x4xf32>
    %22 = vector.shape_cast %21 : vector<1x8x4xf32> to vector<8x4xf32>
    %cst_39 = arith.constant dense<0.000000e+00> : vector<16x4xf32>
    %23 = tpu.matmul %16, %22, %cst_39 {dimension_numbers = #tpu.dot_dimension_numbers<[1], [0], [0], [1], [0, 0, 1, 1], [], []>} : vector<16x8xf32>, vector<8x4xf32>, vector<16x4xf32> -> vector<16x4xf32>
    %24 = vector.extract_strided_slice %18 {offsets = [1, 0, 0], sizes = [1, 8, 4], strides = [1, 1, 1]} : vector<8x8x4xf32> to vector<1x8x4xf32>
    %25 = vector.shape_cast %24 : vector<1x8x4xf32> to vector<8x4xf32>
    %cst_40 = arith.constant dense<0.000000e+00> : vector<16x4xf32>
    %26 = tpu.matmul %16, %25, %cst_40 {dimension_numbers = #tpu.dot_dimension_numbers<[1], [0], [0], [1], [0, 0, 1, 1], [], []>} : vector<16x8xf32>, vector<8x4xf32>, vector<16x4xf32> -> vector<16x4xf32>
    %27 = vector.extract_strided_slice %18 {offsets = [2, 0, 0], sizes = [1, 8, 4], strides = [1, 1, 1]} : vector<8x8x4xf32> to vector<1x8x4xf32>
    %28 = vector.shape_cast %27 : vector<1x8x4xf32> to vector<8x4xf32>
    %cst_41 = arith.constant dense<0.000000e+00> : vector<16x4xf32>
    %29 = tpu.matmul %16, %28, %cst_41 {dimension_numbers = #tpu.dot_dimension_numbers<[1], [0], [0], [1], [0, 0, 1, 1], [], []>} : vector<16x8xf32>, vector<8x4xf32>, vector<16x4xf32> -> vector<16x4xf32>
    %30 = vector.extract_strided_slice %18 {offsets = [3, 0, 0], sizes = [1, 8, 4], strides = [1, 1, 1]} : vector<8x8x4xf32> to vector<1x8x4xf32>
    %31 = vector.shape_cast %30 : vector<1x8x4xf32> to vector<8x4xf32>
    %cst_42 = arith.constant dense<0.000000e+00> : vector<16x4xf32>
    %32 = tpu.matmul %16, %31, %cst_42 {dimension_numbers = #tpu.dot_dimension_numbers<[1], [0], [0], [1], [0, 0, 1, 1], [], []>} : vector<16x8xf32>, vector<8x4xf32>, vector<16x4xf32> -> vector<16x4xf32>
    %33 = vector.extract_strided_slice %18 {offsets = [4, 0, 0], sizes = [1, 8, 4], strides = [1, 1, 1]} : vector<8x8x4xf32> to vector<1x8x4xf32>
    %34 = vector.shape_cast %33 : vector<1x8x4xf32> to vector<8x4xf32>
    %cst_43 = arith.constant dense<0.000000e+00> : vector<16x4xf32>
    %35 = tpu.matmul %16, %34, %cst_43 {dimension_numbers = #tpu.dot_dimension_numbers<[1], [0], [0], [1], [0, 0, 1, 1], [], []>} : vector<16x8xf32>, vector<8x4xf32>, vector<16x4xf32> -> vector<16x4xf32>
    %36 = vector.extract_strided_slice %18 {offsets = [5, 0, 0], sizes = [1, 8, 4], strides = [1, 1, 1]} : vector<8x8x4xf32> to vector<1x8x4xf32>
    %37 = vector.shape_cast %36 : vector<1x8x4xf32> to vector<8x4xf32>
    %cst_44 = arith.constant dense<0.000000e+00> : vector<16x4xf32>
    %38 = tpu.matmul %16, %37, %cst_44 {dimension_numbers = #tpu.dot_dimension_numbers<[1], [0], [0], [1], [0, 0, 1, 1], [], []>} : vector<16x8xf32>, vector<8x4xf32>, vector<16x4xf32> -> vector<16x4xf32>
    %39 = vector.extract_strided_slice %18 {offsets = [6, 0, 0], sizes = [1, 8, 4], strides = [1, 1, 1]} : vector<8x8x4xf32> to vector<1x8x4xf32>
    %40 = vector.shape_cast %39 : vector<1x8x4xf32> to vector<8x4xf32>
    %cst_45 = arith.constant dense<0.000000e+00> : vector<16x4xf32>
    %41 = tpu.matmul %16, %40, %cst_45 {dimension_numbers = #tpu.dot_dimension_numbers<[1], [0], [0], [1], [0, 0, 1, 1], [], []>} : vector<16x8xf32>, vector<8x4xf32>, vector<16x4xf32> -> vector<16x4xf32>
    %42 = vector.extract_strided_slice %18 {offsets = [7, 0, 0], sizes = [1, 8, 4], strides = [1, 1, 1]} : vector<8x8x4xf32> to vector<1x8x4xf32>
    %43 = vector.shape_cast %42 : vector<1x8x4xf32> to vector<8x4xf32>
    %cst_46 = arith.constant dense<0.000000e+00> : vector<16x4xf32>
    %44 = tpu.matmul %16, %43, %cst_46 {dimension_numbers = #tpu.dot_dimension_numbers<[1], [0], [0], [1], [0, 0, 1, 1], [], []>} : vector<16x8xf32>, vector<8x4xf32>, vector<16x4xf32> -> vector<16x4xf32>
    %45 = vector.extract_strided_slice %20 {offsets = [0, 0, 0], sizes = [1, 16, 8], strides = [1, 1, 1]} : vector<16x16x8xf32> to vector<1x16x8xf32>
    %46 = vector.shape_cast %45 : vector<1x16x8xf32> to vector<16x8xf32>
    %47 = tpu.concatenate %46, %23 in 1 : vector<16x8xf32>, vector<16x4xf32> -> vector<16x12xf32>
    %c1 = arith.constant 1 : index
    %c1_47 = arith.constant 1 : index
    %c0_48 = arith.constant 0 : index
    %48 = vector.load %arg9[%c1, %c1_47, %c0_48] : memref<18x18x12xf32, #tpu.memory_space<vmem>>, vector<1x16x12xf32>
    %49 = vector.shape_cast %48 : vector<1x16x12xf32> to vector<16x12xf32>
    %50 = vector.shape_cast %47 : vector<16x12xf32> to vector<1x16x12xf32>
    tpu.vector_store %arg9[%c1, %c1_47, %c0_48], %50 {strides = array<i32>} : memref<18x18x12xf32, #tpu.memory_space<vmem>>, vector<1x16x12xf32>,
    %cst_49 = arith.constant 0.533333361 : f32
    %51 = vector.broadcast %cst_49 : f32 to vector<16x4xf32>
    %52 = arith.mulf %23, %51 : vector<16x4xf32>
    %cst_50 = arith.constant 0.466666669 : f32
    %53 = vector.broadcast %cst_50 : f32 to vector<16x4xf32>
    %54 = arith.mulf %26, %53 : vector<16x4xf32>
    %55 = arith.addf %52, %54 : vector<16x4xf32>
    %56 = vector.extract_strided_slice %20 {offsets = [1, 0, 0], sizes = [1, 16, 8], strides = [1, 1, 1]} : vector<16x16x8xf32> to vector<1x16x8xf32>
    %57 = vector.shape_cast %56 : vector<1x16x8xf32> to vector<16x8xf32>
    %58 = tpu.concatenate %57, %55 in 1 : vector<16x8xf32>, vector<16x4xf32> -> vector<16x12xf32>
    %c2 = arith.constant 2 : index
    %c1_51 = arith.constant 1 : index
    %c0_52 = arith.constant 0 : index
    %59 = vector.load %arg9[%c2, %c1_51, %c0_52] : memref<18x18x12xf32, #tpu.memory_space<vmem>>, vector<1x16x12xf32>
    %60 = vector.shape_cast %59 : vector<1x16x12xf32> to vector<16x12xf32>
    %61 = vector.shape_cast %58 : vector<16x12xf32> to vector<1x16x12xf32>
    tpu.vector_store %arg9[%c2, %c1_51, %c0_52], %61 {strides = array<i32>} : memref<18x18x12xf32, #tpu.memory_space<vmem>>, vector<1x16x12xf32>,
    %cst_53 = arith.constant 0.0666666701 : f32
    %62 = vector.broadcast %cst_53 : f32 to vector<16x4xf32>
    %63 = arith.mulf %23, %62 : vector<16x4xf32>
    %cst_54 = arith.constant 0.933333337 : f32
    %64 = vector.broadcast %cst_54 : f32 to vector<16x4xf32>
    %65 = arith.mulf %26, %64 : vector<16x4xf32>
    %66 = arith.addf %63, %65 : vector<16x4xf32>
    %67 = vector.extract_strided_slice %20 {offsets = [2, 0, 0], sizes = [1, 16, 8], strides = [1, 1, 1]} : vector<16x16x8xf32> to vector<1x16x8xf32>
    %68 = vector.shape_cast %67 : vector<1x16x8xf32> to vector<16x8xf32>
    %69 = tpu.concatenate %68, %66 in 1 : vector<16x8xf32>, vector<16x4xf32> -> vector<16x12xf32>
    %c3 = arith.constant 3 : index
    %c1_55 = arith.constant 1 : index
    %c0_56 = arith.constant 0 : index
    %70 = vector.load %arg9[%c3, %c1_55, %c0_56] : memref<18x18x12xf32, #tpu.memory_space<vmem>>, vector<1x16x12xf32>
    %71 = vector.shape_cast %70 : vector<1x16x12xf32> to vector<16x12xf32>
    %72 = vector.shape_cast %69 : vector<16x12xf32> to vector<1x16x12xf32>
    tpu.vector_store %arg9[%c3, %c1_55, %c0_56], %72 {strides = array<i32>} : memref<18x18x12xf32, #tpu.memory_space<vmem>>, vector<1x16x12xf32>,
    %cst_57 = arith.constant 6.000000e-01 : f32
    %73 = vector.broadcast %cst_57 : f32 to vector<16x4xf32>
    %74 = arith.mulf %26, %73 : vector<16x4xf32>
    %cst_58 = arith.constant 4.000000e-01 : f32
    %75 = vector.broadcast %cst_58 : f32 to vector<16x4xf32>
    %76 = arith.mulf %29, %75 : vector<16x4xf32>
    %77 = arith.addf %74, %76 : vector<16x4xf32>
    %78 = vector.extract_strided_slice %20 {offsets = [3, 0, 0], sizes = [1, 16, 8], strides = [1, 1, 1]} : vector<16x16x8xf32> to vector<1x16x8xf32>
    %79 = vector.shape_cast %78 : vector<1x16x8xf32> to vector<16x8xf32>
    %80 = tpu.concatenate %79, %77 in 1 : vector<16x8xf32>, vector<16x4xf32> -> vector<16x12xf32>
    %c4 = arith.constant 4 : index
    %c1_59 = arith.constant 1 : index
    %c0_60 = arith.constant 0 : index
    %81 = vector.load %arg9[%c4, %c1_59, %c0_60] : memref<18x18x12xf32, #tpu.memory_space<vmem>>, vector<1x16x12xf32>
    %82 = vector.shape_cast %81 : vector<1x16x12xf32> to vector<16x12xf32>
    %83 = vector.shape_cast %80 : vector<16x12xf32> to vector<1x16x12xf32>
    tpu.vector_store %arg9[%c4, %c1_59, %c0_60], %83 {strides = array<i32>} : memref<18x18x12xf32, #tpu.memory_space<vmem>>, vector<1x16x12xf32>,
    %cst_61 = arith.constant 0.13333334 : f32
    %84 = vector.broadcast %cst_61 : f32 to vector<16x4xf32>
    %85 = arith.mulf %26, %84 : vector<16x4xf32>
    %cst_62 = arith.constant 0.866666674 : f32
    %86 = vector.broadcast %cst_62 : f32 to vector<16x4xf32>
    %87 = arith.mulf %29, %86 : vector<16x4xf32>
    %88 = arith.addf %85, %87 : vector<16x4xf32>
    %89 = vector.extract_strided_slice %20 {offsets = [4, 0, 0], sizes = [1, 16, 8], strides = [1, 1, 1]} : vector<16x16x8xf32> to vector<1x16x8xf32>
    %90 = vector.shape_cast %89 : vector<1x16x8xf32> to vector<16x8xf32>
    %91 = tpu.concatenate %90, %88 in 1 : vector<16x8xf32>, vector<16x4xf32> -> vector<16x12xf32>
    %c5 = arith.constant 5 : index
    %c1_63 = arith.constant 1 : index
    %c0_64 = arith.constant 0 : index
    %92 = vector.load %arg9[%c5, %c1_63, %c0_64] : memref<18x18x12xf32, #tpu.memory_space<vmem>>, vector<1x16x12xf32>
    %93 = vector.shape_cast %92 : vector<1x16x12xf32> to vector<16x12xf32>
    %94 = vector.shape_cast %91 : vector<16x12xf32> to vector<1x16x12xf32>
    tpu.vector_store %arg9[%c5, %c1_63, %c0_64], %94 {strides = array<i32>} : memref<18x18x12xf32, #tpu.memory_space<vmem>>, vector<1x16x12xf32>,
    %cst_65 = arith.constant 0.666666686 : f32
    %95 = vector.broadcast %cst_65 : f32 to vector<16x4xf32>
    %96 = arith.mulf %29, %95 : vector<16x4xf32>
    %cst_66 = arith.constant 0.333333343 : f32
    %97 = vector.broadcast %cst_66 : f32 to vector<16x4xf32>
    %98 = arith.mulf %32, %97 : vector<16x4xf32>
    %99 = arith.addf %96, %98 : vector<16x4xf32>
    %100 = vector.extract_strided_slice %20 {offsets = [5, 0, 0], sizes = [1, 16, 8], strides = [1, 1, 1]} : vector<16x16x8xf32> to vector<1x16x8xf32>
    %101 = vector.shape_cast %100 : vector<1x16x8xf32> to vector<16x8xf32>
    %102 = tpu.concatenate %101, %99 in 1 : vector<16x8xf32>, vector<16x4xf32> -> vector<16x12xf32>
    %c6 = arith.constant 6 : index
    %c1_67 = arith.constant 1 : index
    %c0_68 = arith.constant 0 : index
    %103 = vector.load %arg9[%c6, %c1_67, %c0_68] : memref<18x18x12xf32, #tpu.memory_space<vmem>>, vector<1x16x12xf32>
    %104 = vector.shape_cast %103 : vector<1x16x12xf32> to vector<16x12xf32>
    %105 = vector.shape_cast %102 : vector<16x12xf32> to vector<1x16x12xf32>
    tpu.vector_store %arg9[%c6, %c1_67, %c0_68], %105 {strides = array<i32>} : memref<18x18x12xf32, #tpu.memory_space<vmem>>, vector<1x16x12xf32>,
    %cst_69 = arith.constant 2.000000e-01 : f32
    %106 = vector.broadcast %cst_69 : f32 to vector<16x4xf32>
    %107 = arith.mulf %29, %106 : vector<16x4xf32>
    %cst_70 = arith.constant 8.000000e-01 : f32
    %108 = vector.broadcast %cst_70 : f32 to vector<16x4xf32>
    %109 = arith.mulf %32, %108 : vector<16x4xf32>
    %110 = arith.addf %107, %109 : vector<16x4xf32>
    %111 = vector.extract_strided_slice %20 {offsets = [6, 0, 0], sizes = [1, 16, 8], strides = [1, 1, 1]} : vector<16x16x8xf32> to vector<1x16x8xf32>
    %112 = vector.shape_cast %111 : vector<1x16x8xf32> to vector<16x8xf32>
    %113 = tpu.concatenate %112, %110 in 1 : vector<16x8xf32>, vector<16x4xf32> -> vector<16x12xf32>
    %c7 = arith.constant 7 : index
    %c1_71 = arith.constant 1 : index
    %c0_72 = arith.constant 0 : index
    %114 = vector.load %arg9[%c7, %c1_71, %c0_72] : memref<18x18x12xf32, #tpu.memory_space<vmem>>, vector<1x16x12xf32>
    %115 = vector.shape_cast %114 : vector<1x16x12xf32> to vector<16x12xf32>
    %116 = vector.shape_cast %113 : vector<16x12xf32> to vector<1x16x12xf32>
    tpu.vector_store %arg9[%c7, %c1_71, %c0_72], %116 {strides = array<i32>} : memref<18x18x12xf32, #tpu.memory_space<vmem>>, vector<1x16x12xf32>,
    %cst_73 = arith.constant 0.733333349 : f32
    %117 = vector.broadcast %cst_73 : f32 to vector<16x4xf32>
    %118 = arith.mulf %32, %117 : vector<16x4xf32>
    %cst_74 = arith.constant 0.266666681 : f32
    %119 = vector.broadcast %cst_74 : f32 to vector<16x4xf32>
    %120 = arith.mulf %35, %119 : vector<16x4xf32>
    %121 = arith.addf %118, %120 : vector<16x4xf32>
    %122 = vector.extract_strided_slice %20 {offsets = [7, 0, 0], sizes = [1, 16, 8], strides = [1, 1, 1]} : vector<16x16x8xf32> to vector<1x16x8xf32>
    %123 = vector.shape_cast %122 : vector<1x16x8xf32> to vector<16x8xf32>
    %124 = tpu.concatenate %123, %121 in 1 : vector<16x8xf32>, vector<16x4xf32> -> vector<16x12xf32>
    %c8 = arith.constant 8 : index
    %c1_75 = arith.constant 1 : index
    %c0_76 = arith.constant 0 : index
    %125 = vector.load %arg9[%c8, %c1_75, %c0_76] : memref<18x18x12xf32, #tpu.memory_space<vmem>>, vector<1x16x12xf32>
    %126 = vector.shape_cast %125 : vector<1x16x12xf32> to vector<16x12xf32>
    %127 = vector.shape_cast %124 : vector<16x12xf32> to vector<1x16x12xf32>
    tpu.vector_store %arg9[%c8, %c1_75, %c0_76], %127 {strides = array<i32>} : memref<18x18x12xf32, #tpu.memory_space<vmem>>, vector<1x16x12xf32>,
    %cst_77 = arith.constant 0.266666681 : f32
    %128 = vector.broadcast %cst_77 : f32 to vector<16x4xf32>
    %129 = arith.mulf %32, %128 : vector<16x4xf32>
    %cst_78 = arith.constant 0.733333349 : f32
    %130 = vector.broadcast %cst_78 : f32 to vector<16x4xf32>
    %131 = arith.mulf %35, %130 : vector<16x4xf32>
    %132 = arith.addf %129, %131 : vector<16x4xf32>
    %133 = vector.extract_strided_slice %20 {offsets = [8, 0, 0], sizes = [1, 16, 8], strides = [1, 1, 1]} : vector<16x16x8xf32> to vector<1x16x8xf32>
    %134 = vector.shape_cast %133 : vector<1x16x8xf32> to vector<16x8xf32>
    %135 = tpu.concatenate %134, %132 in 1 : vector<16x8xf32>, vector<16x4xf32> -> vector<16x12xf32>
    %c9 = arith.constant 9 : index
    %c1_79 = arith.constant 1 : index
    %c0_80 = arith.constant 0 : index
    %136 = vector.load %arg9[%c9, %c1_79, %c0_80] : memref<18x18x12xf32, #tpu.memory_space<vmem>>, vector<1x16x12xf32>
    %137 = vector.shape_cast %136 : vector<1x16x12xf32> to vector<16x12xf32>
    %138 = vector.shape_cast %135 : vector<16x12xf32> to vector<1x16x12xf32>
    tpu.vector_store %arg9[%c9, %c1_79, %c0_80], %138 {strides = array<i32>} : memref<18x18x12xf32, #tpu.memory_space<vmem>>, vector<1x16x12xf32>,
    %cst_81 = arith.constant 8.000000e-01 : f32
    %139 = vector.broadcast %cst_81 : f32 to vector<16x4xf32>
    %140 = arith.mulf %35, %139 : vector<16x4xf32>
    %cst_82 = arith.constant 2.000000e-01 : f32
    %141 = vector.broadcast %cst_82 : f32 to vector<16x4xf32>
    %142 = arith.mulf %38, %141 : vector<16x4xf32>
    %143 = arith.addf %140, %142 : vector<16x4xf32>
    %144 = vector.extract_strided_slice %20 {offsets = [9, 0, 0], sizes = [1, 16, 8], strides = [1, 1, 1]} : vector<16x16x8xf32> to vector<1x16x8xf32>
    %145 = vector.shape_cast %144 : vector<1x16x8xf32> to vector<16x8xf32>
    %146 = tpu.concatenate %145, %143 in 1 : vector<16x8xf32>, vector<16x4xf32> -> vector<16x12xf32>
    %c10 = arith.constant 10 : index
    %c1_83 = arith.constant 1 : index
    %c0_84 = arith.constant 0 : index
    %147 = vector.load %arg9[%c10, %c1_83, %c0_84] : memref<18x18x12xf32, #tpu.memory_space<vmem>>, vector<1x16x12xf32>
    %148 = vector.shape_cast %147 : vector<1x16x12xf32> to vector<16x12xf32>
    %149 = vector.shape_cast %146 : vector<16x12xf32> to vector<1x16x12xf32>
    tpu.vector_store %arg9[%c10, %c1_83, %c0_84], %149 {strides = array<i32>} : memref<18x18x12xf32, #tpu.memory_space<vmem>>, vector<1x16x12xf32>,
    %cst_85 = arith.constant 0.333333343 : f32
    %150 = vector.broadcast %cst_85 : f32 to vector<16x4xf32>
    %151 = arith.mulf %35, %150 : vector<16x4xf32>
    %cst_86 = arith.constant 0.666666686 : f32
    %152 = vector.broadcast %cst_86 : f32 to vector<16x4xf32>
    %153 = arith.mulf %38, %152 : vector<16x4xf32>
    %154 = arith.addf %151, %153 : vector<16x4xf32>
    %155 = vector.extract_strided_slice %20 {offsets = [10, 0, 0], sizes = [1, 16, 8], strides = [1, 1, 1]} : vector<16x16x8xf32> to vector<1x16x8xf32>
    %156 = vector.shape_cast %155 : vector<1x16x8xf32> to vector<16x8xf32>
    %157 = tpu.concatenate %156, %154 in 1 : vector<16x8xf32>, vector<16x4xf32> -> vector<16x12xf32>
    %c11 = arith.constant 11 : index
    %c1_87 = arith.constant 1 : index
    %c0_88 = arith.constant 0 : index
    %158 = vector.load %arg9[%c11, %c1_87, %c0_88] : memref<18x18x12xf32, #tpu.memory_space<vmem>>, vector<1x16x12xf32>
    %159 = vector.shape_cast %158 : vector<1x16x12xf32> to vector<16x12xf32>
    %160 = vector.shape_cast %157 : vector<16x12xf32> to vector<1x16x12xf32>
    tpu.vector_store %arg9[%c11, %c1_87, %c0_88], %160 {strides = array<i32>} : memref<18x18x12xf32, #tpu.memory_space<vmem>>, vector<1x16x12xf32>,
    %cst_89 = arith.constant 0.866666674 : f32
    %161 = vector.broadcast %cst_89 : f32 to vector<16x4xf32>
    %162 = arith.mulf %38, %161 : vector<16x4xf32>
    %cst_90 = arith.constant 0.13333334 : f32
    %163 = vector.broadcast %cst_90 : f32 to vector<16x4xf32>
    %164 = arith.mulf %41, %163 : vector<16x4xf32>
    %165 = arith.addf %162, %164 : vector<16x4xf32>
    %166 = vector.extract_strided_slice %20 {offsets = [11, 0, 0], sizes = [1, 16, 8], strides = [1, 1, 1]} : vector<16x16x8xf32> to vector<1x16x8xf32>
    %167 = vector.shape_cast %166 : vector<1x16x8xf32> to vector<16x8xf32>
    %168 = tpu.concatenate %167, %165 in 1 : vector<16x8xf32>, vector<16x4xf32> -> vector<16x12xf32>
    %c12 = arith.constant 12 : index
    %c1_91 = arith.constant 1 : index
    %c0_92 = arith.constant 0 : index
    %169 = vector.load %arg9[%c12, %c1_91, %c0_92] : memref<18x18x12xf32, #tpu.memory_space<vmem>>, vector<1x16x12xf32>
    %170 = vector.shape_cast %169 : vector<1x16x12xf32> to vector<16x12xf32>
    %171 = vector.shape_cast %168 : vector<16x12xf32> to vector<1x16x12xf32>
    tpu.vector_store %arg9[%c12, %c1_91, %c0_92], %171 {strides = array<i32>} : memref<18x18x12xf32, #tpu.memory_space<vmem>>, vector<1x16x12xf32>,
    %cst_93 = arith.constant 4.000000e-01 : f32
    %172 = vector.broadcast %cst_93 : f32 to vector<16x4xf32>
    %173 = arith.mulf %38, %172 : vector<16x4xf32>
    %cst_94 = arith.constant 6.000000e-01 : f32
    %174 = vector.broadcast %cst_94 : f32 to vector<16x4xf32>
    %175 = arith.mulf %41, %174 : vector<16x4xf32>
    %176 = arith.addf %173, %175 : vector<16x4xf32>
    %177 = vector.extract_strided_slice %20 {offsets = [12, 0, 0], sizes = [1, 16, 8], strides = [1, 1, 1]} : vector<16x16x8xf32> to vector<1x16x8xf32>
    %178 = vector.shape_cast %177 : vector<1x16x8xf32> to vector<16x8xf32>
    %179 = tpu.concatenate %178, %176 in 1 : vector<16x8xf32>, vector<16x4xf32> -> vector<16x12xf32>
    %c13 = arith.constant 13 : index
    %c1_95 = arith.constant 1 : index
    %c0_96 = arith.constant 0 : index
    %180 = vector.load %arg9[%c13, %c1_95, %c0_96] : memref<18x18x12xf32, #tpu.memory_space<vmem>>, vector<1x16x12xf32>
    %181 = vector.shape_cast %180 : vector<1x16x12xf32> to vector<16x12xf32>
    %182 = vector.shape_cast %179 : vector<16x12xf32> to vector<1x16x12xf32>
    tpu.vector_store %arg9[%c13, %c1_95, %c0_96], %182 {strides = array<i32>} : memref<18x18x12xf32, #tpu.memory_space<vmem>>, vector<1x16x12xf32>,
    %cst_97 = arith.constant 0.933333337 : f32
    %183 = vector.broadcast %cst_97 : f32 to vector<16x4xf32>
    %184 = arith.mulf %41, %183 : vector<16x4xf32>
    %cst_98 = arith.constant 0.0666666701 : f32
    %185 = vector.broadcast %cst_98 : f32 to vector<16x4xf32>
    %186 = arith.mulf %44, %185 : vector<16x4xf32>
    %187 = arith.addf %184, %186 : vector<16x4xf32>
    %188 = vector.extract_strided_slice %20 {offsets = [13, 0, 0], sizes = [1, 16, 8], strides = [1, 1, 1]} : vector<16x16x8xf32> to vector<1x16x8xf32>
    %189 = vector.shape_cast %188 : vector<1x16x8xf32> to vector<16x8xf32>
    %190 = tpu.concatenate %189, %187 in 1 : vector<16x8xf32>, vector<16x4xf32> -> vector<16x12xf32>
    %c14 = arith.constant 14 : index
    %c1_99 = arith.constant 1 : index
    %c0_100 = arith.constant 0 : index
    %191 = vector.load %arg9[%c14, %c1_99, %c0_100] : memref<18x18x12xf32, #tpu.memory_space<vmem>>, vector<1x16x12xf32>
    %192 = vector.shape_cast %191 : vector<1x16x12xf32> to vector<16x12xf32>
    %193 = vector.shape_cast %190 : vector<16x12xf32> to vector<1x16x12xf32>
    tpu.vector_store %arg9[%c14, %c1_99, %c0_100], %193 {strides = array<i32>} : memref<18x18x12xf32, #tpu.memory_space<vmem>>, vector<1x16x12xf32>,
    %cst_101 = arith.constant 0.466666669 : f32
    %194 = vector.broadcast %cst_101 : f32 to vector<16x4xf32>
    %195 = arith.mulf %41, %194 : vector<16x4xf32>
    %cst_102 = arith.constant 0.533333361 : f32
    %196 = vector.broadcast %cst_102 : f32 to vector<16x4xf32>
    %197 = arith.mulf %44, %196 : vector<16x4xf32>
    %198 = arith.addf %195, %197 : vector<16x4xf32>
    %199 = vector.extract_strided_slice %20 {offsets = [14, 0, 0], sizes = [1, 16, 8], strides = [1, 1, 1]} : vector<16x16x8xf32> to vector<1x16x8xf32>
    %200 = vector.shape_cast %199 : vector<1x16x8xf32> to vector<16x8xf32>
    %201 = tpu.concatenate %200, %198 in 1 : vector<16x8xf32>, vector<16x4xf32> -> vector<16x12xf32>
    %c15 = arith.constant 15 : index
    %c1_103 = arith.constant 1 : index
    %c0_104 = arith.constant 0 : index
    %202 = vector.load %arg9[%c15, %c1_103, %c0_104] : memref<18x18x12xf32, #tpu.memory_space<vmem>>, vector<1x16x12xf32>
    %203 = vector.shape_cast %202 : vector<1x16x12xf32> to vector<16x12xf32>
    %204 = vector.shape_cast %201 : vector<16x12xf32> to vector<1x16x12xf32>
    tpu.vector_store %arg9[%c15, %c1_103, %c0_104], %204 {strides = array<i32>} : memref<18x18x12xf32, #tpu.memory_space<vmem>>, vector<1x16x12xf32>,
    %205 = vector.extract_strided_slice %20 {offsets = [15, 0, 0], sizes = [1, 16, 8], strides = [1, 1, 1]} : vector<16x16x8xf32> to vector<1x16x8xf32>
    %206 = vector.shape_cast %205 : vector<1x16x8xf32> to vector<16x8xf32>
    %207 = tpu.concatenate %206, %44 in 1 : vector<16x8xf32>, vector<16x4xf32> -> vector<16x12xf32>
    %c16 = arith.constant 16 : index
    %c1_105 = arith.constant 1 : index
    %c0_106 = arith.constant 0 : index
    %208 = vector.load %arg9[%c16, %c1_105, %c0_106] : memref<18x18x12xf32, #tpu.memory_space<vmem>>, vector<1x16x12xf32>
    %209 = vector.shape_cast %208 : vector<1x16x12xf32> to vector<16x12xf32>
    %210 = vector.shape_cast %207 : vector<16x12xf32> to vector<1x16x12xf32>
    tpu.vector_store %arg9[%c16, %c1_105, %c0_106], %210 {strides = array<i32>} : memref<18x18x12xf32, #tpu.memory_space<vmem>>, vector<1x16x12xf32>,
    %c0_107 = arith.constant 0 : index
    %c0_108 = arith.constant 0 : index
    %c0_109 = arith.constant 0 : index
    %211 = vector.load %arg9[%c0_107, %c0_108, %c0_109] : memref<18x18x12xf32, #tpu.memory_space<vmem>>, vector<18x18x12xf32>
    %212 = vector.extract_strided_slice %211 {offsets = [0, 0, 0], sizes = [18, 16, 12], strides = [1, 1, 1]} : vector<18x18x12xf32> to vector<18x16x12xf32>
    %213 = vector.extract_strided_slice %211 {offsets = [0, 1, 0], sizes = [18, 16, 12], strides = [1, 1, 1]} : vector<18x18x12xf32> to vector<18x16x12xf32>
    %214 = vector.extract_strided_slice %211 {offsets = [0, 2, 0], sizes = [18, 16, 12], strides = [1, 1, 1]} : vector<18x18x12xf32> to vector<18x16x12xf32>
    %215 = tpu.concatenate %212, %213, %214 in 2 : vector<18x16x12xf32>, vector<18x16x12xf32>, vector<18x16x12xf32> -> vector<18x16x36xf32>
    %216 = vector.extract_strided_slice %215 {offsets = [0, 0, 0], sizes = [16, 16, 36], strides = [1, 1, 1]} : vector<18x16x36xf32> to vector<16x16x36xf32>
    %217 = vector.extract_strided_slice %215 {offsets = [1, 0, 0], sizes = [16, 16, 36], strides = [1, 1, 1]} : vector<18x16x36xf32> to vector<16x16x36xf32>
    %218 = vector.extract_strided_slice %215 {offsets = [2, 0, 0], sizes = [16, 16, 36], strides = [1, 1, 1]} : vector<18x16x36xf32> to vector<16x16x36xf32>
    %219 = tpu.concatenate %216, %217, %218 in 2 : vector<16x16x36xf32>, vector<16x16x36xf32>, vector<16x16x36xf32> -> vector<16x16x108xf32>
    %220 = vector.shape_cast %219 : vector<16x16x108xf32> to vector<256x108xf32>
    %c0_110 = arith.constant 0 : index
    %c0_111 = arith.constant 0 : index
    %221 = vector.load %arg4[%c0_110, %c0_111] : memref<108x8xf32, #tpu.memory_space<vmem>>, vector<108x8xf32>
    %cst_112 = arith.constant dense<0.000000e+00> : vector<256x8xf32>
    %222 = tpu.matmul %220, %221, %cst_112 {dimension_numbers = #tpu.dot_dimension_numbers<[1], [0], [0], [1], [0, 0, 1, 1], [], []>} : vector<256x108xf32>, vector<108x8xf32>, vector<256x8xf32> -> vector<256x8xf32>
    %c0_113 = arith.constant 0 : index
    %c0_114 = arith.constant 0 : index
    %223 = vector.load %arg5[%c0_113, %c0_114] : memref<1x8xf32, #tpu.memory_space<vmem>>, vector<1x8xf32>
    %224 = vector.broadcast %223 : vector<1x8xf32> to vector<256x8xf32>
    %225 = arith.addf %222, %224 : vector<256x8xf32>
    %cst_115 = arith.constant 0.000000e+00 : f32
    %226 = vector.broadcast %cst_115 : f32 to vector<256x8xf32>
    %227 = arith.maximumf %225, %226 : vector<256x8xf32>
    %228 = vector.shape_cast %227 : vector<256x8xf32> to vector<16x16x8xf32>
    %c1_116 = arith.constant 1 : index
    %c1_117 = arith.constant 1 : index
    %c0_118 = arith.constant 0 : index
    %229 = vector.load %arg10[%c1_116, %c1_117, %c0_118] : memref<18x18x8xf32, #tpu.memory_space<vmem>>, vector<16x16x8xf32>
    tpu.vector_store %arg10[%c1_116, %c1_117, %c0_118], %228 {strides = array<i32>} : memref<18x18x8xf32, #tpu.memory_space<vmem>>, vector<16x16x8xf32>,
    %c0_119 = arith.constant 0 : index
    %c0_120 = arith.constant 0 : index
    %c0_121 = arith.constant 0 : index
    %230 = vector.load %arg10[%c0_119, %c0_120, %c0_121] : memref<18x18x8xf32, #tpu.memory_space<vmem>>, vector<18x18x8xf32>
    %231 = vector.extract_strided_slice %230 {offsets = [0, 0, 0], sizes = [18, 16, 8], strides = [1, 1, 1]} : vector<18x18x8xf32> to vector<18x16x8xf32>
    %232 = vector.extract_strided_slice %230 {offsets = [0, 1, 0], sizes = [18, 16, 8], strides = [1, 1, 1]} : vector<18x18x8xf32> to vector<18x16x8xf32>
    %233 = vector.extract_strided_slice %230 {offsets = [0, 2, 0], sizes = [18, 16, 8], strides = [1, 1, 1]} : vector<18x18x8xf32> to vector<18x16x8xf32>
    %234 = tpu.concatenate %231, %232, %233 in 2 : vector<18x16x8xf32>, vector<18x16x8xf32>, vector<18x16x8xf32> -> vector<18x16x24xf32>
    %235 = vector.extract_strided_slice %234 {offsets = [0, 0, 0], sizes = [16, 16, 24], strides = [1, 1, 1]} : vector<18x16x24xf32> to vector<16x16x24xf32>
    %236 = vector.extract_strided_slice %234 {offsets = [1, 0, 0], sizes = [16, 16, 24], strides = [1, 1, 1]} : vector<18x16x24xf32> to vector<16x16x24xf32>
    %237 = vector.extract_strided_slice %234 {offsets = [2, 0, 0], sizes = [16, 16, 24], strides = [1, 1, 1]} : vector<18x16x24xf32> to vector<16x16x24xf32>
    %238 = tpu.concatenate %235, %236, %237 in 2 : vector<16x16x24xf32>, vector<16x16x24xf32>, vector<16x16x24xf32> -> vector<16x16x72xf32>
    %239 = vector.shape_cast %238 : vector<16x16x72xf32> to vector<256x72xf32>
    %c0_122 = arith.constant 0 : index
    %c0_123 = arith.constant 0 : index
    %240 = vector.load %arg6[%c0_122, %c0_123] : memref<72x8xf32, #tpu.memory_space<vmem>>, vector<72x8xf32>
    %cst_124 = arith.constant dense<0.000000e+00> : vector<256x8xf32>
    %241 = tpu.matmul %239, %240, %cst_124 {dimension_numbers = #tpu.dot_dimension_numbers<[1], [0], [0], [1], [0, 0, 1, 1], [], []>} : vector<256x72xf32>, vector<72x8xf32>, vector<256x8xf32> -> vector<256x8xf32>
    %c0_125 = arith.constant 0 : index
    %c0_126 = arith.constant 0 : index
    %242 = vector.load %arg7[%c0_125, %c0_126] : memref<1x8xf32, #tpu.memory_space<vmem>>, vector<1x8xf32>
    %243 = vector.broadcast %242 : vector<1x8xf32> to vector<256x8xf32>
    %244 = arith.addf %241, %243 : vector<256x8xf32>
    %cst_127 = arith.constant 0.000000e+00 : f32
    %245 = vector.broadcast %cst_127 : f32 to vector<256x8xf32>
    %246 = arith.maximumf %244, %245 : vector<256x8xf32>
    %247 = vector.shape_cast %246 : vector<256x8xf32> to vector<16x16x8xf32>
    %c0_128 = arith.constant 0 : index
    %c0_129 = arith.constant 0 : index
    %c0_130 = arith.constant 0 : index
    %c0_131 = arith.constant 0 : index
    %248 = vector.load %arg8[%c0_128, %c0_129, %c0_130, %c0_131] : memref<1x16x16x8xf32, #tpu.memory_space<vmem>>, vector<1x16x16x8xf32>
    %249 = vector.shape_cast %248 : vector<1x16x16x8xf32> to vector<16x16x8xf32>
    %250 = vector.shape_cast %247 : vector<16x16x8xf32> to vector<1x16x16x8xf32>
    tpu.vector_store %arg8[%c0_128, %c0_129, %c0_130, %c0_131], %250 {strides = array<i32>} : memref<1x16x16x8xf32, #tpu.memory_space<vmem>>, vector<1x16x16x8xf32>,
    return
  }
  func.func @transform_0(%arg0: i32) -> (i32, i32, i32, i32) {
    %c0_i32 = arith.constant 0 : i32
    %c0_i32_0 = arith.constant 0 : i32
    %c0_i32_1 = arith.constant 0 : i32
    %c0_i32_2 = arith.constant 0 : i32
    return %arg0, %c0_i32, %c0_i32_0, %c0_i32_1 : i32, i32, i32, i32
  }
  func.func @transform_1(%arg0: i32) -> (i32, i32, i32, i32) {
    %c0_i32 = arith.constant 0 : i32
    %c0_i32_0 = arith.constant 0 : i32
    %c0_i32_1 = arith.constant 0 : i32
    %c0_i32_2 = arith.constant 0 : i32
    return %arg0, %c0_i32, %c0_i32_0, %c0_i32_1 : i32, i32, i32, i32
  }
  func.func @transform_2(%arg0: i32) -> (i32, i32) {
    %c0_i32 = arith.constant 0 : i32
    %c0_i32_0 = arith.constant 0 : i32
    %c0_i32_1 = arith.constant 0 : i32
    return %c0_i32, %c0_i32_0 : i32, i32
  }
  func.func @transform_3(%arg0: i32) -> (i32, i32) {
    %c0_i32 = arith.constant 0 : i32
    %c0_i32_0 = arith.constant 0 : i32
    %c0_i32_1 = arith.constant 0 : i32
    return %c0_i32, %c0_i32_0 : i32, i32
  }
  func.func @transform_4(%arg0: i32) -> (i32, i32) {
    %c0_i32 = arith.constant 0 : i32
    %c0_i32_0 = arith.constant 0 : i32
    %c0_i32_1 = arith.constant 0 : i32
    return %c0_i32, %c0_i32_0 : i32, i32
  }
  func.func @transform_5(%arg0: i32) -> (i32, i32) {
    %c0_i32 = arith.constant 0 : i32
    %c0_i32_0 = arith.constant 0 : i32
    %c0_i32_1 = arith.constant 0 : i32
    return %c0_i32, %c0_i32_0 : i32, i32
  }
  func.func @transform_6(%arg0: i32) -> (i32, i32) {
    %c0_i32 = arith.constant 0 : i32
    %c0_i32_0 = arith.constant 0 : i32
    %c0_i32_1 = arith.constant 0 : i32
    return %c0_i32, %c0_i32_0 : i32, i32
  }
  func.func @transform_7(%arg0: i32) -> (i32, i32, i32, i32) {
    %c0_i32 = arith.constant 0 : i32
    %c0_i32_0 = arith.constant 0 : i32
    %c0_i32_1 = arith.constant 0 : i32
    %c0_i32_2 = arith.constant 0 : i32
    return %arg0, %c0_i32, %c0_i32_0, %c0_i32_1 : i32, i32, i32, i32
  }
}

</mosaic_0001>

<llo_original>
// kernel: uup_forward.1
$region0: #{uup_forward.1}
  #allocation0 [shape = 'u32[]', space=smem, size = 0x4, offset = 0x4, fixed_abs, tag = 'smem constant byte address 0x4 - core index']
  #allocation1 [shape = 'u32[144,128]{1,0:T(1,128)}', space=vmem, size = 0x12000, scoped, tag = 'internal scratch']
  #allocation2 [shape = 'f32[18,18,12]{2,1,0:T(8,128)}', space=vmem, size = 0x36000, scoped, tag = 'scratch operand']
  #allocation3 [shape = 'f32[18,18,8]{2,1,0:T(8,128)}', space=vmem, size = 0x36000, scoped, tag = 'scratch operand']
  %s0 = inlined_call_operand.vmem [shape: f32[2,8,8,4], index: 0, kind: input, shape index: {}]
  %s1 = inlined_call_operand.vmem [shape: f32[2,16,16,8], index: 1, kind: input, shape index: {}]
  %s2 = inlined_call_operand.vmem [shape: f32[16,8], index: 2, kind: input, shape index: {}]
  %s3 = inlined_call_operand.vmem [shape: f32[108,8], index: 3, kind: input, shape index: {}]
  %s4 = inlined_call_operand.vmem [shape: f32[1,8], index: 4, kind: input, shape index: {}]
  %s5 = inlined_call_operand.vmem [shape: f32[72,8], index: 5, kind: input, shape index: {}]
  %s6 = inlined_call_operand.vmem [shape: f32[1,8], index: 6, kind: input, shape index: {}]
  %s7 = inlined_call_operand.vmem [shape: f32[2,16,16,8], index: 7, kind: output, shape index: {}]
  %s8 = sld [smem:[#allocation0]]
  $region61: #{uup_forward.1} parent=0
    _
  %s10 = ssub.s32 1, %s8
  %s11 = scalar_select 0, %s10, %s8
  loop: start=0, step=1, limit=4
  $region2: #{uup_forward.1} parent=0 // loop_pre_header
    _
  $region3: #{uup_forward.1} parent=0 // loop_header
    %s13 = sphi 0, %s17
    %p14 = scmp.ge.s32.totalorder %s13, 4
    %s23 = sphi 0, %s25
    %s26 = sphi 0, %s23
    %s27 = sphi 0, %s26
    %s43 = sphi 0, %s27
    %s49 = sphi 0, %s51
    %s52 = sphi 0, %s49
    %s53 = sphi 0, %s52
    %s69 = sphi 0, %s53
    %s73 = sphi 0, %s73
    %s75 = sphi 0, %s73
    %s76 = sphi 0, %s75
    %s90 = sphi 0, %s76
    %s94 = sphi 0, %s94
    %s96 = sphi 0, %s94
    %s97 = sphi 0, %s96
    %s111 = sphi 0, %s97
    %s115 = sphi 0, %s115
    %s117 = sphi 0, %s115
    %s118 = sphi 0, %s117
    %s132 = sphi 0, %s118
    %s136 = sphi 0, %s136
    %s138 = sphi 0, %s136
    %s139 = sphi 0, %s138
    %s153 = sphi 0, %s139
    %s157 = sphi 0, %s157
    %s159 = sphi 0, %s157
    %s160 = sphi 0, %s159
    %s174 = sphi 0, %s160
    %s180 = sphi 0, %s182
    %s183 = sphi 0, %s180
    %s184 = sphi 0, %s183
    %s200 = sphi 0, %s184
  $region4: #{uup_forward.1} parent=0 // loop_header_branch
    %16 = sbr.rel (%p14) target = $region8
  $region5: #{uup_forward.1} parent=0 // loop_body
    %s18 = ssub.s32 %s13, 1
    %s19 = ssub.s32 %s13, 2
    %s20 = sadd.s32 %s13, 1
    %s21 = ssub.s32 %s13, %s20
    %p22 = scmp.eq.s32.totalorder %s21, 0
    %s24 = sadd.s32 %s23, 1
    %s25 = scalar_select %p22, %s23, %s24
    %p28 = pneg %p22
    %p29 = scmp.eq.s32.totalorder %s13, 1
    %p30 = por %p28, %p29
    %p31 = scmp.ne.s32.totalorder %s23, %s26
    %p32 = scmp.eq.s32.totalorder %s13, 0
    %p33 = por %p31, %p32
    %p34 = scmp.ne.s32.totalorder %s23, %s26
    %p35 = scmp.eq.s32.totalorder %s18, 1
    %p36 = por %p34, %p35
    %p37 = scmp.ne.s32.totalorder %s26, %s27
    %p38 = scmp.eq.s32.totalorder %s18, 0
    %p39 = por %p37, %p38
    %p40 = scmp.ne.s32.totalorder %s26, %s27
    %p41 = scmp.eq.s32.totalorder %s19, 1
    %p42 = por %p40, %p41
    %p44 = scmp.ne.s32.totalorder %s27, %s43
    %p45 = scmp.eq.s32.totalorder %s19, 0
    %p46 = por %p44, %p45
    %s47 = ssub.s32 %s13, %s20
    %p48 = scmp.eq.s32.totalorder %s47, 0
    %s50 = sadd.s32 %s49, 1
    %s51 = scalar_select %p48, %s49, %s50
    %p54 = pneg %p48
    %p55 = scmp.eq.s32.totalorder %s13, 1
    %p56 = por %p54, %p55
    %p57 = scmp.ne.s32.totalorder %s49, %s52
    %p58 = scmp.eq.s32.totalorder %s13, 0
    %p59 = por %p57, %p58
    %p60 = scmp.ne.s32.totalorder %s49, %s52
    %p61 = scmp.eq.s32.totalorder %s18, 1
    %p62 = por %p60, %p61
    %p63 = scmp.ne.s32.totalorder %s52, %s53
    %p64 = scmp.eq.s32.totalorder %s18, 0
    %p65 = por %p63, %p64
    %p66 = scmp.ne.s32.totalorder %s52, %s53
    %p67 = scmp.eq.s32.totalorder %s19, 1
    %p68 = por %p66, %p67
    %p70 = scmp.ne.s32.totalorder %s53, %s69
    %p71 = scmp.eq.s32.totalorder %s19, 0
    %p72 = por %p70, %p71
    %s74 = sadd.s32 %s73, 1
    %p77 = scmp.eq.s32.totalorder %s13, 1
    %p78 = scmp.ne.s32.totalorder %s73, %s75
    %p79 = scmp.eq.s32.totalorder %s13, 0
    %p80 = por %p78, %p79
    %p81 = scmp.ne.s32.totalorder %s73, %s75
    %p82 = scmp.eq.s32.totalorder %s18, 1
    %p83 = por %p81, %p82
    %p84 = scmp.ne.s32.totalorder %s75, %s76
    %p85 = scmp.eq.s32.totalorder %s18, 0
    %p86 = por %p84, %p85
    %p87 = scmp.ne.s32.totalorder %s75, %s76
    %p88 = scmp.eq.s32.totalorder %s19, 1
    %p89 = por %p87, %p88
    %p91 = scmp.ne.s32.totalorder %s76, %s90
    %p92 = scmp.eq.s32.totalorder %s19, 0
    %p93 = por %p91, %p92
    %s95 = sadd.s32 %s94, 1
    %p98 = scmp.eq.s32.totalorder %s13, 1
    %p99 = scmp.ne.s32.totalorder %s94, %s96
    %p100 = scmp.eq.s32.totalorder %s13, 0
    %p101 = por %p99, %p100
    %p102 = scmp.ne.s32.totalorder %s94, %s96
    %p103 = scmp.eq.s32.totalorder %s18, 1
    %p104 = por %p102, %p103
    %p105 = scmp.ne.s32.totalorder %s96, %s97
    %p106 = scmp.eq.s32.totalorder %s18, 0
    %p107 = por %p105, %p106
    %p108 = scmp.ne.s32.totalorder %s96, %s97
    %p109 = scmp.eq.s32.totalorder %s19, 1
    %p110 = por %p108, %p109
    %p112 = scmp.ne.s32.totalorder %s97, %s111
    %p113 = scmp.eq.s32.totalorder %s19, 0
    %p114 = por %p112, %p113
    %s116 = sadd.s32 %s115, 1
    %p119 = scmp.eq.s32.totalorder %s13, 1
    %p120 = scmp.ne.s32.totalorder %s115, %s117
    %p121 = scmp.eq.s32.totalorder %s13, 0
    %p122 = por %p120, %p121
    %p123 = scmp.ne.s32.totalorder %s115, %s117
    %p124 = scmp.eq.s32.totalorder %s18, 1
    %p125 = por %p123, %p124
    %p126 = scmp.ne.s32.totalorder %s117, %s118
    %p127 = scmp.eq.s32.totalorder %s18, 0
    %p128 = por %p126, %p127
    %p129 = scmp.ne.s32.totalorder %s117, %s118
    %p130 = scmp.eq.s32.totalorder %s19, 1
    %p131 = por %p129, %p130
    %p133 = scmp.ne.s32.totalorder %s118, %s132
    %p134 = scmp.eq.s32.totalorder %s19, 0
    %p135 = por %p133, %p134
    %s137 = sadd.s32 %s136, 1
    %p140 = scmp.eq.s32.totalorder %s13, 1
    %p141 = scmp.ne.s32.totalorder %s136, %s138
    %p142 = scmp.eq.s32.totalorder %s13, 0
    %p143 = por %p141, %p142
    %p144 = scmp.ne.s32.totalorder %s136, %s138
    %p145 = scmp.eq.s32.totalorder %s18, 1
    %p146 = por %p144, %p145
    %p147 = scmp.ne.s32.totalorder %s138, %s139
    %p148 = scmp.eq.s32.totalorder %s18, 0
    %p149 = por %p147, %p148
    %p150 = scmp.ne.s32.totalorder %s138, %s139
    %p151 = scmp.eq.s32.totalorder %s19, 1
    %p152 = por %p150, %p151
    %p154 = scmp.ne.s32.totalorder %s139, %s153
    %p155 = scmp.eq.s32.totalorder %s19, 0
    %p156 = por %p154, %p155
    %s158 = sadd.s32 %s157, 1
    %p161 = scmp.eq.s32.totalorder %s13, 1
    %p162 = scmp.ne.s32.totalorder %s157, %s159
    %p163 = scmp.eq.s32.totalorder %s13, 0
    %p164 = por %p162, %p163
    %p165 = scmp.ne.s32.totalorder %s157, %s159
    %p166 = scmp.eq.s32.totalorder %s18, 1
    %p167 = por %p165, %p166
    %p168 = scmp.ne.s32.totalorder %s159, %s160
    %p169 = scmp.eq.s32.totalorder %s18, 0
    %p170 = por %p168, %p169
    %p171 = scmp.ne.s32.totalorder %s159, %s160
    %p172 = scmp.eq.s32.totalorder %s19, 1
    %p173 = por %p171, %p172
    %p175 = scmp.ne.s32.totalorder %s160, %s174
    %p176 = scmp.eq.s32.totalorder %s19, 0
    %p177 = por %p175, %p176
    %s178 = ssub.s32 %s13, %s20
    %p179 = scmp.eq.s32.totalorder %s178, 0
    %s181 = sadd.s32 %s180, 1
    %s182 = scalar_select %p179, %s180, %s181
    %p185 = pneg %p179
    %p186 = scmp.eq.s32.totalorder %s13, 1
    %p187 = por %p185, %p186
    %p188 = scmp.ne.s32.totalorder %s180, %s183
    %p189 = scmp.eq.s32.totalorder %s13, 0
    %p190 = por %p188, %p189
    %p191 = scmp.ne.s32.totalorder %s180, %s183
    %p192 = scmp.eq.s32.totalorder %s18, 1
    %p193 = por %p191, %p192
    %p194 = scmp.ne.s32.totalorder %s183, %s184
    %p195 = scmp.eq.s32.totalorder %s18, 0
    %p196 = por %p194, %p195
    %p197 = scmp.ne.s32.totalorder %s183, %s184
    %p198 = scmp.eq.s32.totalorder %s19, 1
    %p199 = por %p197, %p198
    %p201 = scmp.ne.s32.totalorder %s184, %s200
    %p202 = scmp.eq.s32.totalorder %s19, 0
    %p203 = por %p201, %p202
    %p204 = scmp.le.s32.totalorder 1, %s13
    %p205 = scmp.lt.s32.totalorder %s13, 3
    %p206 = pnand %p204, %p205
    %p207 = pneg %p206
    // Predicated region
    $region9: #{uup_forward.1} parent=5 // pred_check
      _
    $region10: #{uup_forward.1} parent=5 // pred_check_branch
      %209 = sbr.rel (%p206) target = $region12
    $region11: #{uup_forward.1} parent=5 // pred_region
      %s210 = ssub.s32 %s13, 1
      // Predicated region
      $region13: #{uup_forward.1} parent=11 // pred_check
        %p211 = pneg %p86
      $region14: #{uup_forward.1} parent=11 // pred_check_branch
        %213 = sbr.rel (%p211) target = $region16
      $region15: #{uup_forward.1} parent=11 // pred_region
        _
      $region16: #{uup_forward.1} parent=11 // pred_fallthru
        _
      // Predicated region
      $region17: #{uup_forward.1} parent=11 // pred_check
        %p214 = pneg %p107
      $region18: #{uup_forward.1} parent=11 // pred_check_branch
        %216 = sbr.rel (%p214) target = $region20
      $region19: #{uup_forward.1} parent=11 // pred_region
        _
      $region20: #{uup_forward.1} parent=11 // pred_fallthru
        _
      // Predicated region
      $region21: #{uup_forward.1} parent=11 // pred_check
        %p217 = pneg %p128
      $region22: #{uup_forward.1} parent=11 // pred_check_branch
        %219 = sbr.rel (%p217) target = $region24
      $region23: #{uup_forward.1} parent=11 // pred_region
        _
      $region24: #{uup_forward.1} parent=11 // pred_fallthru
        _
      // Predicated region
      $region25: #{uup_forward.1} parent=11 // pred_check
        %p220 = pneg %p149
      $region26: #{uup_forward.1} parent=11 // pred_check_branch
        %222 = sbr.rel (%p220) target = $region28
      $region27: #{uup_forward.1} parent=11 // pred_region
        _
      $region28: #{uup_forward.1} parent=11 // pred_fallthru
        _
      // Predicated region
      $region29: #{uup_forward.1} parent=11 // pred_check
        %p223 = pneg %p170
      $region30: #{uup_forward.1} parent=11 // pred_check_branch
        %225 = sbr.rel (%p223) target = $region32
      $region31: #{uup_forward.1} parent=11 // pred_region
        _
      $region32: #{uup_forward.1} parent=11 // pred_fallthru
        _
    $region12: #{uup_forward.1} parent=5 // pred_fallthru
      _
    %p226 = scmp.lt.s32.totalorder %s13, 2
    // Predicated region
    $region33: #{uup_forward.1} parent=5 // pred_check
      %p227 = pneg %p226
    $region34: #{uup_forward.1} parent=5 // pred_check_branch
      %229 = sbr.rel (%p227) target = $region36
    $region35: #{uup_forward.1} parent=5 // pred_region
      // Predicated region
      $region37: #{uup_forward.1} parent=35 // pred_check
        %p230 = pneg %p33
      $region38: #{uup_forward.1} parent=35 // pred_check_branch
        %232 = sbr.rel (%p230) target = $region40
      $region39: #{uup_forward.1} parent=35 // pred_region
        %p233 = scmp.lt.s32.totalorder %s13, 1
        %s234 = scalar_select %p233, %s13, 1
        %s235 = smul.addr %s234, 8
        %s236 = smul.addr %s235, 8
        %s237 = scalar_lea.vmem %s0, %s236
      $region40: #{uup_forward.1} parent=35 // pred_fallthru
        _
      // Predicated region
      $region41: #{uup_forward.1} parent=35 // pred_check
        %p238 = pneg %p59
      $region42: #{uup_forward.1} parent=35 // pred_check_branch
        %240 = sbr.rel (%p238) target = $region44
      $region43: #{uup_forward.1} parent=35 // pred_region
        %p241 = scmp.lt.s32.totalorder %s13, 1
        %s242 = scalar_select %p241, %s13, 1
        %s243 = smul.addr %s242, 32
        %s244 = smul.addr %s243, 8
        %s245 = scalar_lea.vmem %s1, %s244
      $region44: #{uup_forward.1} parent=35 // pred_fallthru
        _
    $region36: #{uup_forward.1} parent=5 // pred_fallthru
      _
    %p246 = scmp.le.s32.totalorder 1, %s13
    %p247 = scmp.lt.s32.totalorder %s13, 3
    %p248 = pnand %p246, %p247
    %p249 = pneg %p248
    // Predicated region
    $region45: #{uup_forward.1} parent=5 // pred_check
      _
    $region46: #{uup_forward.1} parent=5 // pred_check_branch
      %251 = sbr.rel (%p248) target = $region48
    $region47: #{uup_forward.1} parent=5 // pred_region
      %s252 = ssub.s32 %s13, 1
      %p253 = scmp.lt.s32.totalorder %s18, 1
      %s254 = scalar_select %p253, %s18, 1
      %s255 = smul.addr %s254, 8
      %s256 = smul.addr %s255, 8
      %s257 = scalar_lea.vmem %s0, %s256
      %p258 = pneg %p39
      %p259 = pneg %p36
      %p260 = scmp.lt.s32.totalorder %s18, 1
      %s261 = scalar_select %p260, %s18, 1
      %s262 = smul.addr %s261, 32
      %s263 = smul.addr %s262, 8
      %s264 = scalar_lea.vmem %s1, %s263
      %p265 = pneg %p65
      %p266 = pneg %p62
      %p267 = pneg %p86
      %p268 = pneg %p83
      %p269 = pneg %p107
      %p270 = pneg %p104
      %p271 = pneg %p128
      %p272 = pneg %p125
      %p273 = pneg %p149
      %p274 = pneg %p146
      %p275 = pneg %p170
      %p276 = pneg %p167
      %p277 = pneg %p196
      %p278 = pneg %p193
      %p279 = scmp.lt.s32.totalorder %s18, 1
      %s280 = scalar_select %p279, %s18, 1
      %s281 = smul.addr %s280, 32
      %s282 = smul.addr %s281, 8
      %s283 = scalar_lea.vmem %s7, %s282
      %p284 = scmp.lt.s32.totalorder %s18, 1
      %s285 = scalar_select %p284, %s18, 1
      %s286 = smul.addr %s285, 8
      %s287 = smul.addr %s286, 8
      %s288 = scalar_lea.vmem %s0, %s287
      %p289 = scmp.lt.s32.totalorder %s18, 1
      %s290 = scalar_select %p289, %s18, 1
      %s291 = smul.addr %s290, 32
      %s292 = smul.addr %s291, 8
      %s293 = scalar_lea.vmem %s1, %s292
      %p294 = scmp.lt.s32.totalorder %s18, 1
      %s295 = scalar_select %p294, %s18, 1
      %s296 = smul.addr %s295, 32
      %s297 = smul.addr %s296, 8
      %s298 = scalar_lea.vmem %s7, %s297
      %vm299 = vcmask 97280
      %300 = vst.msk [vmem:[#allocation2] sm:$0xff] %vm299, 0.0
      %301 = vst.msk [vmem:[#allocation2 + $0x8] sm:$0xff] %vm299, 0.0
      %vm302 = vcmask 91136
      %303 = vst.msk [vmem:[#allocation2 + $0x10] sm:$0x3] %vm302, 0.0
      %s304 = scalar_lea.vmem [#allocation2], 408
      %305 = vst.msk [vmem:[%s304] sm:$0xff] %vm299, 0.0
      %306 = vst.msk [vmem:[%s304 + $0x8] sm:$0xff] %vm299, 0.0
      %307 = vst.msk [vmem:[%s304 + $0x10] sm:$0x3] %vm302, 0.0
      %vm308 = vcmask 90112
      %309 = vst.msk [vmem:[#allocation2] sm:$0x1] %vm308, 0.0
      %310 = vst.msk [vmem:[#allocation2 + $0x18] sm:$0x1] %vm308, 0.0
      %311 = vst.msk [vmem:[#allocation2 + $0x30] sm:$0x1] %vm308, 0.0
      %312 = vst.msk [vmem:[#allocation2 + $0x48] sm:$0x1] %vm308, 0.0
      %313 = vst.msk [vmem:[#allocation2 + $0x60] sm:$0x1] %vm308, 0.0
      %314 = vst.msk [vmem:[#allocation2 + $0x78] sm:$0x1] %vm308, 0.0
      %315 = vst.msk [vmem:[#allocation2 + $0x90] sm:$0x1] %vm308, 0.0
      %316 = vst.msk [vmem:[#allocation2 + $0xa8] sm:$0x1] %vm308, 0.0
      %317 = vst.msk [vmem:[#allocation2 + $0xc0] sm:$0x1] %vm308, 0.0
      %318 = vst.msk [vmem:[#allocation2 + $0xd8] sm:$0x1] %vm308, 0.0
      %319 = vst.msk [vmem:[#allocation2 + $0xf0] sm:$0x1] %vm308, 0.0
      %320 = vst.msk [vmem:[#allocation2 + $0x108] sm:$0x1] %vm308, 0.0
      %321 = vst.msk [vmem:[#allocation2 + $0x120] sm:$0x1] %vm308, 0.0
      %322 = vst.msk [vmem:[#allocation2 + $0x138] sm:$0x1] %vm308, 0.0
      %323 = vst.msk [vmem:[#allocation2 + $0x150] sm:$0x1] %vm308, 0.0
      %324 = vst.msk [vmem:[#allocation2 + $0x168] sm:$0x1] %vm308, 0.0
      %325 = vst.msk [vmem:[#allocation2 + $0x180] sm:$0x1] %vm308, 0.0
      %326 = vst.msk [vmem:[#allocation2 + $0x198] sm:$0x1] %vm308, 0.0
      %327 = vst.msk [vmem:[#allocation2 + $0x11] sm:$0x1] %vm308, 0.0
      %328 = vst.msk [vmem:[#allocation2 + $0x29] sm:$0x1] %vm308, 0.0
      %329 = vst.msk [vmem:[#allocation2 + $0x41] sm:$0x1] %vm308, 0.0
      %330 = vst.msk [vmem:[#allocation2 + $0x59] sm:$0x1] %vm308, 0.0
      %331 = vst.msk [vmem:[#allocation2 + $0x71] sm:$0x1] %vm308, 0.0
      %332 = vst.msk [vmem:[#allocation2 + $0x89] sm:$0x1] %vm308, 0.0
      %333 = vst.msk [vmem:[#allocation2 + $0xa1] sm:$0x1] %vm308, 0.0
      %334 = vst.msk [vmem:[#allocation2 + $0xb9] sm:$0x1] %vm308, 0.0
      %335 = vst.msk [vmem:[#allocation2 + $0xd1] sm:$0x1] %vm308, 0.0
      %336 = vst.msk [vmem:[#allocation2 + $0xe9] sm:$0x1] %vm308, 0.0
      %337 = vst.msk [vmem:[#allocation2 + $0x101] sm:$0x1] %vm308, 0.0
      %338 = vst.msk [vmem:[#allocation2 + $0x119] sm:$0x1] %vm308, 0.0
      %339 = vst.msk [vmem:[#allocation2 + $0x131] sm:$0x1] %vm308, 0.0
      %340 = vst.msk [vmem:[#allocation2 + $0x149] sm:$0x1] %vm308, 0.0
      %341 = vst.msk [vmem:[#allocation2 + $0x161] sm:$0x1] %vm308, 0.0
      %342 = vst.msk [vmem:[#allocation2 + $0x179] sm:$0x1] %vm308, 0.0
      %343 = vst.msk [vmem:[#allocation2 + $0x191] sm:$0x1] %vm308, 0.0
      %344 = vst.msk [vmem:[#allocation2 + $0x1a9] sm:$0x1] %vm308, 0.0
      %vm345 = vcmask 64512
      %346 = vst.msk [vmem:[#allocation3] sm:$0xff] %vm345, 0.0
      %347 = vst.msk [vmem:[#allocation3 + $0x8] sm:$0xff] %vm345, 0.0
      %vm348 = vcmask 58368
      %349 = vst.msk [vmem:[#allocation3 + $0x10] sm:$0x3] %vm348, 0.0
      %s350 = scalar_lea.vmem [#allocation3], 408
      %351 = vst.msk [vmem:[%s350] sm:$0xff] %vm345, 0.0
      %352 = vst.msk [vmem:[%s350 + $0x8] sm:$0xff] %vm345, 0.0
      %353 = vst.msk [vmem:[%s350 + $0x10] sm:$0x3] %vm348, 0.0
      %vm354 = vcmask 57344
      %355 = vst.msk [vmem:[#allocation3] sm:$0x1] %vm354, 0.0
      %356 = vst.msk [vmem:[#allocation3 + $0x18] sm:$0x1] %vm354, 0.0
      %357 = vst.msk [vmem:[#allocation3 + $0x30] sm:$0x1] %vm354, 0.0
      %358 = vst.msk [vmem:[#allocation3 + $0x48] sm:$0x1] %vm354, 0.0
      %359 = vst.msk [vmem:[#allocation3 + $0x60] sm:$0x1] %vm354, 0.0
      %360 = vst.msk [vmem:[#allocation3 + $0x78] sm:$0x1] %vm354, 0.0
      %361 = vst.msk [vmem:[#allocation3 + $0x90] sm:$0x1] %vm354, 0.0
      %362 = vst.msk [vmem:[#allocation3 + $0xa8] sm:$0x1] %vm354, 0.0
      %363 = vst.msk [vmem:[#allocation3 + $0xc0] sm:$0x1] %vm354, 0.0
      %364 = vst.msk [vmem:[#allocation3 + $0xd8] sm:$0x1] %vm354, 0.0
      %365 = vst.msk [vmem:[#allocation3 + $0xf0] sm:$0x1] %vm354, 0.0
      %366 = vst.msk [vmem:[#allocation3 + $0x108] sm:$0x1] %vm354, 0.0
      %367 = vst.msk [vmem:[#allocation3 + $0x120] sm:$0x1] %vm354, 0.0
      %368 = vst.msk [vmem:[#allocation3 + $0x138] sm:$0x1] %vm354, 0.0
      %369 = vst.msk [vmem:[#allocation3 + $0x150] sm:$0x1] %vm354, 0.0
      %370 = vst.msk [vmem:[#allocation3 + $0x168] sm:$0x1] %vm354, 0.0
      %371 = vst.msk [vmem:[#allocation3 + $0x180] sm:$0x1] %vm354, 0.0
      %372 = vst.msk [vmem:[#allocation3 + $0x198] sm:$0x1] %vm354, 0.0
      %373 = vst.msk [vmem:[#allocation3 + $0x11] sm:$0x1] %vm354, 0.0
      %374 = vst.msk [vmem:[#allocation3 + $0x29] sm:$0x1] %vm354, 0.0
      %375 = vst.msk [vmem:[#allocation3 + $0x41] sm:$0x1] %vm354, 0.0
      %376 = vst.msk [vmem:[#allocation3 + $0x59] sm:$0x1] %vm354, 0.0
      %377 = vst.msk [vmem:[#allocation3 + $0x71] sm:$0x1] %vm354, 0.0
      %378 = vst.msk [vmem:[#allocation3 + $0x89] sm:$0x1] %vm354, 0.0
      %379 = vst.msk [vmem:[#allocation3 + $0xa1] sm:$0x1] %vm354, 0.0
      %380 = vst.msk [vmem:[#allocation3 + $0xb9] sm:$0x1] %vm354, 0.0
      %381 = vst.msk [vmem:[#allocation3 + $0xd1] sm:$0x1] %vm354, 0.0
      %382 = vst.msk [vmem:[#allocation3 + $0xe9] sm:$0x1] %vm354, 0.0
      %383 = vst.msk [vmem:[#allocation3 + $0x101] sm:$0x1] %vm354, 0.0
      %384 = vst.msk [vmem:[#allocation3 + $0x119] sm:$0x1] %vm354, 0.0
      %385 = vst.msk [vmem:[#allocation3 + $0x131] sm:$0x1] %vm354, 0.0
      %386 = vst.msk [vmem:[#allocation3 + $0x149] sm:$0x1] %vm354, 0.0
      %387 = vst.msk [vmem:[#allocation3 + $0x161] sm:$0x1] %vm354, 0.0
      %388 = vst.msk [vmem:[#allocation3 + $0x179] sm:$0x1] %vm354, 0.0
      %389 = vst.msk [vmem:[#allocation3 + $0x191] sm:$0x1] %vm354, 0.0
      %390 = vst.msk [vmem:[#allocation3 + $0x1a9] sm:$0x1] %vm354, 0.0
      %v391 = vld [vmem:[%s2] sm:$0xff]
      %v392 = vld [vmem:[%s2 + $0x8] sm:$0xff]
      %v393 = vld [vmem:[%s288] sm:$0xff]
      %v394 = vld [vmem:[%s288 + $0x8] sm:$0xff]
      %v395 = vld [vmem:[%s288 + $0x10] sm:$0xff]
      %v396 = vld [vmem:[%s288 + $0x18] sm:$0xff]
      %v397 = vld [vmem:[%s288 + $0x20] sm:$0xff]
      %v398 = vld [vmem:[%s288 + $0x28] sm:$0xff]
      %v399 = vld [vmem:[%s288 + $0x30] sm:$0xff]
      %v400 = vld [vmem:[%s288 + $0x38] sm:$0xff]
      %v401 = vld [vmem:[%s293] sm:$0xff]
      %v402 = vld [vmem:[%s293 + $0x8] sm:$0xff]
      %v403 = vld [vmem:[%s293 + $0x10] sm:$0xff]
      %v404 = vld [vmem:[%s293 + $0x18] sm:$0xff]
      %v405 = vld [vmem:[%s293 + $0x20] sm:$0xff]
      %v406 = vld [vmem:[%s293 + $0x28] sm:$0xff]
      %v407 = vld [vmem:[%s293 + $0x30] sm:$0xff]
      %v408 = vld [vmem:[%s293 + $0x38] sm:$0xff]
      %v409 = vld [vmem:[%s293 + $0x40] sm:$0xff]
      %v410 = vld [vmem:[%s293 + $0x48] sm:$0xff]
      %v411 = vld [vmem:[%s293 + $0x50] sm:$0xff]
      %v412 = vld [vmem:[%s293 + $0x58] sm:$0xff]
      %v413 = vld [vmem:[%s293 + $0x60] sm:$0xff]
      %v414 = vld [vmem:[%s293 + $0x68] sm:$0xff]
      %v415 = vld [vmem:[%s293 + $0x70] sm:$0xff]
      %v416 = vld [vmem:[%s293 + $0x78] sm:$0xff]
      %v417 = vld [vmem:[%s293 + $0x80] sm:$0xff]
      %v418 = vld [vmem:[%s293 + $0x88] sm:$0xff]
      %v419 = vld [vmem:[%s293 + $0x90] sm:$0xff]
      %v420 = vld [vmem:[%s293 + $0x98] sm:$0xff]
      %v421 = vld [vmem:[%s293 + $0xa0] sm:$0xff]
      %v422 = vld [vmem:[%s293 + $0xa8] sm:$0xff]
      %v423 = vld [vmem:[%s293 + $0xb0] sm:$0xff]
      %v424 = vld [vmem:[%s293 + $0xb8] sm:$0xff]
      %v425 = vld [vmem:[%s293 + $0xc0] sm:$0xff]
      %v426 = vld [vmem:[%s293 + $0xc8] sm:$0xff]
      %v427 = vld [vmem:[%s293 + $0xd0] sm:$0xff]
      %v428 = vld [vmem:[%s293 + $0xd8] sm:$0xff]
      %v429 = vld [vmem:[%s293 + $0xe0] sm:$0xff]
      %v430 = vld [vmem:[%s293 + $0xe8] sm:$0xff]
      %v431 = vld [vmem:[%s293 + $0xf0] sm:$0xff]
      %v432 = vld [vmem:[%s293 + $0xf8] sm:$0xff]
      %v434 = vsel %vm345, %v391, 0
      %v437 = vsel %vm345, %v392, 0
      %439 = vmatprep.subr.mxu0 0.0
      %440 = vmatpush1.msra.mxu0 0.0
      %441 = vmatprep.subr.mxu0 0.0
      %442 = vmatpush1.msra.mxu0 0.0
      %443 = vmatprep.subr.mxu0 0.0
      %444 = vmatpush1.msra.mxu0 0.0
      %445 = vmatprep.subr.mxu0 0.0
      %446 = vmatpush1.msra.mxu0 0.0
      %447 = vmatprep.subr.mxu0 0.0
      %448 = vmatpush1.msra.mxu0 0.0
      %449 = vmatprep.subr.mxu0 0.0
      %450 = vmatpush1.msra.mxu0 0.0
      %451 = vmatprep.subr.mxu0 0.0
      %452 = vmatpush1.msra.mxu0 0.0
      %453 = vmatprep.subr.mxu0 0.0
      %454 = vmatpush1.msra.mxu0 0.0
      %455 = vmatprep.subr.mxu0 0.0
      %456 = vmatpush1.msra.mxu0 0.0
      %457 = vmatprep.subr.mxu0 0.0
      %458 = vmatpush1.msra.mxu0 0.0
      %459 = vmatprep.subr.mxu0 0.0
      %460 = vmatpush1.msra.mxu0 0.0
      %461 = vmatprep.subr.mxu0 0.0
      %462 = vmatpush1.msra.mxu0 0.0
      %463 = vmatprep.subr.mxu0 0.0
      %464 = vmatpush1.msra.mxu0 0.0
      %465 = vmatprep.subr.mxu0 0.0
      %466 = vmatpush1.msra.mxu0 0.0
      %467 = vmatprep.subr.mxu0 0.0
      %468 = vmatpush1.msra.mxu0 0.0
      %469 = vmatprep.subr.mxu0 0.0
      %470 = vmatpush1.msra.mxu0 %v393
      %471 = vmatprep.subr.mxu0 0.0
      %472 = vmatpush2.msra.mxu0 0.0
      %473 = vmatprep.subr.mxu0 0.0
      %474 = vmatpush2.msra.mxu0 0.0
      %475 = vmatprep.subr.mxu0 0.0
      %476 = vmatpush2.msra.mxu0 0.0
      %477 = vmatprep.subr.mxu0 0.0
      %478 = vmatpush2.msra.mxu0 0.0
      %479 = vmatprep.subr.mxu0 0.0
      %480 = vmatpush2.msra.mxu0 0.0
      %481 = vmatprep.subr.mxu0 0.0
      %482 = vmatpush2.msra.mxu0 0.0
      %483 = vmatprep.subr.mxu0 0.0
      %484 = vmatpush2.msra.mxu0 0.0
      %485 = vmatprep.subr.mxu0 0.0
      %486 = vmatpush2.msra.mxu0 0.0
      %487 = vmatprep.subr.mxu0 0.0
      %488 = vmatpush2.msra.mxu0 0.0
      %489 = vmatprep.subr.mxu0 0.0
      %490 = vmatpush2.msra.mxu0 0.0
      %491 = vmatprep.subr.mxu0 0.0
      %492 = vmatpush2.msra.mxu0 0.0
      %493 = vmatprep.subr.mxu0 0.0
      %494 = vmatpush2.msra.mxu0 0.0
      %495 = vmatprep.subr.mxu0 0.0
      %496 = vmatpush2.msra.mxu0 0.0
      %497 = vmatprep.subr.mxu0 0.0
      %498 = vmatpush2.msra.mxu0 0.0
      %499 = vmatprep.subr.mxu0 0.0
      %500 = vmatpush2.msra.mxu0 0.0
      %501 = vmatprep.subr.mxu0 0.0
      %502 = vmatpush2.msra.mxu0 0.0
      %503 = vmatprep.mubr.f32.mxu0 0.0
      %504 = vmatmul.mubr.f32.gmra.mxu0 %v434
      %v505 = vpop.f32.mrf.mxu0
      %v506 = vadd.f32 0.0, %v505
      %v507 = vpop.f32.mrf.mxu0
      %508 = vmatprep.mubr.f32.mxu0 0.0
      %509 = vmatmul.mubr.f32.gmra.mxu0 %v437
      %v510 = vpop.f32.mrf.mxu0
      %v511 = vadd.f32 0.0, %v510
      %v512 = vpop.f32.mrf.mxu0
      %513 = vdwg.mxu0
      %514 = vmatprep.subr.mxu0 0.0
      %515 = vmatpush1.msra.mxu0 0.0
      %516 = vmatprep.subr.mxu0 0.0
      %517 = vmatpush1.msra.mxu0 0.0
      %518 = vmatprep.subr.mxu0 0.0
      %519 = vmatpush1.msra.mxu0 0.0
      %520 = vmatprep.subr.mxu0 0.0
      %521 = vmatpush1.msra.mxu0 0.0
      %522 = vmatprep.subr.mxu0 0.0
      %523 = vmatpush1.msra.mxu0 0.0
      %524 = vmatprep.subr.mxu0 0.0
      %525 = vmatpush1.msra.mxu0 0.0
      %526 = vmatprep.subr.mxu0 0.0
      %527 = vmatpush1.msra.mxu0 0.0
      %528 = vmatprep.subr.mxu0 0.0
      %529 = vmatpush1.msra.mxu0 0.0
      %530 = vmatprep.subr.mxu0 0.0
      %531 = vmatpush1.msra.mxu0 0.0
      %532 = vmatprep.subr.mxu0 0.0
      %533 = vmatpush1.msra.mxu0 0.0
      %534 = vmatprep.subr.mxu0 0.0
      %535 = vmatpush1.msra.mxu0 0.0
      %536 = vmatprep.subr.mxu0 0.0
      %537 = vmatpush1.msra.mxu0 0.0
      %538 = vmatprep.subr.mxu0 0.0
      %539 = vmatpush1.msra.mxu0 0.0
      %540 = vmatprep.subr.mxu0 0.0
      %541 = vmatpush1.msra.mxu0 0.0
      %542 = vmatprep.subr.mxu0 0.0
      %543 = vmatpush1.msra.mxu0 0.0
      %544 = vmatprep.subr.mxu0 0.0
      %545 = vmatpush1.msra.mxu0 %v394
      %546 = vmatprep.subr.mxu0 0.0
      %547 = vmatpush2.msra.mxu0 0.0
      %548 = vmatprep.subr.mxu0 0.0
      %549 = vmatpush2.msra.mxu0 0.0
      %550 = vmatprep.subr.mxu0 0.0
      %551 = vmatpush2.msra.mxu0 0.0
      %552 = vmatprep.subr.mxu0 0.0
      %553 = vmatpush2.msra.mxu0 0.0
      %554 = vmatprep.subr.mxu0 0.0
      %555 = vmatpush2.msra.mxu0 0.0
      %556 = vmatprep.subr.mxu0 0.0
      %557 = vmatpush2.msra.mxu0 0.0
      %558 = vmatprep.subr.mxu0 0.0
      %559 = vmatpush2.msra.mxu0 0.0
      %560 = vmatprep.subr.mxu0 0.0
      %561 = vmatpush2.msra.mxu0 0.0
      %562 = vmatprep.subr.mxu0 0.0
      %563 = vmatpush2.msra.mxu0 0.0
      %564 = vmatprep.subr.mxu0 0.0
      %565 = vmatpush2.msra.mxu0 0.0
      %566 = vmatprep.subr.mxu0 0.0
      %567 = vmatpush2.msra.mxu0 0.0
      %568 = vmatprep.subr.mxu0 0.0
      %569 = vmatpush2.msra.mxu0 0.0
      %570 = vmatprep.subr.mxu0 0.0
      %571 = vmatpush2.msra.mxu0 0.0
      %572 = vmatprep.subr.mxu0 0.0
      %573 = vmatpush2.msra.mxu0 0.0
      %574 = vmatprep.subr.mxu0 0.0
      %575 = vmatpush2.msra.mxu0 0.0
      %576 = vmatprep.subr.mxu0 0.0
      %577 = vmatpush2.msra.mxu0 0.0
      %578 = vmatprep.mubr.f32.mxu0 0.0
      %579 = vmatmul.mubr.f32.gmra.mxu0 %v434
      %v580 = vpop.f32.mrf.mxu0
      %v581 = vadd.f32 0.0, %v580
      %v582 = vpop.f32.mrf.mxu0
      %583 = vmatprep.mubr.f32.mxu0 0.0
      %584 = vmatmul.mubr.f32.gmra.mxu0 %v437
      %v585 = vpop.f32.mrf.mxu0
      %v586 = vadd.f32 0.0, %v585
      %v587 = vpop.f32.mrf.mxu0
      %588 = vdwg.mxu0
      %589 = vmatprep.subr.mxu0 0.0
      %590 = vmatpush1.msra.mxu0 0.0
      %591 = vmatprep.subr.mxu0 0.0
      %592 = vmatpush1.msra.mxu0 0.0
      %593 = vmatprep.subr.mxu0 0.0
      %594 = vmatpush1.msra.mxu0 0.0
      %595 = vmatprep.subr.mxu0 0.0
      %596 = vmatpush1.msra.mxu0 0.0
      %597 = vmatprep.subr.mxu0 0.0
      %598 = vmatpush1.msra.mxu0 0.0
      %599 = vmatprep.subr.mxu0 0.0
      %600 = vmatpush1.msra.mxu0 0.0
      %601 = vmatprep.subr.mxu0 0.0
      %602 = vmatpush1.msra.mxu0 0.0
      %603 = vmatprep.subr.mxu0 0.0
      %604 = vmatpush1.msra.mxu0 0.0
      %605 = vmatprep.subr.mxu0 0.0
      %606 = vmatpush1.msra.mxu0 0.0
      %607 = vmatprep.subr.mxu0 0.0
      %608 = vmatpush1.msra.mxu0 0.0
      %609 = vmatprep.subr.mxu0 0.0
      %610 = vmatpush1.msra.mxu0 0.0
      %611 = vmatprep.subr.mxu0 0.0
      %612 = vmatpush1.msra.mxu0 0.0
      %613 = vmatprep.subr.mxu0 0.0
      %614 = vmatpush1.msra.mxu0 0.0
      %615 = vmatprep.subr.mxu0 0.0
      %616 = vmatpush1.msra.mxu0 0.0
      %617 = vmatprep.subr.mxu0 0.0
      %618 = vmatpush1.msra.mxu0 0.0
      %619 = vmatprep.subr.mxu0 0.0
      %620 = vmatpush1.msra.mxu0 %v395
      %621 = vmatprep.subr.mxu0 0.0
      %622 = vmatpush2.msra.mxu0 0.0
      %623 = vmatprep.subr.mxu0 0.0
      %624 = vmatpush2.msra.mxu0 0.0
      %625 = vmatprep.subr.mxu0 0.0
      %626 = vmatpush2.msra.mxu0 0.0
      %627 = vmatprep.subr.mxu0 0.0
      %628 = vmatpush2.msra.mxu0 0.0
      %629 = vmatprep.subr.mxu0 0.0
      %630 = vmatpush2.msra.mxu0 0.0
      %631 = vmatprep.subr.mxu0 0.0
      %632 = vmatpush2.msra.mxu0 0.0
      %633 = vmatprep.subr.mxu0 0.0
      %634 = vmatpush2.msra.mxu0 0.0
      %635 = vmatprep.subr.mxu0 0.0
      %636 = vmatpush2.msra.mxu0 0.0
      %637 = vmatprep.subr.mxu0 0.0
      %638 = vmatpush2.msra.mxu0 0.0
      %639 = vmatprep.subr.mxu0 0.0
      %640 = vmatpush2.msra.mxu0 0.0
      %641 = vmatprep.subr.mxu0 0.0
      %642 = vmatpush2.msra.mxu0 0.0
      %643 = vmatprep.subr.mxu0 0.0
      %644 = vmatpush2.msra.mxu0 0.0
      %645 = vmatprep.subr.mxu0 0.0
      %646 = vmatpush2.msra.mxu0 0.0
      %647 = vmatprep.subr.mxu0 0.0
      %648 = vmatpush2.msra.mxu0 0.0
      %649 = vmatprep.subr.mxu0 0.0
      %650 = vmatpush2.msra.mxu0 0.0
      %651 = vmatprep.subr.mxu0 0.0
      %652 = vmatpush2.msra.mxu0 0.0
      %653 = vmatprep.mubr.f32.mxu0 0.0
      %654 = vmatmul.mubr.f32.gmra.mxu0 %v434
      %v655 = vpop.f32.mrf.mxu0
      %v656 = vadd.f32 0.0, %v655
      %v657 = vpop.f32.mrf.mxu0
      %658 = vmatprep.mubr.f32.mxu0 0.0
      %659 = vmatmul.mubr.f32.gmra.mxu0 %v437
      %v660 = vpop.f32.mrf.mxu0
      %v661 = vadd.f32 0.0, %v660
      %v662 = vpop.f32.mrf.mxu0
      %663 = vdwg.mxu0
      %664 = vmatprep.subr.mxu0 0.0
      %665 = vmatpush1.msra.mxu0 0.0
      %666 = vmatprep.subr.mxu0 0.0
      %667 = vmatpush1.msra.mxu0 0.0
      %668 = vmatprep.subr.mxu0 0.0
      %669 = vmatpush1.msra.mxu0 0.0
      %670 = vmatprep.subr.mxu0 0.0
      %671 = vmatpush1.msra.mxu0 0.0
      %672 = vmatprep.subr.mxu0 0.0
      %673 = vmatpush1.msra.mxu0 0.0
      %674 = vmatprep.subr.mxu0 0.0
      %675 = vmatpush1.msra.mxu0 0.0
      %676 = vmatprep.subr.mxu0 0.0
      %677 = vmatpush1.msra.mxu0 0.0
      %678 = vmatprep.subr.mxu0 0.0
      %679 = vmatpush1.msra.mxu0 0.0
      %680 = vmatprep.subr.mxu0 0.0
      %681 = vmatpush1.msra.mxu0 0.0
      %682 = vmatprep.subr.mxu0 0.0
      %683 = vmatpush1.msra.mxu0 0.0
      %684 = vmatprep.subr.mxu0 0.0
      %685 = vmatpush1.msra.mxu0 0.0
      %686 = vmatprep.subr.mxu0 0.0
      %687 = vmatpush1.msra.mxu0 0.0
      %688 = vmatprep.subr.mxu0 0.0
      %689 = vmatpush1.msra.mxu0 0.0
      %690 = vmatprep.subr.mxu0 0.0
      %691 = vmatpush1.msra.mxu0 0.0
      %692 = vmatprep.subr.mxu0 0.0
      %693 = vmatpush1.msra.mxu0 0.0
      %694 = vmatprep.subr.mxu0 0.0
      %695 = vmatpush1.msra.mxu0 %v396
      %696 = vmatprep.subr.mxu0 0.0
      %697 = vmatpush2.msra.mxu0 0.0
      %698 = vmatprep.subr.mxu0 0.0
      %699 = vmatpush2.msra.mxu0 0.0
      %700 = vmatprep.subr.mxu0 0.0
      %701 = vmatpush2.msra.mxu0 0.0
      %702 = vmatprep.subr.mxu0 0.0
      %703 = vmatpush2.msra.mxu0 0.0
      %704 = vmatprep.subr.mxu0 0.0
      %705 = vmatpush2.msra.mxu0 0.0
      %706 = vmatprep.subr.mxu0 0.0
      %707 = vmatpush2.msra.mxu0 0.0
      %708 = vmatprep.subr.mxu0 0.0
      %709 = vmatpush2.msra.mxu0 0.0
      %710 = vmatprep.subr.mxu0 0.0
      %711 = vmatpush2.msra.mxu0 0.0
      %712 = vmatprep.subr.mxu0 0.0
      %713 = vmatpush2.msra.mxu0 0.0
      %714 = vmatprep.subr.mxu0 0.0
      %715 = vmatpush2.msra.mxu0 0.0
      %716 = vmatprep.subr.mxu0 0.0
      %717 = vmatpush2.msra.mxu0 0.0
      %718 = vmatprep.subr.mxu0 0.0
      %719 = vmatpush2.msra.mxu0 0.0
      %720 = vmatprep.subr.mxu0 0.0
      %721 = vmatpush2.msra.mxu0 0.0
      %722 = vmatprep.subr.mxu0 0.0
      %723 = vmatpush2.msra.mxu0 0.0
      %724 = vmatprep.subr.mxu0 0.0
      %725 = vmatpush2.msra.mxu0 0.0
      %726 = vmatprep.subr.mxu0 0.0
      %727 = vmatpush2.msra.mxu0 0.0
      %728 = vmatprep.mubr.f32.mxu0 0.0
      %729 = vmatmul.mubr.f32.gmra.mxu0 %v434
      %v730 = vpop.f32.mrf.mxu0
      %v731 = vadd.f32 0.0, %v730
      %v732 = vpop.f32.mrf.mxu0
      %733 = vmatprep.mubr.f32.mxu0 0.0
      %734 = vmatmul.mubr.f32.gmra.mxu0 %v437
      %v735 = vpop.f32.mrf.mxu0
      %v736 = vadd.f32 0.0, %v735
      %v737 = vpop.f32.mrf.mxu0
      %738 = vdwg.mxu0
      %739 = vmatprep.subr.mxu0 0.0
      %740 = vmatpush1.msra.mxu0 0.0
      %741 = vmatprep.subr.mxu0 0.0
      %742 = vmatpush1.msra.mxu0 0.0
      %743 = vmatprep.subr.mxu0 0.0
      %744 = vmatpush1.msra.mxu0 0.0
      %745 = vmatprep.subr.mxu0 0.0
      %746 = vmatpush1.msra.mxu0 0.0
      %747 = vmatprep.subr.mxu0 0.0
      %748 = vmatpush1.msra.mxu0 0.0
      %749 = vmatprep.subr.mxu0 0.0
      %750 = vmatpush1.msra.mxu0 0.0
      %751 = vmatprep.subr.mxu0 0.0
      %752 = vmatpush1.msra.mxu0 0.0
      %753 = vmatprep.subr.mxu0 0.0
      %754 = vmatpush1.msra.mxu0 0.0
      %755 = vmatprep.subr.mxu0 0.0
      %756 = vmatpush1.msra.mxu0 0.0
      %757 = vmatprep.subr.mxu0 0.0
      %758 = vmatpush1.msra.mxu0 0.0
      %759 = vmatprep.subr.mxu0 0.0
      %760 = vmatpush1.msra.mxu0 0.0
      %761 = vmatprep.subr.mxu0 0.0
      %762 = vmatpush1.msra.mxu0 0.0
      %763 = vmatprep.subr.mxu0 0.0
      %764 = vmatpush1.msra.mxu0 0.0
      %765 = vmatprep.subr.mxu0 0.0
      %766 = vmatpush1.msra.mxu0 0.0
      %767 = vmatprep.subr.mxu0 0.0
      %768 = vmatpush1.msra.mxu0 0.0
      %769 = vmatprep.subr.mxu0 0.0
      %770 = vmatpush1.msra.mxu0 %v397
      %771 = vmatprep.subr.mxu0 0.0
      %772 = vmatpush2.msra.mxu0 0.0
      %773 = vmatprep.subr.mxu0 0.0
      %774 = vmatpush2.msra.mxu0 0.0
      %775 = vmatprep.subr.mxu0 0.0
      %776 = vmatpush2.msra.mxu0 0.0
      %777 = vmatprep.subr.mxu0 0.0
      %778 = vmatpush2.msra.mxu0 0.0
      %779 = vmatprep.subr.mxu0 0.0
      %780 = vmatpush2.msra.mxu0 0.0
      %781 = vmatprep.subr.mxu0 0.0
      %782 = vmatpush2.msra.mxu0 0.0
      %783 = vmatprep.subr.mxu0 0.0
      %784 = vmatpush2.msra.mxu0 0.0
      %785 = vmatprep.subr.mxu0 0.0
      %786 = vmatpush2.msra.mxu0 0.0
      %787 = vmatprep.subr.mxu0 0.0
      %788 = vmatpush2.msra.mxu0 0.0
      %789 = vmatprep.subr.mxu0 0.0
      %790 = vmatpush2.msra.mxu0 0.0
      %791 = vmatprep.subr.mxu0 0.0
      %792 = vmatpush2.msra.mxu0 0.0
      %793 = vmatprep.subr.mxu0 0.0
      %794 = vmatpush2.msra.mxu0 0.0
      %795 = vmatprep.subr.mxu0 0.0
      %796 = vmatpush2.msra.mxu0 0.0
      %797 = vmatprep.subr.mxu0 0.0
      %798 = vmatpush2.msra.mxu0 0.0
      %799 = vmatprep.subr.mxu0 0.0
      %800 = vmatpush2.msra.mxu0 0.0
      %801 = vmatprep.subr.mxu0 0.0
      %802 = vmatpush2.msra.mxu0 0.0
      %803 = vmatprep.mubr.f32.mxu0 0.0
      %804 = vmatmul.mubr.f32.gmra.mxu0 %v434
      %v805 = vpop.f32.mrf.mxu0
      %v806 = vadd.f32 0.0, %v805
      %v807 = vpop.f32.mrf.mxu0
      %808 = vmatprep.mubr.f32.mxu0 0.0
      %809 = vmatmul.mubr.f32.gmra.mxu0 %v437
      %v810 = vpop.f32.mrf.mxu0
      %v811 = vadd.f32 0.0, %v810
      %v812 = vpop.f32.mrf.mxu0
      %813 = vdwg.mxu0
      %814 = vmatprep.subr.mxu0 0.0
      %815 = vmatpush1.msra.mxu0 0.0
      %816 = vmatprep.subr.mxu0 0.0
      %817 = vmatpush1.msra.mxu0 0.0
      %818 = vmatprep.subr.mxu0 0.0
      %819 = vmatpush1.msra.mxu0 0.0
      %820 = vmatprep.subr.mxu0 0.0
      %821 = vmatpush1.msra.mxu0 0.0
      %822 = vmatprep.subr.mxu0 0.0
      %823 = vmatpush1.msra.mxu0 0.0
      %824 = vmatprep.subr.mxu0 0.0
      %825 = vmatpush1.msra.mxu0 0.0
      %826 = vmatprep.subr.mxu0 0.0
      %827 = vmatpush1.msra.mxu0 0.0
      %828 = vmatprep.subr.mxu0 0.0
      %829 = vmatpush1.msra.mxu0 0.0
      %830 = vmatprep.subr.mxu0 0.0
      %831 = vmatpush1.msra.mxu0 0.0
      %832 = vmatprep.subr.mxu0 0.0
      %833 = vmatpush1.msra.mxu0 0.0
      %834 = vmatprep.subr.mxu0 0.0
      %835 = vmatpush1.msra.mxu0 0.0
      %836 = vmatprep.subr.mxu0 0.0
      %837 = vmatpush1.msra.mxu0 0.0
      %838 = vmatprep.subr.mxu0 0.0
      %839 = vmatpush1.msra.mxu0 0.0
      %840 = vmatprep.subr.mxu0 0.0
      %841 = vmatpush1.msra.mxu0 0.0
      %842 = vmatprep.subr.mxu0 0.0
      %843 = vmatpush1.msra.mxu0 0.0
      %844 = vmatprep.subr.mxu0 0.0
      %845 = vmatpush1.msra.mxu0 %v398
      %846 = vmatprep.subr.mxu0 0.0
      %847 = vmatpush2.msra.mxu0 0.0
      %848 = vmatprep.subr.mxu0 0.0
      %849 = vmatpush2.msra.mxu0 0.0
      %850 = vmatprep.subr.mxu0 0.0
      %851 = vmatpush2.msra.mxu0 0.0
      %852 = vmatprep.subr.mxu0 0.0
      %853 = vmatpush2.msra.mxu0 0.0
      %854 = vmatprep.subr.mxu0 0.0
      %855 = vmatpush2.msra.mxu0 0.0
      %856 = vmatprep.subr.mxu0 0.0
      %857 = vmatpush2.msra.mxu0 0.0
      %858 = vmatprep.subr.mxu0 0.0
      %859 = vmatpush2.msra.mxu0 0.0
      %860 = vmatprep.subr.mxu0 0.0
      %861 = vmatpush2.msra.mxu0 0.0
      %862 = vmatprep.subr.mxu0 0.0
      %863 = vmatpush2.msra.mxu0 0.0
      %864 = vmatprep.subr.mxu0 0.0
      %865 = vmatpush2.msra.mxu0 0.0
      %866 = vmatprep.subr.mxu0 0.0
      %867 = vmatpush2.msra.mxu0 0.0
      %868 = vmatprep.subr.mxu0 0.0
      %869 = vmatpush2.msra.mxu0 0.0
      %870 = vmatprep.subr.mxu0 0.0
      %871 = vmatpush2.msra.mxu0 0.0
      %872 = vmatprep.subr.mxu0 0.0
      %873 = vmatpush2.msra.mxu0 0.0
      %874 = vmatprep.subr.mxu0 0.0
      %875 = vmatpush2.msra.mxu0 0.0
      %876 = vmatprep.subr.mxu0 0.0
      %877 = vmatpush2.msra.mxu0 0.0
      %878 = vmatprep.mubr.f32.mxu0 0.0
      %879 = vmatmul.mubr.f32.gmra.mxu0 %v434
      %v880 = vpop.f32.mrf.mxu0
      %v881 = vadd.f32 0.0, %v880
      %v882 = vpop.f32.mrf.mxu0
      %883 = vmatprep.mubr.f32.mxu0 0.0
      %884 = vmatmul.mubr.f32.gmra.mxu0 %v437
      %v885 = vpop.f32.mrf.mxu0
      %v886 = vadd.f32 0.0, %v885
      %v887 = vpop.f32.mrf.mxu0
      %888 = vdwg.mxu0
      %889 = vmatprep.subr.mxu0 0.0
      %890 = vmatpush1.msra.mxu0 0.0
      %891 = vmatprep.subr.mxu0 0.0
      %892 = vmatpush1.msra.mxu0 0.0
      %893 = vmatprep.subr.mxu0 0.0
      %894 = vmatpush1.msra.mxu0 0.0
      %895 = vmatprep.subr.mxu0 0.0
      %896 = vmatpush1.msra.mxu0 0.0
      %897 = vmatprep.subr.mxu0 0.0
      %898 = vmatpush1.msra.mxu0 0.0
      %899 = vmatprep.subr.mxu0 0.0
      %900 = vmatpush1.msra.mxu0 0.0
      %901 = vmatprep.subr.mxu0 0.0
      %902 = vmatpush1.msra.mxu0 0.0
      %903 = vmatprep.subr.mxu0 0.0
      %904 = vmatpush1.msra.mxu0 0.0
      %905 = vmatprep.subr.mxu0 0.0
      %906 = vmatpush1.msra.mxu0 0.0
      %907 = vmatprep.subr.mxu0 0.0
      %908 = vmatpush1.msra.mxu0 0.0
      %909 = vmatprep.subr.mxu0 0.0
      %910 = vmatpush1.msra.mxu0 0.0
      %911 = vmatprep.subr.mxu0 0.0
      %912 = vmatpush1.msra.mxu0 0.0
      %913 = vmatprep.subr.mxu0 0.0
      %914 = vmatpush1.msra.mxu0 0.0
      %915 = vmatprep.subr.mxu0 0.0
      %916 = vmatpush1.msra.mxu0 0.0
      %917 = vmatprep.subr.mxu0 0.0
      %918 = vmatpush1.msra.mxu0 0.0
      %919 = vmatprep.subr.mxu0 0.0
      %920 = vmatpush1.msra.mxu0 %v399
      %921 = vmatprep.subr.mxu0 0.0
      %922 = vmatpush2.msra.mxu0 0.0
      %923 = vmatprep.subr.mxu0 0.0
      %924 = vmatpush2.msra.mxu0 0.0
      %925 = vmatprep.subr.mxu0 0.0
      %926 = vmatpush2.msra.mxu0 0.0
      %927 = vmatprep.subr.mxu0 0.0
      %928 = vmatpush2.msra.mxu0 0.0
      %929 = vmatprep.subr.mxu0 0.0
      %930 = vmatpush2.msra.mxu0 0.0
      %931 = vmatprep.subr.mxu0 0.0
      %932 = vmatpush2.msra.mxu0 0.0
      %933 = vmatprep.subr.mxu0 0.0
      %934 = vmatpush2.msra.mxu0 0.0
      %935 = vmatprep.subr.mxu0 0.0
      %936 = vmatpush2.msra.mxu0 0.0
      %937 = vmatprep.subr.mxu0 0.0
      %938 = vmatpush2.msra.mxu0 0.0
      %939 = vmatprep.subr.mxu0 0.0
      %940 = vmatpush2.msra.mxu0 0.0
      %941 = vmatprep.subr.mxu0 0.0
      %942 = vmatpush2.msra.mxu0 0.0
      %943 = vmatprep.subr.mxu0 0.0
      %944 = vmatpush2.msra.mxu0 0.0
      %945 = vmatprep.subr.mxu0 0.0
      %946 = vmatpush2.msra.mxu0 0.0
      %947 = vmatprep.subr.mxu0 0.0
      %948 = vmatpush2.msra.mxu0 0.0
      %949 = vmatprep.subr.mxu0 0.0
      %950 = vmatpush2.msra.mxu0 0.0
      %951 = vmatprep.subr.mxu0 0.0
      %952 = vmatpush2.msra.mxu0 0.0
      %953 = vmatprep.mubr.f32.mxu0 0.0
      %954 = vmatmul.mubr.f32.gmra.mxu0 %v434
      %v955 = vpop.f32.mrf.mxu0
      %v956 = vadd.f32 0.0, %v955
      %v957 = vpop.f32.mrf.mxu0
      %958 = vmatprep.mubr.f32.mxu0 0.0
      %959 = vmatmul.mubr.f32.gmra.mxu0 %v437
      %v960 = vpop.f32.mrf.mxu0
      %v961 = vadd.f32 0.0, %v960
      %v962 = vpop.f32.mrf.mxu0
      %963 = vdwg.mxu0
      %964 = vmatprep.subr.mxu0 0.0
      %965 = vmatpush1.msra.mxu0 0.0
      %966 = vmatprep.subr.mxu0 0.0
      %967 = vmatpush1.msra.mxu0 0.0
      %968 = vmatprep.subr.mxu0 0.0
      %969 = vmatpush1.msra.mxu0 0.0
      %970 = vmatprep.subr.mxu0 0.0
      %971 = vmatpush1.msra.mxu0 0.0
      %972 = vmatprep.subr.mxu0 0.0
      %973 = vmatpush1.msra.mxu0 0.0
      %974 = vmatprep.subr.mxu0 0.0
      %975 = vmatpush1.msra.mxu0 0.0
      %976 = vmatprep.subr.mxu0 0.0
      %977 = vmatpush1.msra.mxu0 0.0
      %978 = vmatprep.subr.mxu0 0.0
      %979 = vmatpush1.msra.mxu0 0.0
      %980 = vmatprep.subr.mxu0 0.0
      %981 = vmatpush1.msra.mxu0 0.0
      %982 = vmatprep.subr.mxu0 0.0
      %983 = vmatpush1.msra.mxu0 0.0
      %984 = vmatprep.subr.mxu0 0.0
      %985 = vmatpush1.msra.mxu0 0.0
      %986 = vmatprep.subr.mxu0 0.0
      %987 = vmatpush1.msra.mxu0 0.0
      %988 = vmatprep.subr.mxu0 0.0
      %989 = vmatpush1.msra.mxu0 0.0
      %990 = vmatprep.subr.mxu0 0.0
      %991 = vmatpush1.msra.mxu0 0.0
      %992 = vmatprep.subr.mxu0 0.0
      %993 = vmatpush1.msra.mxu0 0.0
      %994 = vmatprep.subr.mxu0 0.0
      %995 = vmatpush1.msra.mxu0 %v400
      %996 = vmatprep.subr.mxu0 0.0
      %997 = vmatpush2.msra.mxu0 0.0
      %998 = vmatprep.subr.mxu0 0.0
      %999 = vmatpush2.msra.mxu0 0.0
      %1000 = vmatprep.subr.mxu0 0.0
      %1001 = vmatpush2.msra.mxu0 0.0
      %1002 = vmatprep.subr.mxu0 0.0
      %1003 = vmatpush2.msra.mxu0 0.0
      %1004 = vmatprep.subr.mxu0 0.0
      %1005 = vmatpush2.msra.mxu0 0.0
      %1006 = vmatprep.subr.mxu0 0.0
      %1007 = vmatpush2.msra.mxu0 0.0
      %1008 = vmatprep.subr.mxu0 0.0
      %1009 = vmatpush2.msra.mxu0 0.0
      %1010 = vmatprep.subr.mxu0 0.0
      %1011 = vmatpush2.msra.mxu0 0.0
      %1012 = vmatprep.subr.mxu0 0.0
      %1013 = vmatpush2.msra.mxu0 0.0
      %1014 = vmatprep.subr.mxu0 0.0
      %1015 = vmatpush2.msra.mxu0 0.0
      %1016 = vmatprep.subr.mxu0 0.0
      %1017 = vmatpush2.msra.mxu0 0.0
      %1018 = vmatprep.subr.mxu0 0.0
      %1019 = vmatpush2.msra.mxu0 0.0
      %1020 = vmatprep.subr.mxu0 0.0
      %1021 = vmatpush2.msra.mxu0 0.0
      %1022 = vmatprep.subr.mxu0 0.0
      %1023 = vmatpush2.msra.mxu0 0.0
      %1024 = vmatprep.subr.mxu0 0.0
      %1025 = vmatpush2.msra.mxu0 0.0
      %1026 = vmatprep.subr.mxu0 0.0
      %1027 = vmatpush2.msra.mxu0 0.0
      %1028 = vmatprep.mubr.f32.mxu0 0.0
      %1029 = vmatmul.mubr.f32.gmra.mxu0 %v434
      %v1030 = vpop.f32.mrf.mxu0
      %v1031 = vadd.f32 0.0, %v1030
      %v1032 = vpop.f32.mrf.mxu0
      %1033 = vmatprep.mubr.f32.mxu0 0.0
      %1034 = vmatmul.mubr.f32.gmra.mxu0 %v437
      %v1035 = vpop.f32.mrf.mxu0
      %v1036 = vadd.f32 0.0, %v1035
      %v1037 = vpop.f32.mrf.mxu0
      %1038 = vdwg.mxu0
      %1041 = vrot.lane.b32.xlu0 %v506, 8
      %v1042 = vpop.permute.xlu0 %1041
      %1043 = vrot.lane.b32.xlu0 %v511, 8
      %v1044 = vpop.permute.xlu0 %1043
      %v1047 = vsel %vm345, %v401, %v1042
      %v1048 = vsel %vm345, %v402, %v1044
      %s1049 = scalar_lea.vmem [#allocation2], 24
      %1050 = vst.msk [vmem:[%s1049 + $0x1] sm:$0xff] %vm299, %v1047
      %1051 = vst.msk [vmem:[%s1049 + $0x9] sm:$0xff] %vm299, %v1048
      %v1052 = vmul.f32 %v506, 0.53333336
      %v1053 = vmul.f32 %v511, 0.53333336
      %v1054 = vmul.f32 %v581, 0.46666667
      %v1055 = vmul.f32 %v586, 0.46666667
      %v1056 = vadd.f32 %v1052, %v1054
      %v1057 = vadd.f32 %v1053, %v1055
      %1060 = vrot.lane.b32.xlu0 %v1056, 8
      %v1061 = vpop.permute.xlu0 %1060
      %1062 = vrot.lane.b32.xlu0 %v1057, 8
      %v1063 = vpop.permute.xlu0 %1062
      %v1066 = vsel %vm345, %v403, %v1061
      %v1067 = vsel %vm345, %v404, %v1063
      %s1068 = scalar_lea.vmem [#allocation2], 48
      %1069 = vst.msk [vmem:[%s1068 + $0x1] sm:$0xff] %vm299, %v1066
      %1070 = vst.msk [vmem:[%s1068 + $0x9] sm:$0xff] %vm299, %v1067
      %v1071 = vmul.f32 %v506, 0.06666667
      %v1072 = vmul.f32 %v511, 0.06666667
      %v1073 = vmul.f32 %v581, 0.93333334
      %v1074 = vmul.f32 %v586, 0.93333334
      %v1075 = vadd.f32 %v1071, %v1073
      %v1076 = vadd.f32 %v1072, %v1074
      %1079 = vrot.lane.b32.xlu0 %v1075, 8
      %v1080 = vpop.permute.xlu0 %1079
      %1081 = vrot.lane.b32.xlu0 %v1076, 8
      %v1082 = vpop.permute.xlu0 %1081
      %v1085 = vsel %vm345, %v405, %v1080
      %v1086 = vsel %vm345, %v406, %v1082
      %s1087 = scalar_lea.vmem [#allocation2], 72
      %1088 = vst.msk [vmem:[%s1087 + $0x1] sm:$0xff] %vm299, %v1085
      %1089 = vst.msk [vmem:[%s1087 + $0x9] sm:$0xff] %vm299, %v1086
      %v1090 = vmul.f32 %v581, 0.6
      %v1091 = vmul.f32 %v586, 0.6
      %v1092 = vmul.f32 %v656, 0.4
      %v1093 = vmul.f32 %v661, 0.4
      %v1094 = vadd.f32 %v1090, %v1092
      %v1095 = vadd.f32 %v1091, %v1093
      %1098 = vrot.lane.b32.xlu0 %v1094, 8
      %v1099 = vpop.permute.xlu0 %1098
      %1100 = vrot.lane.b32.xlu0 %v1095, 8
      %v1101 = vpop.permute.xlu0 %1100
      %v1104 = vsel %vm345, %v407, %v1099
      %v1105 = vsel %vm345, %v408, %v1101
      %s1106 = scalar_lea.vmem [#allocation2], 96
      %1107 = vst.msk [vmem:[%s1106 + $0x1] sm:$0xff] %vm299, %v1104
      %1108 = vst.msk [vmem:[%s1106 + $0x9] sm:$0xff] %vm299, %v1105
      %v1109 = vmul.f32 %v581, 0.13333334
      %v1110 = vmul.f32 %v586, 0.13333334
      %v1111 = vmul.f32 %v656, 0.8666667
      %v1112 = vmul.f32 %v661, 0.8666667
      %v1113 = vadd.f32 %v1109, %v1111
      %v1114 = vadd.f32 %v1110, %v1112
      %1117 = vrot.lane.b32.xlu0 %v1113, 8
      %v1118 = vpop.permute.xlu0 %1117
      %1119 = vrot.lane.b32.xlu0 %v1114, 8
      %v1120 = vpop.permute.xlu0 %1119
      %v1123 = vsel %vm345, %v409, %v1118
      %v1124 = vsel %vm345, %v410, %v1120
      %s1125 = scalar_lea.vmem [#allocation2], 120
      %1126 = vst.msk [vmem:[%s1125 + $0x1] sm:$0xff] %vm299, %v1123
      %1127 = vst.msk [vmem:[%s1125 + $0x9] sm:$0xff] %vm299, %v1124
      %v1128 = vmul.f32 %v656, 0.6666667
      %v1129 = vmul.f32 %v661, 0.6666667
      %v1130 = vmul.f32 %v731, 0.33333334
      %v1131 = vmul.f32 %v736, 0.33333334
      %v1132 = vadd.f32 %v1128, %v1130
      %v1133 = vadd.f32 %v1129, %v1131
      %1136 = vrot.lane.b32.xlu0 %v1132, 8
      %v1137 = vpop.permute.xlu0 %1136
      %1138 = vrot.lane.b32.xlu0 %v1133, 8
      %v1139 = vpop.permute.xlu0 %1138
      %v1142 = vsel %vm345, %v411, %v1137
      %v1143 = vsel %vm345, %v412, %v1139
      %s1144 = scalar_lea.vmem [#allocation2], 144
      %1145 = vst.msk [vmem:[%s1144 + $0x1] sm:$0xff] %vm299, %v1142
      %1146 = vst.msk [vmem:[%s1144 + $0x9] sm:$0xff] %vm299, %v1143
      %v1147 = vmul.f32 %v656, 0.2
      %v1148 = vmul.f32 %v661, 0.2
      %v1149 = vmul.f32 %v731, 0.8
      %v1150 = vmul.f32 %v736, 0.8
      %v1151 = vadd.f32 %v1147, %v1149
      %v1152 = vadd.f32 %v1148, %v1150
      %1155 = vrot.lane.b32.xlu0 %v1151, 8
      %v1156 = vpop.permute.xlu0 %1155
      %1157 = vrot.lane.b32.xlu0 %v1152, 8
      %v1158 = vpop.permute.xlu0 %1157
      %v1161 = vsel %vm345, %v413, %v1156
      %v1162 = vsel %vm345, %v414, %v1158
      %s1163 = scalar_lea.vmem [#allocation2], 168
      %1164 = vst.msk [vmem:[%s1163 + $0x1] sm:$0xff] %vm299, %v1161
      %1165 = vst.msk [vmem:[%s1163 + $0x9] sm:$0xff] %vm299, %v1162
      %v1166 = vmul.f32 %v731, 0.73333335
      %v1167 = vmul.f32 %v736, 0.73333335
      %v1168 = vmul.f32 %v806, 0.26666668
      %v1169 = vmul.f32 %v811, 0.26666668
      %v1170 = vadd.f32 %v1166, %v1168
      %v1171 = vadd.f32 %v1167, %v1169
      %1174 = vrot.lane.b32.xlu0 %v1170, 8
      %v1175 = vpop.permute.xlu0 %1174
      %1176 = vrot.lane.b32.xlu0 %v1171, 8
      %v1177 = vpop.permute.xlu0 %1176
      %v1180 = vsel %vm345, %v415, %v1175
      %v1181 = vsel %vm345, %v416, %v1177
      %s1182 = scalar_lea.vmem [#allocation2], 192
      %1183 = vst.msk [vmem:[%s1182 + $0x1] sm:$0xff] %vm299, %v1180
      %1184 = vst.msk [vmem:[%s1182 + $0x9] sm:$0xff] %vm299, %v1181
      %v1185 = vmul.f32 %v731, 0.26666668
      %v1186 = vmul.f32 %v736, 0.26666668
      %v1187 = vmul.f32 %v806, 0.73333335
      %v1188 = vmul.f32 %v811, 0.73333335
      %v1189 = vadd.f32 %v1185, %v1187
      %v1190 = vadd.f32 %v1186, %v1188
      %1193 = vrot.lane.b32.xlu0 %v1189, 8
      %v1194 = vpop.permute.xlu0 %1193
      %1195 = vrot.lane.b32.xlu0 %v1190, 8
      %v1196 = vpop.permute.xlu0 %1195
      %v1199 = vsel %vm345, %v417, %v1194
      %v1200 = vsel %vm345, %v418, %v1196
      %s1201 = scalar_lea.vmem [#allocation2], 216
      %1202 = vst.msk [vmem:[%s1201 + $0x1] sm:$0xff] %vm299, %v1199
      %1203 = vst.msk [vmem:[%s1201 + $0x9] sm:$0xff] %vm299, %v1200
      %v1204 = vmul.f32 %v806, 0.8
      %v1205 = vmul.f32 %v811, 0.8
      %v1206 = vmul.f32 %v881, 0.2
      %v1207 = vmul.f32 %v886, 0.2
      %v1208 = vadd.f32 %v1204, %v1206
      %v1209 = vadd.f32 %v1205, %v1207
      %1212 = vrot.lane.b32.xlu0 %v1208, 8
      %v1213 = vpop.permute.xlu0 %1212
      %1214 = vrot.lane.b32.xlu0 %v1209, 8
      %v1215 = vpop.permute.xlu0 %1214
      %v1218 = vsel %vm345, %v419, %v1213
      %v1219 = vsel %vm345, %v420, %v1215
      %s1220 = scalar_lea.vmem [#allocation2], 240
      %1221 = vst.msk [vmem:[%s1220 + $0x1] sm:$0xff] %vm299, %v1218
      %1222 = vst.msk [vmem:[%s1220 + $0x9] sm:$0xff] %vm299, %v1219
      %v1223 = vmul.f32 %v806, 0.33333334
      %v1224 = vmul.f32 %v811, 0.33333334
      %v1225 = vmul.f32 %v881, 0.6666667
      %v1226 = vmul.f32 %v886, 0.6666667
      %v1227 = vadd.f32 %v1223, %v1225
      %v1228 = vadd.f32 %v1224, %v1226
      %1231 = vrot.lane.b32.xlu0 %v1227, 8
      %v1232 = vpop.permute.xlu0 %1231
      %1233 = vrot.lane.b32.xlu0 %v1228, 8
      %v1234 = vpop.permute.xlu0 %1233
      %v1237 = vsel %vm345, %v421, %v1232
      %v1238 = vsel %vm345, %v422, %v1234
      %s1239 = scalar_lea.vmem [#allocation2], 264
      %1240 = vst.msk [vmem:[%s1239 + $0x1] sm:$0xff] %vm299, %v1237
      %1241 = vst.msk [vmem:[%s1239 + $0x9] sm:$0xff] %vm299, %v1238
      %v1242 = vmul.f32 %v881, 0.8666667
      %v1243 = vmul.f32 %v886, 0.8666667
      %v1244 = vmul.f32 %v956, 0.13333334
      %v1245 = vmul.f32 %v961, 0.13333334
      %v1246 = vadd.f32 %v1242, %v1244
      %v1247 = vadd.f32 %v1243, %v1245
      %1250 = vrot.lane.b32.xlu0 %v1246, 8
      %v1251 = vpop.permute.xlu0 %1250
      %1252 = vrot.lane.b32.xlu0 %v1247, 8
      %v1253 = vpop.permute.xlu0 %1252
      %v1256 = vsel %vm345, %v423, %v1251
      %v1257 = vsel %vm345, %v424, %v1253
      %s1258 = scalar_lea.vmem [#allocation2], 288
      %1259 = vst.msk [vmem:[%s1258 + $0x1] sm:$0xff] %vm299, %v1256
      %1260 = vst.msk [vmem:[%s1258 + $0x9] sm:$0xff] %vm299, %v1257
      %v1261 = vmul.f32 %v881, 0.4
      %v1262 = vmul.f32 %v886, 0.4
      %v1263 = vmul.f32 %v956, 0.6
      %v1264 = vmul.f32 %v961, 0.6
      %v1265 = vadd.f32 %v1261, %v1263
      %v1266 = vadd.f32 %v1262, %v1264
      %1269 = vrot.lane.b32.xlu0 %v1265, 8
      %v1270 = vpop.permute.xlu0 %1269
      %1271 = vrot.lane.b32.xlu0 %v1266, 8
      %v1272 = vpop.permute.xlu0 %1271
      %v1275 = vsel %vm345, %v425, %v1270
      %v1276 = vsel %vm345, %v426, %v1272
      %s1277 = scalar_lea.vmem [#allocation2], 312
      %1278 = vst.msk [vmem:[%s1277 + $0x1] sm:$0xff] %vm299, %v1275
      %1279 = vst.msk [vmem:[%s1277 + $0x9] sm:$0xff] %vm299, %v1276
      %v1280 = vmul.f32 %v956, 0.93333334
      %v1281 = vmul.f32 %v961, 0.93333334
      %v1282 = vmul.f32 %v1031, 0.06666667
      %v1283 = vmul.f32 %v1036, 0.06666667
      %v1284 = vadd.f32 %v1280, %v1282
      %v1285 = vadd.f32 %v1281, %v1283
      %1288 = vrot.lane.b32.xlu0 %v1284, 8
      %v1289 = vpop.permute.xlu0 %1288
      %1290 = vrot.lane.b32.xlu0 %v1285, 8
      %v1291 = vpop.permute.xlu0 %1290
      %v1294 = vsel %vm345, %v427, %v1289
      %v1295 = vsel %vm345, %v428, %v1291
      %s1296 = scalar_lea.vmem [#allocation2], 336
      %1297 = vst.msk [vmem:[%s1296 + $0x1] sm:$0xff] %vm299, %v1294
      %1298 = vst.msk [vmem:[%s1296 + $0x9] sm:$0xff] %vm299, %v1295
      %v1299 = vmul.f32 %v956, 0.46666667
      %v1300 = vmul.f32 %v961, 0.46666667
      %v1301 = vmul.f32 %v1031, 0.53333336
      %v1302 = vmul.f32 %v1036, 0.53333336
      %v1303 = vadd.f32 %v1299, %v1301
      %v1304 = vadd.f32 %v1300, %v1302
      %1307 = vrot.lane.b32.xlu0 %v1303, 8
      %v1308 = vpop.permute.xlu0 %1307
      %1309 = vrot.lane.b32.xlu0 %v1304, 8
      %v1310 = vpop.permute.xlu0 %1309
      %v1313 = vsel %vm345, %v429, %v1308
      %v1314 = vsel %vm345, %v430, %v1310
      %s1315 = scalar_lea.vmem [#allocation2], 360
      %1316 = vst.msk [vmem:[%s1315 + $0x1] sm:$0xff] %vm299, %v1313
      %1317 = vst.msk [vmem:[%s1315 + $0x9] sm:$0xff] %vm299, %v1314
      %1320 = vrot.lane.b32.xlu0 %v1031, 8
      %v1321 = vpop.permute.xlu0 %1320
      %1322 = vrot.lane.b32.xlu0 %v1036, 8
      %v1323 = vpop.permute.xlu0 %1322
      %v1326 = vsel %vm345, %v431, %v1321
      %v1327 = vsel %vm345, %v432, %v1323
      %s1328 = scalar_lea.vmem [#allocation2], 384
      %1329 = vst.msk [vmem:[%s1328 + $0x1] sm:$0xff] %vm299, %v1326
      %1330 = vst.msk [vmem:[%s1328 + $0x9] sm:$0xff] %vm299, %v1327
      %v1331 = vld [vmem:[#allocation2] sm:$0xff]
      %v1332 = vld [vmem:[#allocation2 + $0x8] sm:$0xff]
      %v1333 = vld [vmem:[#allocation2 + $0x10] sm:$0x3]
      %v1334 = vld [vmem:[#allocation2 + $0x18] sm:$0xff]
      %v1335 = vld [vmem:[#allocation2 + $0x20] sm:$0xff]
      %v1336 = vld [vmem:[#allocation2 + $0x28] sm:$0x3]
      %v1337 = vld [vmem:[#allocation2 + $0x30] sm:$0xff]
      %v1338 = vld [vmem:[#allocation2 + $0x38] sm:$0xff]
      %v1339 = vld [vmem:[#allocation2 + $0x40] sm:$0x3]
      %v1340 = vld [vmem:[#allocation2 + $0x48] sm:$0xff]
      %v1341 = vld [vmem:[#allocation2 + $0x50] sm:$0xff]
      %v1342 = vld [vmem:[#allocation2 + $0x58] sm:$0x3]
      %v1343 = vld [vmem:[#allocation2 + $0x60] sm:$0xff]
      %v1344 = vld [vmem:[#allocation2 + $0x68] sm:$0xff]
      %v1345 = vld [vmem:[#allocation2 + $0x70] sm:$0x3]
      %v1346 = vld [vmem:[#allocation2 + $0x78] sm:$0xff]
      %v1347 = vld [vmem:[#allocation2 + $0x80] sm:$0xff]
      %v1348 = vld [vmem:[#allocation2 + $0x88] sm:$0x3]
      %v1349 = vld [vmem:[#allocation2 + $0x90] sm:$0xff]
      %v1350 = vld [vmem:[#allocation2 + $0x98] sm:$0xff]
      %v1351 = vld [vmem:[#allocation2 + $0xa0] sm:$0x3]
      %v1352 = vld [vmem:[#allocation2 + $0xa8] sm:$0xff]
      %v1353 = vld [vmem:[#allocation2 + $0xb0] sm:$0xff]
      %v1354 = vld [vmem:[#allocation2 + $0xb8] sm:$0x3]
      %v1355 = vld [vmem:[#allocation2 + $0xc0] sm:$0xff]
      %v1356 = vld [vmem:[#allocation2 + $0xc8] sm:$0xff]
      %v1357 = vld [vmem:[#allocation2 + $0xd0] sm:$0x3]
      %v1358 = vld [vmem:[#allocation2 + $0xd8] sm:$0xff]
      %v1359 = vld [vmem:[#allocation2 + $0xe0] sm:$0xff]
      %v1360 = vld [vmem:[#allocation2 + $0xe8] sm:$0x3]
      %v1361 = vld [vmem:[#allocation2 + $0xf0] sm:$0xff]
      %v1362 = vld [vmem:[#allocation2 + $0xf8] sm:$0xff]
      %v1363 = vld [vmem:[#allocation2 + $0x100] sm:$0x3]
      %v1364 = vld [vmem:[#allocation2 + $0x108] sm:$0xff]
      %v1365 = vld [vmem:[#allocation2 + $0x110] sm:$0xff]
      %v1366 = vld [vmem:[#allocation2 + $0x118] sm:$0x3]
      %v1367 = vld [vmem:[#allocation2 + $0x120] sm:$0xff]
      %v1368 = vld [vmem:[#allocation2 + $0x128] sm:$0xff]
      %v1369 = vld [vmem:[#allocation2 + $0x130] sm:$0x3]
      %v1370 = vld [vmem:[#allocation2 + $0x138] sm:$0xff]
      %v1371 = vld [vmem:[#allocation2 + $0x140] sm:$0xff]
      %v1372 = vld [vmem:[#allocation2 + $0x148] sm:$0x3]
      %v1373 = vld [vmem:[#allocation2 + $0x150] sm:$0xff]
      %v1374 = vld [vmem:[#allocation2 + $0x158] sm:$0xff]
      %v1375 = vld [vmem:[#allocation2 + $0x160] sm:$0x3]
      %v1376 = vld [vmem:[#allocation2 + $0x168] sm:$0xff]
      %v1377 = vld [vmem:[#allocation2 + $0x170] sm:$0xff]
      %v1378 = vld [vmem:[#allocation2 + $0x178] sm:$0x3]
      %v1379 = vld [vmem:[#allocation2 + $0x180] sm:$0xff]
      %v1380 = vld [vmem:[#allocation2 + $0x188] sm:$0xff]
      %v1381 = vld [vmem:[#allocation2 + $0x190] sm:$0x3]
      %v1382 = vld [vmem:[#allocation2 + $0x198] sm:$0xff]
      %v1383 = vld [vmem:[#allocation2 + $0x1a0] sm:$0xff]
      %v1384 = vld [vmem:[#allocation2 + $0x1a8] sm:$0x3]
      %vm1439 = vcmask 1046528
      %v1440 = vrot.slane %v1331, 1
      %v1441 = vrot.slane %v1332, 1
      %v1442 = vsel %vm1439, %v1440, %v1441
      %v1443 = vrot.slane %v1333, 1
      %v1444 = vsel %vm1439, %v1441, %v1443
      %v1445 = vrot.slane %v1334, 1
      %v1446 = vrot.slane %v1335, 1
      %v1447 = vsel %vm1439, %v1445, %v1446
      %v1448 = vrot.slane %v1336, 1
      %v1449 = vsel %vm1439, %v1446, %v1448
      %v1450 = vrot.slane %v1337, 1
      %v1451 = vrot.slane %v1338, 1
      %v1452 = vsel %vm1439, %v1450, %v1451
      %v1453 = vrot.slane %v1339, 1
      %v1454 = vsel %vm1439, %v1451, %v1453
      %v1455 = vrot.slane %v1340, 1
      %v1456 = vrot.slane %v1341, 1
      %v1457 = vsel %vm1439, %v1455, %v1456
      %v1458 = vrot.slane %v1342, 1
      %v1459 = vsel %vm1439, %v1456, %v1458
      %v1460 = vrot.slane %v1343, 1
      %v1461 = vrot.slane %v1344, 1
      %v1462 = vsel %vm1439, %v1460, %v1461
      %v1463 = vrot.slane %v1345, 1
      %v1464 = vsel %vm1439, %v1461, %v1463
      %v1465 = vrot.slane %v1346, 1
      %v1466 = vrot.slane %v1347, 1
      %v1467 = vsel %vm1439, %v1465, %v1466
      %v1468 = vrot.slane %v1348, 1
      %v1469 = vsel %vm1439, %v1466, %v1468
      %v1470 = vrot.slane %v1349, 1
      %v1471 = vrot.slane %v1350, 1
      %v1472 = vsel %vm1439, %v1470, %v1471
      %v1473 = vrot.slane %v1351, 1
      %v1474 = vsel %vm1439, %v1471, %v1473
      %v1475 = vrot.slane %v1352, 1
      %v1476 = vrot.slane %v1353, 1
      %v1477 = vsel %vm1439, %v1475, %v1476
      %v1478 = vrot.slane %v1354, 1
      %v1479 = vsel %vm1439, %v1476, %v1478
      %v1480 = vrot.slane %v1355, 1
      %v1481 = vrot.slane %v1356, 1
      %v1482 = vsel %vm1439, %v1480, %v1481
      %v1483 = vrot.slane %v1357, 1
      %v1484 = vsel %vm1439, %v1481, %v1483
      %v1485 = vrot.slane %v1358, 1
      %v1486 = vrot.slane %v1359, 1
      %v1487 = vsel %vm1439, %v1485, %v1486
      %v1488 = vrot.slane %v1360, 1
      %v1489 = vsel %vm1439, %v1486, %v1488
      %v1490 = vrot.slane %v1361, 1
      %v1491 = vrot.slane %v1362, 1
      %v1492 = vsel %vm1439, %v1490, %v1491
      %v1493 = vrot.slane %v1363, 1
      %v1494 = vsel %vm1439, %v1491, %v1493
      %v1495 = vrot.slane %v1364, 1
      %v1496 = vrot.slane %v1365, 1
      %v1497 = vsel %vm1439, %v1495, %v1496
      %v1498 = vrot.slane %v1366, 1
      %v1499 = vsel %vm1439, %v1496, %v1498
      %v1500 = vrot.slane %v1367, 1
      %v1501 = vrot.slane %v1368, 1
      %v1502 = vsel %vm1439, %v1500, %v1501
      %v1503 = vrot.slane %v1369, 1
      %v1504 = vsel %vm1439, %v1501, %v1503
      %v1505 = vrot.slane %v1370, 1
      %v1506 = vrot.slane %v1371, 1
      %v1507 = vsel %vm1439, %v1505, %v1506
      %v1508 = vrot.slane %v1372, 1
      %v1509 = vsel %vm1439, %v1506, %v1508
      %v1510 = vrot.slane %v1373, 1
      %v1511 = vrot.slane %v1374, 1
      %v1512 = vsel %vm1439, %v1510, %v1511
      %v1513 = vrot.slane %v1375, 1
      %v1514 = vsel %vm1439, %v1511, %v1513
      %v1515 = vrot.slane %v1376, 1
      %v1516 = vrot.slane %v1377, 1
      %v1517 = vsel %vm1439, %v1515, %v1516
      %v1518 = vrot.slane %v1378, 1
      %v1519 = vsel %vm1439, %v1516, %v1518
      %v1520 = vrot.slane %v1379, 1
      %v1521 = vrot.slane %v1380, 1
      %v1522 = vsel %vm1439, %v1520, %v1521
      %v1523 = vrot.slane %v1381, 1
      %v1524 = vsel %vm1439, %v1521, %v1523
      %v1525 = vrot.slane %v1382, 1
      %v1526 = vrot.slane %v1383, 1
      %v1527 = vsel %vm1439, %v1525, %v1526
      %v1528 = vrot.slane %v1384, 1
      %v1529 = vsel %vm1439, %v1526, %v1528
      %1530 = vrot.lane.b32.xlu0 %v1442, 12
      %v1531 = vpop.permute.xlu0 %1530
      %1532 = vrot.lane.b32.xlu0 %v1444, 12
      %v1533 = vpop.permute.xlu0 %1532
      %1534 = vrot.lane.b32.xlu0 %v1447, 12
      %v1535 = vpop.permute.xlu0 %1534
      %1536 = vrot.lane.b32.xlu0 %v1449, 12
      %v1537 = vpop.permute.xlu0 %1536
      %1538 = vrot.lane.b32.xlu0 %v1452, 12
      %v1539 = vpop.permute.xlu0 %1538
      %1540 = vrot.lane.b32.xlu0 %v1454, 12
      %v1541 = vpop.permute.xlu0 %1540
      %1542 = vrot.lane.b32.xlu0 %v1457, 12
      %v1543 = vpop.permute.xlu0 %1542
      %1544 = vrot.lane.b32.xlu0 %v1459, 12
      %v1545 = vpop.permute.xlu0 %1544
      %1546 = vrot.lane.b32.xlu0 %v1462, 12
      %v1547 = vpop.permute.xlu0 %1546
      %1548 = vrot.lane.b32.xlu0 %v1464, 12
      %v1549 = vpop.permute.xlu0 %1548
      %1550 = vrot.lane.b32.xlu0 %v1467, 12
      %v1551 = vpop.permute.xlu0 %1550
      %1552 = vrot.lane.b32.xlu0 %v1469, 12
      %v1553 = vpop.permute.xlu0 %1552
      %1554 = vrot.lane.b32.xlu0 %v1472, 12
      %v1555 = vpop.permute.xlu0 %1554
      %1556 = vrot.lane.b32.xlu0 %v1474, 12
      %v1557 = vpop.permute.xlu0 %1556
      %1558 = vrot.lane.b32.xlu0 %v1477, 12
      %v1559 = vpop.permute.xlu0 %1558
      %1560 = vrot.lane.b32.xlu0 %v1479, 12
      %v1561 = vpop.permute.xlu0 %1560
      %1562 = vrot.lane.b32.xlu0 %v1482, 12
      %v1563 = vpop.permute.xlu0 %1562
      %1564 = vrot.lane.b32.xlu0 %v1484, 12
      %v1565 = vpop.permute.xlu0 %1564
      %1566 = vrot.lane.b32.xlu0 %v1487, 12
      %v1567 = vpop.permute.xlu0 %1566
      %1568 = vrot.lane.b32.xlu0 %v1489, 12
      %v1569 = vpop.permute.xlu0 %1568
      %1570 = vrot.lane.b32.xlu0 %v1492, 12
      %v1571 = vpop.permute.xlu0 %1570
      %1572 = vrot.lane.b32.xlu0 %v1494, 12
      %v1573 = vpop.permute.xlu0 %1572
      %1574 = vrot.lane.b32.xlu0 %v1497, 12
      %v1575 = vpop.permute.xlu0 %1574
      %1576 = vrot.lane.b32.xlu0 %v1499, 12
      %v1577 = vpop.permute.xlu0 %1576
      %1578 = vrot.lane.b32.xlu0 %v1502, 12
      %v1579 = vpop.permute.xlu0 %1578
      %1580 = vrot.lane.b32.xlu0 %v1504, 12
      %v1581 = vpop.permute.xlu0 %1580
      %1582 = vrot.lane.b32.xlu0 %v1507, 12
      %v1583 = vpop.permute.xlu0 %1582
      %1584 = vrot.lane.b32.xlu0 %v1509, 12
      %v1585 = vpop.permute.xlu0 %1584
      %1586 = vrot.lane.b32.xlu0 %v1512, 12
      %v1587 = vpop.permute.xlu0 %1586
      %1588 = vrot.lane.b32.xlu0 %v1514, 12
      %v1589 = vpop.permute.xlu0 %1588
      %1590 = vrot.lane.b32.xlu0 %v1517, 12
      %v1591 = vpop.permute.xlu0 %1590
      %1592 = vrot.lane.b32.xlu0 %v1519, 12
      %v1593 = vpop.permute.xlu0 %1592
      %1594 = vrot.lane.b32.xlu0 %v1522, 12
      %v1595 = vpop.permute.xlu0 %1594
      %1596 = vrot.lane.b32.xlu0 %v1524, 12
      %v1597 = vpop.permute.xlu0 %1596
      %1598 = vrot.lane.b32.xlu0 %v1527, 12
      %v1599 = vpop.permute.xlu0 %1598
      %1600 = vrot.lane.b32.xlu0 %v1529, 12
      %v1601 = vpop.permute.xlu0 %1600
      %vm1638 = vcmask 1045504
      %v1639 = vrot.slane %v1331, 2
      %v1640 = vrot.slane %v1332, 2
      %v1641 = vsel %vm1638, %v1639, %v1640
      %v1642 = vrot.slane %v1333, 2
      %v1643 = vsel %vm1638, %v1640, %v1642
      %v1644 = vrot.slane %v1334, 2
      %v1645 = vrot.slane %v1335, 2
      %v1646 = vsel %vm1638, %v1644, %v1645
      %v1647 = vrot.slane %v1336, 2
      %v1648 = vsel %vm1638, %v1645, %v1647
      %v1649 = vrot.slane %v1337, 2
      %v1650 = vrot.slane %v1338, 2
      %v1651 = vsel %vm1638, %v1649, %v1650
      %v1652 = vrot.slane %v1339, 2
      %v1653 = vsel %vm1638, %v1650, %v1652
      %v1654 = vrot.slane %v1340, 2
      %v1655 = vrot.slane %v1341, 2
      %v1656 = vsel %vm1638, %v1654, %v1655
      %v1657 = vrot.slane %v1342, 2
      %v1658 = vsel %vm1638, %v1655, %v1657
      %v1659 = vrot.slane %v1343, 2
      %v1660 = vrot.slane %v1344, 2
      %v1661 = vsel %vm1638, %v1659, %v1660
      %v1662 = vrot.slane %v1345, 2
      %v1663 = vsel %vm1638, %v1660, %v1662
      %v1664 = vrot.slane %v1346, 2
      %v1665 = vrot.slane %v1347, 2
      %v1666 = vsel %vm1638, %v1664, %v1665
      %v1667 = vrot.slane %v1348, 2
      %v1668 = vsel %vm1638, %v1665, %v1667
      %v1669 = vrot.slane %v1349, 2
      %v1670 = vrot.slane %v1350, 2
      %v1671 = vsel %vm1638, %v1669, %v1670
      %v1672 = vrot.slane %v1351, 2
      %v1673 = vsel %vm1638, %v1670, %v1672
      %v1674 = vrot.slane %v1352, 2
      %v1675 = vrot.slane %v1353, 2
      %v1676 = vsel %vm1638, %v1674, %v1675
      %v1677 = vrot.slane %v1354, 2
      %v1678 = vsel %vm1638, %v1675, %v1677
      %v1679 = vrot.slane %v1355, 2
      %v1680 = vrot.slane %v1356, 2
      %v1681 = vsel %vm1638, %v1679, %v1680
      %v1682 = vrot.slane %v1357, 2
      %v1683 = vsel %vm1638, %v1680, %v1682
      %v1684 = vrot.slane %v1358, 2
      %v1685 = vrot.slane %v1359, 2
      %v1686 = vsel %vm1638, %v1684, %v1685
      %v1687 = vrot.slane %v1360, 2
      %v1688 = vsel %vm1638, %v1685, %v1687
      %v1689 = vrot.slane %v1361, 2
      %v1690 = vrot.slane %v1362, 2
      %v1691 = vsel %vm1638, %v1689, %v1690
      %v1692 = vrot.slane %v1363, 2
      %v1693 = vsel %vm1638, %v1690, %v1692
      %v1694 = vrot.slane %v1364, 2
      %v1695 = vrot.slane %v1365, 2
      %v1696 = vsel %vm1638, %v1694, %v1695
      %v1697 = vrot.slane %v1366, 2
      %v1698 = vsel %vm1638, %v1695, %v1697
      %v1699 = vrot.slane %v1367, 2
      %v1700 = vrot.slane %v1368, 2
      %v1701 = vsel %vm1638, %v1699, %v1700
      %v1702 = vrot.slane %v1369, 2
      %v1703 = vsel %vm1638, %v1700, %v1702
      %v1704 = vrot.slane %v1370, 2
      %v1705 = vrot.slane %v1371, 2
      %v1706 = vsel %vm1638, %v1704, %v1705
      %v1707 = vrot.slane %v1372, 2
      %v1708 = vsel %vm1638, %v1705, %v1707
      %v1709 = vrot.slane %v1373, 2
      %v1710 = vrot.slane %v1374, 2
      %v1711 = vsel %vm1638, %v1709, %v1710
      %v1712 = vrot.slane %v1375, 2
      %v1713 = vsel %vm1638, %v1710, %v1712
      %v1714 = vrot.slane %v1376, 2
      %v1715 = vrot.slane %v1377, 2
      %v1716 = vsel %vm1638, %v1714, %v1715
      %v1717 = vrot.slane %v1378, 2
      %v1718 = vsel %vm1638, %v1715, %v1717
      %v1719 = vrot.slane %v1379, 2
      %v1720 = vrot.slane %v1380, 2
      %v1721 = vsel %vm1638, %v1719, %v1720
      %v1722 = vrot.slane %v1381, 2
      %v1723 = vsel %vm1638, %v1720, %v1722
      %v1724 = vrot.slane %v1382, 2
      %v1725 = vrot.slane %v1383, 2
      %v1726 = vsel %vm1638, %v1724, %v1725
      %v1727 = vrot.slane %v1384, 2
      %v1728 = vsel %vm1638, %v1725, %v1727
      %1729 = vrot.lane.b32.xlu0 %v1641, 24
      %v1730 = vpop.permute.xlu0 %1729
      %1731 = vrot.lane.b32.xlu0 %v1643, 24
      %v1732 = vpop.permute.xlu0 %1731
      %1733 = vrot.lane.b32.xlu0 %v1646, 24
      %v1734 = vpop.permute.xlu0 %1733
      %1735 = vrot.lane.b32.xlu0 %v1648, 24
      %v1736 = vpop.permute.xlu0 %1735
      %1737 = vrot.lane.b32.xlu0 %v1651, 24
      %v1738 = vpop.permute.xlu0 %1737
      %1739 = vrot.lane.b32.xlu0 %v1653, 24
      %v1740 = vpop.permute.xlu0 %1739
      %1741 = vrot.lane.b32.xlu0 %v1656, 24
      %v1742 = vpop.permute.xlu0 %1741
      %1743 = vrot.lane.b32.xlu0 %v1658, 24
      %v1744 = vpop.permute.xlu0 %1743
      %1745 = vrot.lane.b32.xlu0 %v1661, 24
      %v1746 = vpop.permute.xlu0 %1745
      %1747 = vrot.lane.b32.xlu0 %v1663, 24
      %v1748 = vpop.permute.xlu0 %1747
      %1749 = vrot.lane.b32.xlu0 %v1666, 24
      %v1750 = vpop.permute.xlu0 %1749
      %1751 = vrot.lane.b32.xlu0 %v1668, 24
      %v1752 = vpop.permute.xlu0 %1751
      %1753 = vrot.lane.b32.xlu0 %v1671, 24
      %v1754 = vpop.permute.xlu0 %1753
      %1755 = vrot.lane.b32.xlu0 %v1673, 24
      %v1756 = vpop.permute.xlu0 %1755
      %1757 = vrot.lane.b32.xlu0 %v1676, 24
      %v1758 = vpop.permute.xlu0 %1757
      %1759 = vrot.lane.b32.xlu0 %v1678, 24
      %v1760 = vpop.permute.xlu0 %1759
      %1761 = vrot.lane.b32.xlu0 %v1681, 24
      %v1762 = vpop.permute.xlu0 %1761
      %1763 = vrot.lane.b32.xlu0 %v1683, 24
      %v1764 = vpop.permute.xlu0 %1763
      %1765 = vrot.lane.b32.xlu0 %v1686, 24
      %v1766 = vpop.permute.xlu0 %1765
      %1767 = vrot.lane.b32.xlu0 %v1688, 24
      %v1768 = vpop.permute.xlu0 %1767
      %1769 = vrot.lane.b32.xlu0 %v1691, 24
      %v1770 = vpop.permute.xlu0 %1769
      %1771 = vrot.lane.b32.xlu0 %v1693, 24
      %v1772 = vpop.permute.xlu0 %1771
      %1773 = vrot.lane.b32.xlu0 %v1696, 24
      %v1774 = vpop.permute.xlu0 %1773
      %1775 = vrot.lane.b32.xlu0 %v1698, 24
      %v1776 = vpop.permute.xlu0 %1775
      %1777 = vrot.lane.b32.xlu0 %v1701, 24
      %v1778 = vpop.permute.xlu0 %1777
      %1779 = vrot.lane.b32.xlu0 %v1703, 24
      %v1780 = vpop.permute.xlu0 %1779
      %1781 = vrot.lane.b32.xlu0 %v1706, 24
      %v1782 = vpop.permute.xlu0 %1781
      %1783 = vrot.lane.b32.xlu0 %v1708, 24
      %v1784 = vpop.permute.xlu0 %1783
      %1785 = vrot.lane.b32.xlu0 %v1711, 24
      %v1786 = vpop.permute.xlu0 %1785
      %1787 = vrot.lane.b32.xlu0 %v1713, 24
      %v1788 = vpop.permute.xlu0 %1787
      %1789 = vrot.lane.b32.xlu0 %v1716, 24
      %v1790 = vpop.permute.xlu0 %1789
      %1791 = vrot.lane.b32.xlu0 %v1718, 24
      %v1792 = vpop.permute.xlu0 %1791
      %1793 = vrot.lane.b32.xlu0 %v1721, 24
      %v1794 = vpop.permute.xlu0 %1793
      %1795 = vrot.lane.b32.xlu0 %v1723, 24
      %v1796 = vpop.permute.xlu0 %1795
      %1797 = vrot.lane.b32.xlu0 %v1726, 24
      %v1798 = vpop.permute.xlu0 %1797
      %1799 = vrot.lane.b32.xlu0 %v1728, 24
      %v1800 = vpop.permute.xlu0 %1799
      %v1837 = vsel %vm299, %v1331, %v1531
      %v1838 = vsel %vm299, %v1332, %v1533
      %v1839 = vsel %vm299, %v1334, %v1535
      %v1840 = vsel %vm299, %v1335, %v1537
      %v1841 = vsel %vm299, %v1337, %v1539
      %v1842 = vsel %vm299, %v1338, %v1541
      %v1843 = vsel %vm299, %v1340, %v1543
      %v1844 = vsel %vm299, %v1341, %v1545
      %v1845 = vsel %vm299, %v1343, %v1547
      %v1846 = vsel %vm299, %v1344, %v1549
      %v1847 = vsel %vm299, %v1346, %v1551
      %v1848 = vsel %vm299, %v1347, %v1553
      %v1849 = vsel %vm299, %v1349, %v1555
      %v1850 = vsel %vm299, %v1350, %v1557
      %v1851 = vsel %vm299, %v1352, %v1559
      %v1852 = vsel %vm299, %v1353, %v1561
      %v1853 = vsel %vm299, %v1355, %v1563
      %v1854 = vsel %vm299, %v1356, %v1565
      %v1855 = vsel %vm299, %v1358, %v1567
      %v1856 = vsel %vm299, %v1359, %v1569
      %v1857 = vsel %vm299, %v1361, %v1571
      %v1858 = vsel %vm299, %v1362, %v1573
      %v1859 = vsel %vm299, %v1364, %v1575
      %v1860 = vsel %vm299, %v1365, %v1577
      %v1861 = vsel %vm299, %v1367, %v1579
      %v1862 = vsel %vm299, %v1368, %v1581
      %v1863 = vsel %vm299, %v1370, %v1583
      %v1864 = vsel %vm299, %v1371, %v1585
      %v1865 = vsel %vm299, %v1373, %v1587
      %v1866 = vsel %vm299, %v1374, %v1589
      %v1867 = vsel %vm299, %v1376, %v1591
      %v1868 = vsel %vm299, %v1377, %v1593
      %v1869 = vsel %vm299, %v1379, %v1595
      %v1870 = vsel %vm299, %v1380, %v1597
      %v1871 = vsel %vm299, %v1382, %v1599
      %v1872 = vsel %vm299, %v1383, %v1601
      %vm1873 = vcmask 195584
      %v1874 = vsel %vm1873, %v1837, %v1730
      %v1875 = vsel %vm1873, %v1838, %v1732
      %v1876 = vsel %vm1873, %v1839, %v1734
      %v1877 = vsel %vm1873, %v1840, %v1736
      %v1878 = vsel %vm1873, %v1841, %v1738
      %v1879 = vsel %vm1873, %v1842, %v1740
      %v1880 = vsel %vm1873, %v1843, %v1742
      %v1881 = vsel %vm1873, %v1844, %v1744
      %v1882 = vsel %vm1873, %v1845, %v1746
      %v1883 = vsel %vm1873, %v1846, %v1748
      %v1884 = vsel %vm1873, %v1847, %v1750
      %v1885 = vsel %vm1873, %v1848, %v1752
      %v1886 = vsel %vm1873, %v1849, %v1754
      %v1887 = vsel %vm1873, %v1850, %v1756
      %v1888 = vsel %vm1873, %v1851, %v1758
      %v1889 = vsel %vm1873, %v1852, %v1760
      %v1890 = vsel %vm1873, %v1853, %v1762
      %v1891 = vsel %vm1873, %v1854, %v1764
      %v1892 = vsel %vm1873, %v1855, %v1766
      %v1893 = vsel %vm1873, %v1856, %v1768
      %v1894 = vsel %vm1873, %v1857, %v1770
      %v1895 = vsel %vm1873, %v1858, %v1772
      %v1896 = vsel %vm1873, %v1859, %v1774
      %v1897 = vsel %vm1873, %v1860, %v1776
      %v1898 = vsel %vm1873, %v1861, %v1778
      %v1899 = vsel %vm1873, %v1862, %v1780
      %v1900 = vsel %vm1873, %v1863, %v1782
      %v1901 = vsel %vm1873, %v1864, %v1784
      %v1902 = vsel %vm1873, %v1865, %v1786
      %v1903 = vsel %vm1873, %v1866, %v1788
      %v1904 = vsel %vm1873, %v1867, %v1790
      %v1905 = vsel %vm1873, %v1868, %v1792
      %v1906 = vsel %vm1873, %v1869, %v1794
      %v1907 = vsel %vm1873, %v1870, %v1796
      %v1908 = vsel %vm1873, %v1871, %v1798
      %v1909 = vsel %vm1873, %v1872, %v1800
      %1942 = vrot.lane.b32.xlu0 %v1876, 36
      %v1943 = vpop.permute.xlu0 %1942
      %1944 = vrot.lane.b32.xlu0 %v1877, 36
      %v1945 = vpop.permute.xlu0 %1944
      %1946 = vrot.lane.b32.xlu0 %v1878, 36
      %v1947 = vpop.permute.xlu0 %1946
      %1948 = vrot.lane.b32.xlu0 %v1879, 36
      %v1949 = vpop.permute.xlu0 %1948
      %1950 = vrot.lane.b32.xlu0 %v1880, 36
      %v1951 = vpop.permute.xlu0 %1950
      %1952 = vrot.lane.b32.xlu0 %v1881, 36
      %v1953 = vpop.permute.xlu0 %1952
      %1954 = vrot.lane.b32.xlu0 %v1882, 36
      %v1955 = vpop.permute.xlu0 %1954
      %1956 = vrot.lane.b32.xlu0 %v1883, 36
      %v1957 = vpop.permute.xlu0 %1956
      %1958 = vrot.lane.b32.xlu0 %v1884, 36
      %v1959 = vpop.permute.xlu0 %1958
      %1960 = vrot.lane.b32.xlu0 %v1885, 36
      %v1961 = vpop.permute.xlu0 %1960
      %1962 = vrot.lane.b32.xlu0 %v1886, 36
      %v1963 = vpop.permute.xlu0 %1962
      %1964 = vrot.lane.b32.xlu0 %v1887, 36
      %v1965 = vpop.permute.xlu0 %1964
      %1966 = vrot.lane.b32.xlu0 %v1888, 36
      %v1967 = vpop.permute.xlu0 %1966
      %1968 = vrot.lane.b32.xlu0 %v1889, 36
      %v1969 = vpop.permute.xlu0 %1968
      %1970 = vrot.lane.b32.xlu0 %v1890, 36
      %v1971 = vpop.permute.xlu0 %1970
      %1972 = vrot.lane.b32.xlu0 %v1891, 36
      %v1973 = vpop.permute.xlu0 %1972
      %1974 = vrot.lane.b32.xlu0 %v1892, 36
      %v1975 = vpop.permute.xlu0 %1974
      %1976 = vrot.lane.b32.xlu0 %v1893, 36
      %v1977 = vpop.permute.xlu0 %1976
      %1978 = vrot.lane.b32.xlu0 %v1894, 36
      %v1979 = vpop.permute.xlu0 %1978
      %1980 = vrot.lane.b32.xlu0 %v1895, 36
      %v1981 = vpop.permute.xlu0 %1980
      %1982 = vrot.lane.b32.xlu0 %v1896, 36
      %v1983 = vpop.permute.xlu0 %1982
      %1984 = vrot.lane.b32.xlu0 %v1897, 36
      %v1985 = vpop.permute.xlu0 %1984
      %1986 = vrot.lane.b32.xlu0 %v1898, 36
      %v1987 = vpop.permute.xlu0 %1986
      %1988 = vrot.lane.b32.xlu0 %v1899, 36
      %v1989 = vpop.permute.xlu0 %1988
      %1990 = vrot.lane.b32.xlu0 %v1900, 36
      %v1991 = vpop.permute.xlu0 %1990
      %1992 = vrot.lane.b32.xlu0 %v1901, 36
      %v1993 = vpop.permute.xlu0 %1992
      %1994 = vrot.lane.b32.xlu0 %v1902, 36
      %v1995 = vpop.permute.xlu0 %1994
      %1996 = vrot.lane.b32.xlu0 %v1903, 36
      %v1997 = vpop.permute.xlu0 %1996
      %1998 = vrot.lane.b32.xlu0 %v1904, 36
      %v1999 = vpop.permute.xlu0 %1998
      %2000 = vrot.lane.b32.xlu0 %v1905, 36
      %v2001 = vpop.permute.xlu0 %2000
      %2002 = vrot.lane.b32.xlu0 %v1906, 36
      %v2003 = vpop.permute.xlu0 %2002
      %2004 = vrot.lane.b32.xlu0 %v1907, 36
      %v2005 = vpop.permute.xlu0 %2004
      %2040 = vrot.lane.b32.xlu0 %v1878, 72
      %v2041 = vpop.permute.xlu0 %2040
      %2042 = vrot.lane.b32.xlu0 %v1879, 72
      %v2043 = vpop.permute.xlu0 %2042
      %2044 = vrot.lane.b32.xlu0 %v1880, 72
      %v2045 = vpop.permute.xlu0 %2044
      %2046 = vrot.lane.b32.xlu0 %v1881, 72
      %v2047 = vpop.permute.xlu0 %2046
      %2048 = vrot.lane.b32.xlu0 %v1882, 72
      %v2049 = vpop.permute.xlu0 %2048
      %2050 = vrot.lane.b32.xlu0 %v1883, 72
      %v2051 = vpop.permute.xlu0 %2050
      %2052 = vrot.lane.b32.xlu0 %v1884, 72
      %v2053 = vpop.permute.xlu0 %2052
      %2054 = vrot.lane.b32.xlu0 %v1885, 72
      %v2055 = vpop.permute.xlu0 %2054
      %2056 = vrot.lane.b32.xlu0 %v1886, 72
      %v2057 = vpop.permute.xlu0 %2056
      %2058 = vrot.lane.b32.xlu0 %v1887, 72
      %v2059 = vpop.permute.xlu0 %2058
      %2060 = vrot.lane.b32.xlu0 %v1888, 72
      %v2061 = vpop.permute.xlu0 %2060
      %2062 = vrot.lane.b32.xlu0 %v1889, 72
      %v2063 = vpop.permute.xlu0 %2062
      %2064 = vrot.lane.b32.xlu0 %v1890, 72
      %v2065 = vpop.permute.xlu0 %2064
      %2066 = vrot.lane.b32.xlu0 %v1891, 72
      %v2067 = vpop.permute.xlu0 %2066
      %2068 = vrot.lane.b32.xlu0 %v1892, 72
      %v2069 = vpop.permute.xlu0 %2068
      %2070 = vrot.lane.b32.xlu0 %v1893, 72
      %v2071 = vpop.permute.xlu0 %2070
      %2072 = vrot.lane.b32.xlu0 %v1894, 72
      %v2073 = vpop.permute.xlu0 %2072
      %2074 = vrot.lane.b32.xlu0 %v1895, 72
      %v2075 = vpop.permute.xlu0 %2074
      %2076 = vrot.lane.b32.xlu0 %v1896, 72
      %v2077 = vpop.permute.xlu0 %2076
      %2078 = vrot.lane.b32.xlu0 %v1897, 72
      %v2079 = vpop.permute.xlu0 %2078
      %2080 = vrot.lane.b32.xlu0 %v1898, 72
      %v2081 = vpop.permute.xlu0 %2080
      %2082 = vrot.lane.b32.xlu0 %v1899, 72
      %v2083 = vpop.permute.xlu0 %2082
      %2084 = vrot.lane.b32.xlu0 %v1900, 72
      %v2085 = vpop.permute.xlu0 %2084
      %2086 = vrot.lane.b32.xlu0 %v1901, 72
      %v2087 = vpop.permute.xlu0 %2086
      %2088 = vrot.lane.b32.xlu0 %v1902, 72
      %v2089 = vpop.permute.xlu0 %2088
      %2090 = vrot.lane.b32.xlu0 %v1903, 72
      %v2091 = vpop.permute.xlu0 %2090
      %2092 = vrot.lane.b32.xlu0 %v1904, 72
      %v2093 = vpop.permute.xlu0 %2092
      %2094 = vrot.lane.b32.xlu0 %v1905, 72
      %v2095 = vpop.permute.xlu0 %2094
      %2096 = vrot.lane.b32.xlu0 %v1906, 72
      %v2097 = vpop.permute.xlu0 %2096
      %2098 = vrot.lane.b32.xlu0 %v1907, 72
      %v2099 = vpop.permute.xlu0 %2098
      %2100 = vrot.lane.b32.xlu0 %v1908, 72
      %v2101 = vpop.permute.xlu0 %2100
      %2102 = vrot.lane.b32.xlu0 %v1909, 72
      %v2103 = vpop.permute.xlu0 %2102
      %vm2136 = vcmask 293888
      %v2137 = vsel %vm2136, %v1874, %v1943
      %v2138 = vsel %vm2136, %v1875, %v1945
      %v2139 = vsel %vm2136, %v1876, %v1947
      %v2140 = vsel %vm2136, %v1877, %v1949
      %v2141 = vsel %vm2136, %v1878, %v1951
      %v2142 = vsel %vm2136, %v1879, %v1953
      %v2143 = vsel %vm2136, %v1880, %v1955
      %v2144 = vsel %vm2136, %v1881, %v1957
      %v2145 = vsel %vm2136, %v1882, %v1959
      %v2146 = vsel %vm2136, %v1883, %v1961
      %v2147 = vsel %vm2136, %v1884, %v1963
      %v2148 = vsel %vm2136, %v1885, %v1965
      %v2149 = vsel %vm2136, %v1886, %v1967
      %v2150 = vsel %vm2136, %v1887, %v1969
      %v2151 = vsel %vm2136, %v1888, %v1971
      %v2152 = vsel %vm2136, %v1889, %v1973
      %v2153 = vsel %vm2136, %v1890, %v1975
      %v2154 = vsel %vm2136, %v1891, %v1977
      %v2155 = vsel %vm2136, %v1892, %v1979
      %v2156 = vsel %vm2136, %v1893, %v1981
      %v2157 = vsel %vm2136, %v1894, %v1983
      %v2158 = vsel %vm2136, %v1895, %v1985
      %v2159 = vsel %vm2136, %v1896, %v1987
      %v2160 = vsel %vm2136, %v1897, %v1989
      %v2161 = vsel %vm2136, %v1898, %v1991
      %v2162 = vsel %vm2136, %v1899, %v1993
      %v2163 = vsel %vm2136, %v1900, %v1995
      %v2164 = vsel %vm2136, %v1901, %v1997
      %v2165 = vsel %vm2136, %v1902, %v1999
      %v2166 = vsel %vm2136, %v1903, %v2001
      %v2167 = vsel %vm2136, %v1904, %v2003
      %v2168 = vsel %vm2136, %v1905, %v2005
      %vm2169 = vcmask 588800
      %v2170 = vsel %vm2169, %v2137, %v2041
      %v2171 = vsel %vm2169, %v2138, %v2043
      %v2172 = vsel %vm2169, %v2139, %v2045
      %v2173 = vsel %vm2169, %v2140, %v2047
      %v2174 = vsel %vm2169, %v2141, %v2049
      %v2175 = vsel %vm2169, %v2142, %v2051
      %v2176 = vsel %vm2169, %v2143, %v2053
      %v2177 = vsel %vm2169, %v2144, %v2055
      %v2178 = vsel %vm2169, %v2145, %v2057
      %v2179 = vsel %vm2169, %v2146, %v2059
      %v2180 = vsel %vm2169, %v2147, %v2061
      %v2181 = vsel %vm2169, %v2148, %v2063
      %v2182 = vsel %vm2169, %v2149, %v2065
      %v2183 = vsel %vm2169, %v2150, %v2067
      %v2184 = vsel %vm2169, %v2151, %v2069
      %v2185 = vsel %vm2169, %v2152, %v2071
      %v2186 = vsel %vm2169, %v2153, %v2073
      %v2187 = vsel %vm2169, %v2154, %v2075
      %v2188 = vsel %vm2169, %v2155, %v2077
      %v2189 = vsel %vm2169, %v2156, %v2079
      %v2190 = vsel %vm2169, %v2157, %v2081
      %v2191 = vsel %vm2169, %v2158, %v2083
      %v2192 = vsel %vm2169, %v2159, %v2085
      %v2193 = vsel %vm2169, %v2160, %v2087
      %v2194 = vsel %vm2169, %v2161, %v2089
      %v2195 = vsel %vm2169, %v2162, %v2091
      %v2196 = vsel %vm2169, %v2163, %v2093
      %v2197 = vsel %vm2169, %v2164, %v2095
      %v2198 = vsel %vm2169, %v2165, %v2097
      %v2199 = vsel %vm2169, %v2166, %v2099
      %v2200 = vsel %vm2169, %v2167, %v2101
      %v2201 = vsel %vm2169, %v2168, %v2103
      %v2202 = vld [vmem:[%s3] sm:$0xff]
      %v2203 = vld [vmem:[%s3 + $0x8] sm:$0xff]
      %v2204 = vld [vmem:[%s3 + $0x10] sm:$0xff]
      %v2205 = vld [vmem:[%s3 + $0x18] sm:$0xff]
      %v2206 = vld [vmem:[%s3 + $0x20] sm:$0xff]
      %v2207 = vld [vmem:[%s3 + $0x28] sm:$0xff]
      %v2208 = vld [vmem:[%s3 + $0x30] sm:$0xff]
      %v2209 = vld [vmem:[%s3 + $0x38] sm:$0xff]
      %v2210 = vld [vmem:[%s3 + $0x40] sm:$0xff]
      %v2211 = vld [vmem:[%s3 + $0x48] sm:$0xff]
      %v2212 = vld [vmem:[%s3 + $0x50] sm:$0xff]
      %v2213 = vld [vmem:[%s3 + $0x58] sm:$0xff]
      %v2214 = vld [vmem:[%s3 + $0x60] sm:$0xff]
      %v2215 = vld [vmem:[%s3 + $0x68] sm:$0xf]
      %v2216 = vld [vmem:[%s4] sm:$0x1]
      %v2218 = vlaneseq
      %v2219 = vshrl.u32 %v2218, 7
      %v2220 = vsub.s32 0, %v2219
      %v2221 = vrot.slane %v2216, %v2220
      %vm2223 = vcmask 883712
      %v2225 = vsel %vm2223, %v2170, 0
      %v2228 = vsel %vm2223, %v2171, 0
      %v2231 = vsel %vm2223, %v2172, 0
      %v2234 = vsel %vm2223, %v2173, 0
      %v2237 = vsel %vm2223, %v2174, 0
      %v2240 = vsel %vm2223, %v2175, 0
      %v2243 = vsel %vm2223, %v2176, 0
      %v2246 = vsel %vm2223, %v2177, 0
      %v2249 = vsel %vm2223, %v2178, 0
      %v2252 = vsel %vm2223, %v2179, 0
      %v2255 = vsel %vm2223, %v2180, 0
      %v2258 = vsel %vm2223, %v2181, 0
      %v2261 = vsel %vm2223, %v2182, 0
      %v2264 = vsel %vm2223, %v2183, 0
      %v2267 = vsel %vm2223, %v2184, 0
      %v2270 = vsel %vm2223, %v2185, 0
      %v2273 = vsel %vm2223, %v2186, 0
      %v2276 = vsel %vm2223, %v2187, 0
      %v2279 = vsel %vm2223, %v2188, 0
      %v2282 = vsel %vm2223, %v2189, 0
      %v2285 = vsel %vm2223, %v2190, 0
      %v2288 = vsel %vm2223, %v2191, 0
      %v2291 = vsel %vm2223, %v2192, 0
      %v2294 = vsel %vm2223, %v2193, 0
      %v2297 = vsel %vm2223, %v2194, 0
      %v2300 = vsel %vm2223, %v2195, 0
      %v2303 = vsel %vm2223, %v2196, 0
      %v2306 = vsel %vm2223, %v2197, 0
      %v2309 = vsel %vm2223, %v2198, 0
      %v2312 = vsel %vm2223, %v2199, 0
      %v2315 = vsel %vm2223, %v2200, 0
      %v2318 = vsel %vm2223, %v2201, 0
      %vm2320 = vcmask 1043456
      %v2322 = vsel %vm2320, %v2215, 0
      %2324 = vmatprep.subr.mxu0 0.0
      %2325 = vmatpush1.msra.mxu0 0.0
      %2326 = vmatprep.subr.mxu0 0.0
      %2327 = vmatpush1.msra.mxu0 0.0
      %2328 = vmatprep.subr.mxu0 0.0
      %2329 = vmatpush1.msra.mxu0 %v2322
      %2330 = vmatprep.subr.mxu0 0.0
      %2331 = vmatpush1.msra.mxu0 %v2214
      %2332 = vmatprep.subr.mxu0 0.0
      %2333 = vmatpush1.msra.mxu0 %v2213
      %2334 = vmatprep.subr.mxu0 0.0
      %2335 = vmatpush1.msra.mxu0 %v2212
      %2336 = vmatprep.subr.mxu0 0.0
      %2337 = vmatpush1.msra.mxu0 %v2211
      %2338 = vmatprep.subr.mxu0 0.0
      %2339 = vmatpush1.msra.mxu0 %v2210
      %2340 = vmatprep.subr.mxu0 0.0
      %2341 = vmatpush1.msra.mxu0 %v2209
      %2342 = vmatprep.subr.mxu0 0.0
      %2343 = vmatpush1.msra.mxu0 %v2208
      %2344 = vmatprep.subr.mxu0 0.0
      %2345 = vmatpush1.msra.mxu0 %v2207
      %2346 = vmatprep.subr.mxu0 0.0
      %2347 = vmatpush1.msra.mxu0 %v2206
      %2348 = vmatprep.subr.mxu0 0.0
      %2349 = vmatpush1.msra.mxu0 %v2205
      %2350 = vmatprep.subr.mxu0 0.0
      %2351 = vmatpush1.msra.mxu0 %v2204
      %2352 = vmatprep.subr.mxu0 0.0
      %2353 = vmatpush1.msra.mxu0 %v2203
      %2354 = vmatprep.subr.mxu0 0.0
      %2355 = vmatpush1.msra.mxu0 %v2202
      %2356 = vmatprep.subr.mxu0 0.0
      %2357 = vmatpush2.msra.mxu0 0.0
      %2358 = vmatprep.subr.mxu0 0.0
      %2359 = vmatpush2.msra.mxu0 0.0
      %2360 = vmatprep.subr.mxu0 0.0
      %2361 = vmatpush2.msra.mxu0 0.0
      %2362 = vmatprep.subr.mxu0 0.0
      %2363 = vmatpush2.msra.mxu0 0.0
      %2364 = vmatprep.subr.mxu0 0.0
      %2365 = vmatpush2.msra.mxu0 0.0
      %2366 = vmatprep.subr.mxu0 0.0
      %2367 = vmatpush2.msra.mxu0 0.0
      %2368 = vmatprep.subr.mxu0 0.0
      %2369 = vmatpush2.msra.mxu0 0.0
      %2370 = vmatprep.subr.mxu0 0.0
      %2371 = vmatpush2.msra.mxu0 0.0
      %2372 = vmatprep.subr.mxu0 0.0
      %2373 = vmatpush2.msra.mxu0 0.0
      %2374 = vmatprep.subr.mxu0 0.0
      %2375 = vmatpush2.msra.mxu0 0.0
      %2376 = vmatprep.subr.mxu0 0.0
      %2377 = vmatpush2.msra.mxu0 0.0
      %2378 = vmatprep.subr.mxu0 0.0
      %2379 = vmatpush2.msra.mxu0 0.0
      %2380 = vmatprep.subr.mxu0 0.0
      %2381 = vmatpush2.msra.mxu0 0.0
      %2382 = vmatprep.subr.mxu0 0.0
      %2383 = vmatpush2.msra.mxu0 0.0
      %2384 = vmatprep.subr.mxu0 0.0
      %2385 = vmatpush2.msra.mxu0 0.0
      %2386 = vmatprep.subr.mxu0 0.0
      %2387 = vmatpush2.msra.mxu0 0.0
      %2388 = vmatprep.mubr.f32.mxu0 0.0
      %2389 = vmatmul.mubr.f32.gmra.mxu0 %v2225
      %v2390 = vpop.f32.mrf.mxu0
      %v2391 = vadd.f32 %v2221, %v2390
      %v2392 = vpop.f32.mrf.mxu0
      %2393 = vmatprep.mubr.f32.mxu0 0.0
      %2394 = vmatmul.mubr.f32.gmra.mxu0 %v2228
      %v2395 = vpop.f32.mrf.mxu0
      %v2396 = vadd.f32 %v2221, %v2395
      %v2397 = vpop.f32.mrf.mxu0
      %2398 = vmatprep.mubr.f32.mxu0 0.0
      %2399 = vmatmul.mubr.f32.gmra.mxu0 %v2231
      %v2400 = vpop.f32.mrf.mxu0
      %v2401 = vadd.f32 %v2221, %v2400
      %v2402 = vpop.f32.mrf.mxu0
      %2403 = vmatprep.mubr.f32.mxu0 0.0
      %2404 = vmatmul.mubr.f32.gmra.mxu0 %v2234
      %v2405 = vpop.f32.mrf.mxu0
      %v2406 = vadd.f32 %v2221, %v2405
      %v2407 = vpop.f32.mrf.mxu0
      %2408 = vmatprep.mubr.f32.mxu0 0.0
      %2409 = vmatmul.mubr.f32.gmra.mxu0 %v2237
      %v2410 = vpop.f32.mrf.mxu0
      %v2411 = vadd.f32 %v2221, %v2410
      %v2412 = vpop.f32.mrf.mxu0
      %2413 = vmatprep.mubr.f32.mxu0 0.0
      %2414 = vmatmul.mubr.f32.gmra.mxu0 %v2240
      %v2415 = vpop.f32.mrf.mxu0
      %v2416 = vadd.f32 %v2221, %v2415
      %v2417 = vpop.f32.mrf.mxu0
      %2418 = vmatprep.mubr.f32.mxu0 0.0
      %2419 = vmatmul.mubr.f32.gmra.mxu0 %v2243
      %v2420 = vpop.f32.mrf.mxu0
      %v2421 = vadd.f32 %v2221, %v2420
      %v2422 = vpop.f32.mrf.mxu0
      %2423 = vmatprep.mubr.f32.mxu0 0.0
      %2424 = vmatmul.mubr.f32.gmra.mxu0 %v2246
      %v2425 = vpop.f32.mrf.mxu0
      %v2426 = vadd.f32 %v2221, %v2425
      %v2427 = vpop.f32.mrf.mxu0
      %2428 = vmatprep.mubr.f32.mxu0 0.0
      %2429 = vmatmul.mubr.f32.gmra.mxu0 %v2249
      %v2430 = vpop.f32.mrf.mxu0
      %v2431 = vadd.f32 %v2221, %v2430
      %v2432 = vpop.f32.mrf.mxu0
      %2433 = vmatprep.mubr.f32.mxu0 0.0
      %2434 = vmatmul.mubr.f32.gmra.mxu0 %v2252
      %v2435 = vpop.f32.mrf.mxu0
      %v2436 = vadd.f32 %v2221, %v2435
      %v2437 = vpop.f32.mrf.mxu0
      %2438 = vmatprep.mubr.f32.mxu0 0.0
      %2439 = vmatmul.mubr.f32.gmra.mxu0 %v2255
      %v2440 = vpop.f32.mrf.mxu0
      %v2441 = vadd.f32 %v2221, %v2440
      %v2442 = vpop.f32.mrf.mxu0
      %2443 = vmatprep.mubr.f32.mxu0 0.0
      %2444 = vmatmul.mubr.f32.gmra.mxu0 %v2258
      %v2445 = vpop.f32.mrf.mxu0
      %v2446 = vadd.f32 %v2221, %v2445
      %v2447 = vpop.f32.mrf.mxu0
      %2448 = vmatprep.mubr.f32.mxu0 0.0
      %2449 = vmatmul.mubr.f32.gmra.mxu0 %v2261
      %v2450 = vpop.f32.mrf.mxu0
      %v2451 = vadd.f32 %v2221, %v2450
      %v2452 = vpop.f32.mrf.mxu0
      %2453 = vmatprep.mubr.f32.mxu0 0.0
      %2454 = vmatmul.mubr.f32.gmra.mxu0 %v2264
      %v2455 = vpop.f32.mrf.mxu0
      %v2456 = vadd.f32 %v2221, %v2455
      %v2457 = vpop.f32.mrf.mxu0
      %2458 = vmatprep.mubr.f32.mxu0 0.0
      %2459 = vmatmul.mubr.f32.gmra.mxu0 %v2267
      %v2460 = vpop.f32.mrf.mxu0
      %v2461 = vadd.f32 %v2221, %v2460
      %v2462 = vpop.f32.mrf.mxu0
      %2463 = vmatprep.mubr.f32.mxu0 0.0
      %2464 = vmatmul.mubr.f32.gmra.mxu0 %v2270
      %v2465 = vpop.f32.mrf.mxu0
      %v2466 = vadd.f32 %v2221, %v2465
      %v2467 = vpop.f32.mrf.mxu0
      %2468 = vmatprep.mubr.f32.mxu0 0.0
      %2469 = vmatmul.mubr.f32.gmra.mxu0 %v2273
      %v2470 = vpop.f32.mrf.mxu0
      %v2471 = vadd.f32 %v2221, %v2470
      %v2472 = vpop.f32.mrf.mxu0
      %2473 = vmatprep.mubr.f32.mxu0 0.0
      %2474 = vmatmul.mubr.f32.gmra.mxu0 %v2276
      %v2475 = vpop.f32.mrf.mxu0
      %v2476 = vadd.f32 %v2221, %v2475
      %v2477 = vpop.f32.mrf.mxu0
      %2478 = vmatprep.mubr.f32.mxu0 0.0
      %2479 = vmatmul.mubr.f32.gmra.mxu0 %v2279
      %v2480 = vpop.f32.mrf.mxu0
      %v2481 = vadd.f32 %v2221, %v2480
      %v2482 = vpop.f32.mrf.mxu0
      %2483 = vmatprep.mubr.f32.mxu0 0.0
      %2484 = vmatmul.mubr.f32.gmra.mxu0 %v2282
      %v2485 = vpop.f32.mrf.mxu0
      %v2486 = vadd.f32 %v2221, %v2485
      %v2487 = vpop.f32.mrf.mxu0
      %2488 = vmatprep.mubr.f32.mxu0 0.0
      %2489 = vmatmul.mubr.f32.gmra.mxu0 %v2285
      %v2490 = vpop.f32.mrf.mxu0
      %v2491 = vadd.f32 %v2221, %v2490
      %v2492 = vpop.f32.mrf.mxu0
      %2493 = vmatprep.mubr.f32.mxu0 0.0
      %2494 = vmatmul.mubr.f32.gmra.mxu0 %v2288
      %v2495 = vpop.f32.mrf.mxu0
      %v2496 = vadd.f32 %v2221, %v2495
      %v2497 = vpop.f32.mrf.mxu0
      %2498 = vmatprep.mubr.f32.mxu0 0.0
      %2499 = vmatmul.mubr.f32.gmra.mxu0 %v2291
      %v2500 = vpop.f32.mrf.mxu0
      %v2501 = vadd.f32 %v2221, %v2500
      %v2502 = vpop.f32.mrf.mxu0
      %2503 = vmatprep.mubr.f32.mxu0 0.0
      %2504 = vmatmul.mubr.f32.gmra.mxu0 %v2294
      %v2505 = vpop.f32.mrf.mxu0
      %v2506 = vadd.f32 %v2221, %v2505
      %v2507 = vpop.f32.mrf.mxu0
      %2508 = vmatprep.mubr.f32.mxu0 0.0
      %2509 = vmatmul.mubr.f32.gmra.mxu0 %v2297
      %v2510 = vpop.f32.mrf.mxu0
      %v2511 = vadd.f32 %v2221, %v2510
      %v2512 = vpop.f32.mrf.mxu0
      %2513 = vmatprep.mubr.f32.mxu0 0.0
      %2514 = vmatmul.mubr.f32.gmra.mxu0 %v2300
      %v2515 = vpop.f32.mrf.mxu0
      %v2516 = vadd.f32 %v2221, %v2515
      %v2517 = vpop.f32.mrf.mxu0
      %2518 = vmatprep.mubr.f32.mxu0 0.0
      %2519 = vmatmul.mubr.f32.gmra.mxu0 %v2303
      %v2520 = vpop.f32.mrf.mxu0
      %v2521 = vadd.f32 %v2221, %v2520
      %v2522 = vpop.f32.mrf.mxu0
      %2523 = vmatprep.mubr.f32.mxu0 0.0
      %2524 = vmatmul.mubr.f32.gmra.mxu0 %v2306
      %v2525 = vpop.f32.mrf.mxu0
      %v2526 = vadd.f32 %v2221, %v2525
      %v2527 = vpop.f32.mrf.mxu0
      %2528 = vmatprep.mubr.f32.mxu0 0.0
      %2529 = vmatmul.mubr.f32.gmra.mxu0 %v2309
      %v2530 = vpop.f32.mrf.mxu0
      %v2531 = vadd.f32 %v2221, %v2530
      %v2532 = vpop.f32.mrf.mxu0
      %2533 = vmatprep.mubr.f32.mxu0 0.0
      %2534 = vmatmul.mubr.f32.gmra.mxu0 %v2312
      %v2535 = vpop.f32.mrf.mxu0
      %v2536 = vadd.f32 %v2221, %v2535
      %v2537 = vpop.f32.mrf.mxu0
      %2538 = vmatprep.mubr.f32.mxu0 0.0
      %2539 = vmatmul.mubr.f32.gmra.mxu0 %v2315
      %v2540 = vpop.f32.mrf.mxu0
      %v2541 = vadd.f32 %v2221, %v2540
      %v2542 = vpop.f32.mrf.mxu0
      %2543 = vmatprep.mubr.f32.mxu0 0.0
      %2544 = vmatmul.mubr.f32.gmra.mxu0 %v2318
      %v2545 = vpop.f32.mrf.mxu0
      %v2546 = vadd.f32 %v2221, %v2545
      %v2547 = vpop.f32.mrf.mxu0
      %2548 = vdwg.mxu0
      %v2549 = vmax.f32 %v2391, 0.0
      %v2550 = vmax.f32 %v2396, 0.0
      %v2551 = vmax.f32 %v2401, 0.0
      %v2552 = vmax.f32 %v2406, 0.0
      %v2553 = vmax.f32 %v2411, 0.0
      %v2554 = vmax.f32 %v2416, 0.0
      %v2555 = vmax.f32 %v2421, 0.0
      %v2556 = vmax.f32 %v2426, 0.0
      %v2557 = vmax.f32 %v2431, 0.0
      %v2558 = vmax.f32 %v2436, 0.0
      %v2559 = vmax.f32 %v2441, 0.0
      %v2560 = vmax.f32 %v2446, 0.0
      %v2561 = vmax.f32 %v2451, 0.0
      %v2562 = vmax.f32 %v2456, 0.0
      %v2563 = vmax.f32 %v2461, 0.0
      %v2564 = vmax.f32 %v2466, 0.0
      %v2565 = vmax.f32 %v2471, 0.0
      %v2566 = vmax.f32 %v2476, 0.0
      %v2567 = vmax.f32 %v2481, 0.0
      %v2568 = vmax.f32 %v2486, 0.0
      %v2569 = vmax.f32 %v2491, 0.0
      %v2570 = vmax.f32 %v2496, 0.0
      %v2571 = vmax.f32 %v2501, 0.0
      %v2572 = vmax.f32 %v2506, 0.0
      %v2573 = vmax.f32 %v2511, 0.0
      %v2574 = vmax.f32 %v2516, 0.0
      %v2575 = vmax.f32 %v2521, 0.0
      %v2576 = vmax.f32 %v2526, 0.0
      %v2577 = vmax.f32 %v2531, 0.0
      %v2578 = vmax.f32 %v2536, 0.0
      %v2579 = vmax.f32 %v2541, 0.0
      %v2580 = vmax.f32 %v2546, 0.0
      %s2581 = scalar_lea.vmem [#allocation3], 24
      %2582 = vst.msk [vmem:[%s2581 + $0x1] sm:$0xff] %vm345, %v2549
      %2583 = vst.msk [vmem:[%s2581 + $0x9] sm:$0xff] %vm345, %v2550
      %2584 = vst.msk [vmem:[%s2581 + $0x19] sm:$0xff] %vm345, %v2551
      %2585 = vst.msk [vmem:[%s2581 + $0x21] sm:$0xff] %vm345, %v2552
      %2586 = vst.msk [vmem:[%s2581 + $0x31] sm:$0xff] %vm345, %v2553
      %2587 = vst.msk [vmem:[%s2581 + $0x39] sm:$0xff] %vm345, %v2554
      %2588 = vst.msk [vmem:[%s2581 + $0x49] sm:$0xff] %vm345, %v2555
      %2589 = vst.msk [vmem:[%s2581 + $0x51] sm:$0xff] %vm345, %v2556
      %2590 = vst.msk [vmem:[%s2581 + $0x61] sm:$0xff] %vm345, %v2557
      %2591 = vst.msk [vmem:[%s2581 + $0x69] sm:$0xff] %vm345, %v2558
      %2592 = vst.msk [vmem:[%s2581 + $0x79] sm:$0xff] %vm345, %v2559
      %2593 = vst.msk [vmem:[%s2581 + $0x81] sm:$0xff] %vm345, %v2560
      %2594 = vst.msk [vmem:[%s2581 + $0x91] sm:$0xff] %vm345, %v2561
      %2595 = vst.msk [vmem:[%s2581 + $0x99] sm:$0xff] %vm345, %v2562
      %2596 = vst.msk [vmem:[%s2581 + $0xa9] sm:$0xff] %vm345, %v2563
      %2597 = vst.msk [vmem:[%s2581 + $0xb1] sm:$0xff] %vm345, %v2564
      %2598 = vst.msk [vmem:[%s2581 + $0xc1] sm:$0xff] %vm345, %v2565
      %2599 = vst.msk [vmem:[%s2581 + $0xc9] sm:$0xff] %vm345, %v2566
      %2600 = vst.msk [vmem:[%s2581 + $0xd9] sm:$0xff] %vm345, %v2567
      %2601 = vst.msk [vmem:[%s2581 + $0xe1] sm:$0xff] %vm345, %v2568
      %2602 = vst.msk [vmem:[%s2581 + $0xf1] sm:$0xff] %vm345, %v2569
      %2603 = vst.msk [vmem:[%s2581 + $0xf9] sm:$0xff] %vm345, %v2570
      %2604 = vst.msk [vmem:[%s2581 + $0x109] sm:$0xff] %vm345, %v2571
      %2605 = vst.msk [vmem:[%s2581 + $0x111] sm:$0xff] %vm345, %v2572
      %2606 = vst.msk [vmem:[%s2581 + $0x121] sm:$0xff] %vm345, %v2573
      %2607 = vst.msk [vmem:[%s2581 + $0x129] sm:$0xff] %vm345, %v2574
      %2608 = vst.msk [vmem:[%s2581 + $0x139] sm:$0xff] %vm345, %v2575
      %2609 = vst.msk [vmem:[%s2581 + $0x141] sm:$0xff] %vm345, %v2576
      %2610 = vst.msk [vmem:[%s2581 + $0x151] sm:$0xff] %vm345, %v2577
      %2611 = vst.msk [vmem:[%s2581 + $0x159] sm:$0xff] %vm345, %v2578
      %2612 = vst.msk [vmem:[%s2581 + $0x169] sm:$0xff] %vm345, %v2579
      %2613 = vst.msk [vmem:[%s2581 + $0x171] sm:$0xff] %vm345, %v2580
      %v2614 = vld [vmem:[#allocation3] sm:$0xff]
      %v2615 = vld [vmem:[#allocation3 + $0x8] sm:$0xff]
      %v2616 = vld [vmem:[#allocation3 + $0x10] sm:$0x3]
      %v2617 = vld [vmem:[#allocation3 + $0x18] sm:$0xff]
      %v2618 = vld [vmem:[#allocation3 + $0x20] sm:$0xff]
      %v2619 = vld [vmem:[#allocation3 + $0x28] sm:$0x3]
      %v2620 = vld [vmem:[#allocation3 + $0x30] sm:$0xff]
      %v2621 = vld [vmem:[#allocation3 + $0x38] sm:$0xff]
      %v2622 = vld [vmem:[#allocation3 + $0x40] sm:$0x3]
      %v2623 = vld [vmem:[#allocation3 + $0x48] sm:$0xff]
      %v2624 = vld [vmem:[#allocation3 + $0x50] sm:$0xff]
      %v2625 = vld [vmem:[#allocation3 + $0x58] sm:$0x3]
      %v2626 = vld [vmem:[#allocation3 + $0x60] sm:$0xff]
      %v2627 = vld [vmem:[#allocation3 + $0x68] sm:$0xff]
      %v2628 = vld [vmem:[#allocation3 + $0x70] sm:$0x3]
      %v2629 = vld [vmem:[#allocation3 + $0x78] sm:$0xff]
      %v2630 = vld [vmem:[#allocation3 + $0x80] sm:$0xff]
      %v2631 = vld [vmem:[#allocation3 + $0x88] sm:$0x3]
      %v2632 = vld [vmem:[#allocation3 + $0x90] sm:$0xff]
      %v2633 = vld [vmem:[#allocation3 + $0x98] sm:$0xff]
      %v2634 = vld [vmem:[#allocation3 + $0xa0] sm:$0x3]
      %v2635 = vld [vmem:[#allocation3 + $0xa8] sm:$0xff]
      %v2636 = vld [vmem:[#allocation3 + $0xb0] sm:$0xff]
      %v2637 = vld [vmem:[#allocation3 + $0xb8] sm:$0x3]
      %v2638 = vld [vmem:[#allocation3 + $0xc0] sm:$0xff]
      %v2639 = vld [vmem:[#allocation3 + $0xc8] sm:$0xff]
      %v2640 = vld [vmem:[#allocation3 + $0xd0] sm:$0x3]
      %v2641 = vld [vmem:[#allocation3 + $0xd8] sm:$0xff]
      %v2642 = vld [vmem:[#allocation3 + $0xe0] sm:$0xff]
      %v2643 = vld [vmem:[#allocation3 + $0xe8] sm:$0x3]
      %v2644 = vld [vmem:[#allocation3 + $0xf0] sm:$0xff]
      %v2645 = vld [vmem:[#allocation3 + $0xf8] sm:$0xff]
      %v2646 = vld [vmem:[#allocation3 + $0x100] sm:$0x3]
      %v2647 = vld [vmem:[#allocation3 + $0x108] sm:$0xff]
      %v2648 = vld [vmem:[#allocation3 + $0x110] sm:$0xff]
      %v2649 = vld [vmem:[#allocation3 + $0x118] sm:$0x3]
      %v2650 = vld [vmem:[#allocation3 + $0x120] sm:$0xff]
      %v2651 = vld [vmem:[#allocation3 + $0x128] sm:$0xff]
      %v2652 = vld [vmem:[#allocation3 + $0x130] sm:$0x3]
      %v2653 = vld [vmem:[#allocation3 + $0x138] sm:$0xff]
      %v2654 = vld [vmem:[#allocation3 + $0x140] sm:$0xff]
      %v2655 = vld [vmem:[#allocation3 + $0x148] sm:$0x3]
      %v2656 = vld [vmem:[#allocation3 + $0x150] sm:$0xff]
      %v2657 = vld [vmem:[#allocation3 + $0x158] sm:$0xff]
      %v2658 = vld [vmem:[#allocation3 + $0x160] sm:$0x3]
      %v2659 = vld [vmem:[#allocation3 + $0x168] sm:$0xff]
      %v2660 = vld [vmem:[#allocation3 + $0x170] sm:$0xff]
      %v2661 = vld [vmem:[#allocation3 + $0x178] sm:$0x3]
      %v2662 = vld [vmem:[#allocation3 + $0x180] sm:$0xff]
      %v2663 = vld [vmem:[#allocation3 + $0x188] sm:$0xff]
      %v2664 = vld [vmem:[#allocation3 + $0x190] sm:$0x3]
      %v2665 = vld [vmem:[#allocation3 + $0x198] sm:$0xff]
      %v2666 = vld [vmem:[#allocation3 + $0x1a0] sm:$0xff]
      %v2667 = vld [vmem:[#allocation3 + $0x1a8] sm:$0x3]
      %v2722 = vrot.slane %v2614, 1
      %v2723 = vrot.slane %v2615, 1
      %v2724 = vsel %vm1439, %v2722, %v2723
      %v2725 = vrot.slane %v2616, 1
      %v2726 = vsel %vm1439, %v2723, %v2725
      %v2727 = vrot.slane %v2617, 1
      %v2728 = vrot.slane %v2618, 1
      %v2729 = vsel %vm1439, %v2727, %v2728
      %v2730 = vrot.slane %v2619, 1
      %v2731 = vsel %vm1439, %v2728, %v2730
      %v2732 = vrot.slane %v2620, 1
      %v2733 = vrot.slane %v2621, 1
      %v2734 = vsel %vm1439, %v2732, %v2733
      %v2735 = vrot.slane %v2622, 1
      %v2736 = vsel %vm1439, %v2733, %v2735
      %v2737 = vrot.slane %v2623, 1
      %v2738 = vrot.slane %v2624, 1
      %v2739 = vsel %vm1439, %v2737, %v2738
      %v2740 = vrot.slane %v2625, 1
      %v2741 = vsel %vm1439, %v2738, %v2740
      %v2742 = vrot.slane %v2626, 1
      %v2743 = vrot.slane %v2627, 1
      %v2744 = vsel %vm1439, %v2742, %v2743
      %v2745 = vrot.slane %v2628, 1
      %v2746 = vsel %vm1439, %v2743, %v2745
      %v2747 = vrot.slane %v2629, 1
      %v2748 = vrot.slane %v2630, 1
      %v2749 = vsel %vm1439, %v2747, %v2748
      %v2750 = vrot.slane %v2631, 1
      %v2751 = vsel %vm1439, %v2748, %v2750
      %v2752 = vrot.slane %v2632, 1
      %v2753 = vrot.slane %v2633, 1
      %v2754 = vsel %vm1439, %v2752, %v2753
      %v2755 = vrot.slane %v2634, 1
      %v2756 = vsel %vm1439, %v2753, %v2755
      %v2757 = vrot.slane %v2635, 1
      %v2758 = vrot.slane %v2636, 1
      %v2759 = vsel %vm1439, %v2757, %v2758
      %v2760 = vrot.slane %v2637, 1
      %v2761 = vsel %vm1439, %v2758, %v2760
      %v2762 = vrot.slane %v2638, 1
      %v2763 = vrot.slane %v2639, 1
      %v2764 = vsel %vm1439, %v2762, %v2763
      %v2765 = vrot.slane %v2640, 1
      %v2766 = vsel %vm1439, %v2763, %v2765
      %v2767 = vrot.slane %v2641, 1
      %v2768 = vrot.slane %v2642, 1
      %v2769 = vsel %vm1439, %v2767, %v2768
      %v2770 = vrot.slane %v2643, 1
      %v2771 = vsel %vm1439, %v2768, %v2770
      %v2772 = vrot.slane %v2644, 1
      %v2773 = vrot.slane %v2645, 1
      %v2774 = vsel %vm1439, %v2772, %v2773
      %v2775 = vrot.slane %v2646, 1
      %v2776 = vsel %vm1439, %v2773, %v2775
      %v2777 = vrot.slane %v2647, 1
      %v2778 = vrot.slane %v2648, 1
      %v2779 = vsel %vm1439, %v2777, %v2778
      %v2780 = vrot.slane %v2649, 1
      %v2781 = vsel %vm1439, %v2778, %v2780
      %v2782 = vrot.slane %v2650, 1
      %v2783 = vrot.slane %v2651, 1
      %v2784 = vsel %vm1439, %v2782, %v2783
      %v2785 = vrot.slane %v2652, 1
      %v2786 = vsel %vm1439, %v2783, %v2785
      %v2787 = vrot.slane %v2653, 1
      %v2788 = vrot.slane %v2654, 1
      %v2789 = vsel %vm1439, %v2787, %v2788
      %v2790 = vrot.slane %v2655, 1
      %v2791 = vsel %vm1439, %v2788, %v2790
      %v2792 = vrot.slane %v2656, 1
      %v2793 = vrot.slane %v2657, 1
      %v2794 = vsel %vm1439, %v2792, %v2793
      %v2795 = vrot.slane %v2658, 1
      %v2796 = vsel %vm1439, %v2793, %v2795
      %v2797 = vrot.slane %v2659, 1
      %v2798 = vrot.slane %v2660, 1
      %v2799 = vsel %vm1439, %v2797, %v2798
      %v2800 = vrot.slane %v2661, 1
      %v2801 = vsel %vm1439, %v2798, %v2800
      %v2802 = vrot.slane %v2662, 1
      %v2803 = vrot.slane %v2663, 1
      %v2804 = vsel %vm1439, %v2802, %v2803
      %v2805 = vrot.slane %v2664, 1
      %v2806 = vsel %vm1439, %v2803, %v2805
      %v2807 = vrot.slane %v2665, 1
      %v2808 = vrot.slane %v2666, 1
      %v2809 = vsel %vm1439, %v2807, %v2808
      %v2810 = vrot.slane %v2667, 1
      %v2811 = vsel %vm1439, %v2808, %v2810
      %2812 = vrot.lane.b32.xlu0 %v2724, 8
      %v2813 = vpop.permute.xlu0 %2812
      %2814 = vrot.lane.b32.xlu0 %v2726, 8
      %v2815 = vpop.permute.xlu0 %2814
      %2816 = vrot.lane.b32.xlu0 %v2729, 8
      %v2817 = vpop.permute.xlu0 %2816
      %2818 = vrot.lane.b32.xlu0 %v2731, 8
      %v2819 = vpop.permute.xlu0 %2818
      %2820 = vrot.lane.b32.xlu0 %v2734, 8
      %v2821 = vpop.permute.xlu0 %2820
      %2822 = vrot.lane.b32.xlu0 %v2736, 8
      %v2823 = vpop.permute.xlu0 %2822
      %2824 = vrot.lane.b32.xlu0 %v2739, 8
      %v2825 = vpop.permute.xlu0 %2824
      %2826 = vrot.lane.b32.xlu0 %v2741, 8
      %v2827 = vpop.permute.xlu0 %2826
      %2828 = vrot.lane.b32.xlu0 %v2744, 8
      %v2829 = vpop.permute.xlu0 %2828
      %2830 = vrot.lane.b32.xlu0 %v2746, 8
      %v2831 = vpop.permute.xlu0 %2830
      %2832 = vrot.lane.b32.xlu0 %v2749, 8
      %v2833 = vpop.permute.xlu0 %2832
      %2834 = vrot.lane.b32.xlu0 %v2751, 8
      %v2835 = vpop.permute.xlu0 %2834
      %2836 = vrot.lane.b32.xlu0 %v2754, 8
      %v2837 = vpop.permute.xlu0 %2836
      %2838 = vrot.lane.b32.xlu0 %v2756, 8
      %v2839 = vpop.permute.xlu0 %2838
      %2840 = vrot.lane.b32.xlu0 %v2759, 8
      %v2841 = vpop.permute.xlu0 %2840
      %2842 = vrot.lane.b32.xlu0 %v2761, 8
      %v2843 = vpop.permute.xlu0 %2842
      %2844 = vrot.lane.b32.xlu0 %v2764, 8
      %v2845 = vpop.permute.xlu0 %2844
      %2846 = vrot.lane.b32.xlu0 %v2766, 8
      %v2847 = vpop.permute.xlu0 %2846
      %2848 = vrot.lane.b32.xlu0 %v2769, 8
      %v2849 = vpop.permute.xlu0 %2848
      %2850 = vrot.lane.b32.xlu0 %v2771, 8
      %v2851 = vpop.permute.xlu0 %2850
      %2852 = vrot.lane.b32.xlu0 %v2774, 8
      %v2853 = vpop.permute.xlu0 %2852
      %2854 = vrot.lane.b32.xlu0 %v2776, 8
      %v2855 = vpop.permute.xlu0 %2854
      %2856 = vrot.lane.b32.xlu0 %v2779, 8
      %v2857 = vpop.permute.xlu0 %2856
      %2858 = vrot.lane.b32.xlu0 %v2781, 8
      %v2859 = vpop.permute.xlu0 %2858
      %2860 = vrot.lane.b32.xlu0 %v2784, 8
      %v2861 = vpop.permute.xlu0 %2860
      %2862 = vrot.lane.b32.xlu0 %v2786, 8
      %v2863 = vpop.permute.xlu0 %2862
      %2864 = vrot.lane.b32.xlu0 %v2789, 8
      %v2865 = vpop.permute.xlu0 %2864
      %2866 = vrot.lane.b32.xlu0 %v2791, 8
      %v2867 = vpop.permute.xlu0 %2866
      %2868 = vrot.lane.b32.xlu0 %v2794, 8
      %v2869 = vpop.permute.xlu0 %2868
      %2870 = vrot.lane.b32.xlu0 %v2796, 8
      %v2871 = vpop.permute.xlu0 %2870
      %2872 = vrot.lane.b32.xlu0 %v2799, 8
      %v2873 = vpop.permute.xlu0 %2872
      %2874 = vrot.lane.b32.xlu0 %v2801, 8
      %v2875 = vpop.permute.xlu0 %2874
      %2876 = vrot.lane.b32.xlu0 %v2804, 8
      %v2877 = vpop.permute.xlu0 %2876
      %2878 = vrot.lane.b32.xlu0 %v2806, 8
      %v2879 = vpop.permute.xlu0 %2878
      %2880 = vrot.lane.b32.xlu0 %v2809, 8
      %v2881 = vpop.permute.xlu0 %2880
      %2882 = vrot.lane.b32.xlu0 %v2811, 8
      %v2883 = vpop.permute.xlu0 %2882
      %v2920 = vrot.slane %v2614, 2
      %v2921 = vrot.slane %v2615, 2
      %v2922 = vsel %vm1638, %v2920, %v2921
      %v2923 = vrot.slane %v2616, 2
      %v2924 = vsel %vm1638, %v2921, %v2923
      %v2925 = vrot.slane %v2617, 2
      %v2926 = vrot.slane %v2618, 2
      %v2927 = vsel %vm1638, %v2925, %v2926
      %v2928 = vrot.slane %v2619, 2
      %v2929 = vsel %vm1638, %v2926, %v2928
      %v2930 = vrot.slane %v2620, 2
      %v2931 = vrot.slane %v2621, 2
      %v2932 = vsel %vm1638, %v2930, %v2931
      %v2933 = vrot.slane %v2622, 2
      %v2934 = vsel %vm1638, %v2931, %v2933
      %v2935 = vrot.slane %v2623, 2
      %v2936 = vrot.slane %v2624, 2
      %v2937 = vsel %vm1638, %v2935, %v2936
      %v2938 = vrot.slane %v2625, 2
      %v2939 = vsel %vm1638, %v2936, %v2938
      %v2940 = vrot.slane %v2626, 2
      %v2941 = vrot.slane %v2627, 2
      %v2942 = vsel %vm1638, %v2940, %v2941
      %v2943 = vrot.slane %v2628, 2
      %v2944 = vsel %vm1638, %v2941, %v2943
      %v2945 = vrot.slane %v2629, 2
      %v2946 = vrot.slane %v2630, 2
      %v2947 = vsel %vm1638, %v2945, %v2946
      %v2948 = vrot.slane %v2631, 2
      %v2949 = vsel %vm1638, %v2946, %v2948
      %v2950 = vrot.slane %v2632, 2
      %v2951 = vrot.slane %v2633, 2
      %v2952 = vsel %vm1638, %v2950, %v2951
      %v2953 = vrot.slane %v2634, 2
      %v2954 = vsel %vm1638, %v2951, %v2953
      %v2955 = vrot.slane %v2635, 2
      %v2956 = vrot.slane %v2636, 2
      %v2957 = vsel %vm1638, %v2955, %v2956
      %v2958 = vrot.slane %v2637, 2
      %v2959 = vsel %vm1638, %v2956, %v2958
      %v2960 = vrot.slane %v2638, 2
      %v2961 = vrot.slane %v2639, 2
      %v2962 = vsel %vm1638, %v2960, %v2961
      %v2963 = vrot.slane %v2640, 2
      %v2964 = vsel %vm1638, %v2961, %v2963
      %v2965 = vrot.slane %v2641, 2
      %v2966 = vrot.slane %v2642, 2
      %v2967 = vsel %vm1638, %v2965, %v2966
      %v2968 = vrot.slane %v2643, 2
      %v2969 = vsel %vm1638, %v2966, %v2968
      %v2970 = vrot.slane %v2644, 2
      %v2971 = vrot.slane %v2645, 2
      %v2972 = vsel %vm1638, %v2970, %v2971
      %v2973 = vrot.slane %v2646, 2
      %v2974 = vsel %vm1638, %v2971, %v2973
      %v2975 = vrot.slane %v2647, 2
      %v2976 = vrot.slane %v2648, 2
      %v2977 = vsel %vm1638, %v2975, %v2976
      %v2978 = vrot.slane %v2649, 2
      %v2979 = vsel %vm1638, %v2976, %v2978
      %v2980 = vrot.slane %v2650, 2
      %v2981 = vrot.slane %v2651, 2
      %v2982 = vsel %vm1638, %v2980, %v2981
      %v2983 = vrot.slane %v2652, 2
      %v2984 = vsel %vm1638, %v2981, %v2983
      %v2985 = vrot.slane %v2653, 2
      %v2986 = vrot.slane %v2654, 2
      %v2987 = vsel %vm1638, %v2985, %v2986
      %v2988 = vrot.slane %v2655, 2
      %v2989 = vsel %vm1638, %v2986, %v2988
      %v2990 = vrot.slane %v2656, 2
      %v2991 = vrot.slane %v2657, 2
      %v2992 = vsel %vm1638, %v2990, %v2991
      %v2993 = vrot.slane %v2658, 2
      %v2994 = vsel %vm1638, %v2991, %v2993
      %v2995 = vrot.slane %v2659, 2
      %v2996 = vrot.slane %v2660, 2
      %v2997 = vsel %vm1638, %v2995, %v2996
      %v2998 = vrot.slane %v2661, 2
      %v2999 = vsel %vm1638, %v2996, %v2998
      %v3000 = vrot.slane %v2662, 2
      %v3001 = vrot.slane %v2663, 2
      %v3002 = vsel %vm1638, %v3000, %v3001
      %v3003 = vrot.slane %v2664, 2
      %v3004 = vsel %vm1638, %v3001, %v3003
      %v3005 = vrot.slane %v2665, 2
      %v3006 = vrot.slane %v2666, 2
      %v3007 = vsel %vm1638, %v3005, %v3006
      %v3008 = vrot.slane %v2667, 2
      %v3009 = vsel %vm1638, %v3006, %v3008
      %3010 = vrot.lane.b32.xlu0 %v2922, 16
      %v3011 = vpop.permute.xlu0 %3010
      %3012 = vrot.lane.b32.xlu0 %v2924, 16
      %v3013 = vpop.permute.xlu0 %3012
      %3014 = vrot.lane.b32.xlu0 %v2927, 16
      %v3015 = vpop.permute.xlu0 %3014
      %3016 = vrot.lane.b32.xlu0 %v2929, 16
      %v3017 = vpop.permute.xlu0 %3016
      %3018 = vrot.lane.b32.xlu0 %v2932, 16
      %v3019 = vpop.permute.xlu0 %3018
      %3020 = vrot.lane.b32.xlu0 %v2934, 16
      %v3021 = vpop.permute.xlu0 %3020
      %3022 = vrot.lane.b32.xlu0 %v2937, 16
      %v3023 = vpop.permute.xlu0 %3022
      %3024 = vrot.lane.b32.xlu0 %v2939, 16
      %v3025 = vpop.permute.xlu0 %3024
      %3026 = vrot.lane.b32.xlu0 %v2942, 16
      %v3027 = vpop.permute.xlu0 %3026
      %3028 = vrot.lane.b32.xlu0 %v2944, 16
      %v3029 = vpop.permute.xlu0 %3028
      %3030 = vrot.lane.b32.xlu0 %v2947, 16
      %v3031 = vpop.permute.xlu0 %3030
      %3032 = vrot.lane.b32.xlu0 %v2949, 16
      %v3033 = vpop.permute.xlu0 %3032
      %3034 = vrot.lane.b32.xlu0 %v2952, 16
      %v3035 = vpop.permute.xlu0 %3034
      %3036 = vrot.lane.b32.xlu0 %v2954, 16
      %v3037 = vpop.permute.xlu0 %3036
      %3038 = vrot.lane.b32.xlu0 %v2957, 16
      %v3039 = vpop.permute.xlu0 %3038
      %3040 = vrot.lane.b32.xlu0 %v2959, 16
      %v3041 = vpop.permute.xlu0 %3040
      %3042 = vrot.lane.b32.xlu0 %v2962, 16
      %v3043 = vpop.permute.xlu0 %3042
      %3044 = vrot.lane.b32.xlu0 %v2964, 16
      %v3045 = vpop.permute.xlu0 %3044
      %3046 = vrot.lane.b32.xlu0 %v2967, 16
      %v3047 = vpop.permute.xlu0 %3046
      %3048 = vrot.lane.b32.xlu0 %v2969, 16
      %v3049 = vpop.permute.xlu0 %3048
      %3050 = vrot.lane.b32.xlu0 %v2972, 16
      %v3051 = vpop.permute.xlu0 %3050
      %3052 = vrot.lane.b32.xlu0 %v2974, 16
      %v3053 = vpop.permute.xlu0 %3052
      %3054 = vrot.lane.b32.xlu0 %v2977, 16
      %v3055 = vpop.permute.xlu0 %3054
      %3056 = vrot.lane.b32.xlu0 %v2979, 16
      %v3057 = vpop.permute.xlu0 %3056
      %3058 = vrot.lane.b32.xlu0 %v2982, 16
      %v3059 = vpop.permute.xlu0 %3058
      %3060 = vrot.lane.b32.xlu0 %v2984, 16
      %v3061 = vpop.permute.xlu0 %3060
      %3062 = vrot.lane.b32.xlu0 %v2987, 16
      %v3063 = vpop.permute.xlu0 %3062
      %3064 = vrot.lane.b32.xlu0 %v2989, 16
      %v3065 = vpop.permute.xlu0 %3064
      %3066 = vrot.lane.b32.xlu0 %v2992, 16
      %v3067 = vpop.permute.xlu0 %3066
      %3068 = vrot.lane.b32.xlu0 %v2994, 16
      %v3069 = vpop.permute.xlu0 %3068
      %3070 = vrot.lane.b32.xlu0 %v2997, 16
      %v3071 = vpop.permute.xlu0 %3070
      %3072 = vrot.lane.b32.xlu0 %v2999, 16
      %v3073 = vpop.permute.xlu0 %3072
      %3074 = vrot.lane.b32.xlu0 %v3002, 16
      %v3075 = vpop.permute.xlu0 %3074
      %3076 = vrot.lane.b32.xlu0 %v3004, 16
      %v3077 = vpop.permute.xlu0 %3076
      %3078 = vrot.lane.b32.xlu0 %v3007, 16
      %v3079 = vpop.permute.xlu0 %3078
      %3080 = vrot.lane.b32.xlu0 %v3009, 16
      %v3081 = vpop.permute.xlu0 %3080
      %v3118 = vsel %vm345, %v2614, %v2813
      %v3119 = vsel %vm345, %v2615, %v2815
      %v3120 = vsel %vm345, %v2617, %v2817
      %v3121 = vsel %vm345, %v2618, %v2819
      %v3122 = vsel %vm345, %v2620, %v2821
      %v3123 = vsel %vm345, %v2621, %v2823
      %v3124 = vsel %vm345, %v2623, %v2825
      %v3125 = vsel %vm345, %v2624, %v2827
      %v3126 = vsel %vm345, %v2626, %v2829
      %v3127 = vsel %vm345, %v2627, %v2831
      %v3128 = vsel %vm345, %v2629, %v2833
      %v3129 = vsel %vm345, %v2630, %v2835
      %v3130 = vsel %vm345, %v2632, %v2837
      %v3131 = vsel %vm345, %v2633, %v2839
      %v3132 = vsel %vm345, %v2635, %v2841
      %v3133 = vsel %vm345, %v2636, %v2843
      %v3134 = vsel %vm345, %v2638, %v2845
      %v3135 = vsel %vm345, %v2639, %v2847
      %v3136 = vsel %vm345, %v2641, %v2849
      %v3137 = vsel %vm345, %v2642, %v2851
      %v3138 = vsel %vm345, %v2644, %v2853
      %v3139 = vsel %vm345, %v2645, %v2855
      %v3140 = vsel %vm345, %v2647, %v2857
      %v3141 = vsel %vm345, %v2648, %v2859
      %v3142 = vsel %vm345, %v2650, %v2861
      %v3143 = vsel %vm345, %v2651, %v2863
      %v3144 = vsel %vm345, %v2653, %v2865
      %v3145 = vsel %vm345, %v2654, %v2867
      %v3146 = vsel %vm345, %v2656, %v2869
      %v3147 = vsel %vm345, %v2657, %v2871
      %v3148 = vsel %vm345, %v2659, %v2873
      %v3149 = vsel %vm345, %v2660, %v2875
      %v3150 = vsel %vm345, %v2662, %v2877
      %v3151 = vsel %vm345, %v2663, %v2879
      %v3152 = vsel %vm345, %v2665, %v2881
      %v3153 = vsel %vm345, %v2666, %v2883
      %vm3154 = vcmask 130048
      %v3155 = vsel %vm3154, %v3118, %v3011
      %v3156 = vsel %vm3154, %v3119, %v3013
      %v3157 = vsel %vm3154, %v3120, %v3015
      %v3158 = vsel %vm3154, %v3121, %v3017
      %v3159 = vsel %vm3154, %v3122, %v3019
      %v3160 = vsel %vm3154, %v3123, %v3021
      %v3161 = vsel %vm3154, %v3124, %v3023
      %v3162 = vsel %vm3154, %v3125, %v3025
      %v3163 = vsel %vm3154, %v3126, %v3027
      %v3164 = vsel %vm3154, %v3127, %v3029
      %v3165 = vsel %vm3154, %v3128, %v3031
      %v3166 = vsel %vm3154, %v3129, %v3033
      %v3167 = vsel %vm3154, %v3130, %v3035
      %v3168 = vsel %vm3154, %v3131, %v3037
      %v3169 = vsel %vm3154, %v3132, %v3039
      %v3170 = vsel %vm3154, %v3133, %v3041
      %v3171 = vsel %vm3154, %v3134, %v3043
      %v3172 = vsel %vm3154, %v3135, %v3045
      %v3173 = vsel %vm3154, %v3136, %v3047
      %v3174 = vsel %vm3154, %v3137, %v3049
      %v3175 = vsel %vm3154, %v3138, %v3051
      %v3176 = vsel %vm3154, %v3139, %v3053
      %v3177 = vsel %vm3154, %v3140, %v3055
      %v3178 = vsel %vm3154, %v3141, %v3057
      %v3179 = vsel %vm3154, %v3142, %v3059
      %v3180 = vsel %vm3154, %v3143, %v3061
      %v3181 = vsel %vm3154, %v3144, %v3063
      %v3182 = vsel %vm3154, %v3145, %v3065
      %v3183 = vsel %vm3154, %v3146, %v3067
      %v3184 = vsel %vm3154, %v3147, %v3069
      %v3185 = vsel %vm3154, %v3148, %v3071
      %v3186 = vsel %vm3154, %v3149, %v3073
      %v3187 = vsel %vm3154, %v3150, %v3075
      %v3188 = vsel %vm3154, %v3151, %v3077
      %v3189 = vsel %vm3154, %v3152, %v3079
      %v3190 = vsel %vm3154, %v3153, %v3081
      %3223 = vrot.lane.b32.xlu0 %v3157, 24
      %v3224 = vpop.permute.xlu0 %3223
      %3225 = vrot.lane.b32.xlu0 %v3158, 24
      %v3226 = vpop.permute.xlu0 %3225
      %3227 = vrot.lane.b32.xlu0 %v3159, 24
      %v3228 = vpop.permute.xlu0 %3227
      %3229 = vrot.lane.b32.xlu0 %v3160, 24
      %v3230 = vpop.permute.xlu0 %3229
      %3231 = vrot.lane.b32.xlu0 %v3161, 24
      %v3232 = vpop.permute.xlu0 %3231
      %3233 = vrot.lane.b32.xlu0 %v3162, 24
      %v3234 = vpop.permute.xlu0 %3233
      %3235 = vrot.lane.b32.xlu0 %v3163, 24
      %v3236 = vpop.permute.xlu0 %3235
      %3237 = vrot.lane.b32.xlu0 %v3164, 24
      %v3238 = vpop.permute.xlu0 %3237
      %3239 = vrot.lane.b32.xlu0 %v3165, 24
      %v3240 = vpop.permute.xlu0 %3239
      %3241 = vrot.lane.b32.xlu0 %v3166, 24
      %v3242 = vpop.permute.xlu0 %3241
      %3243 = vrot.lane.b32.xlu0 %v3167, 24
      %v3244 = vpop.permute.xlu0 %3243
      %3245 = vrot.lane.b32.xlu0 %v3168, 24
      %v3246 = vpop.permute.xlu0 %3245
      %3247 = vrot.lane.b32.xlu0 %v3169, 24
      %v3248 = vpop.permute.xlu0 %3247
      %3249 = vrot.lane.b32.xlu0 %v3170, 24
      %v3250 = vpop.permute.xlu0 %3249
      %3251 = vrot.lane.b32.xlu0 %v3171, 24
      %v3252 = vpop.permute.xlu0 %3251
      %3253 = vrot.lane.b32.xlu0 %v3172, 24
      %v3254 = vpop.permute.xlu0 %3253
      %3255 = vrot.lane.b32.xlu0 %v3173, 24
      %v3256 = vpop.permute.xlu0 %3255
      %3257 = vrot.lane.b32.xlu0 %v3174, 24
      %v3258 = vpop.permute.xlu0 %3257
      %3259 = vrot.lane.b32.xlu0 %v3175, 24
      %v3260 = vpop.permute.xlu0 %3259
      %3261 = vrot.lane.b32.xlu0 %v3176, 24
      %v3262 = vpop.permute.xlu0 %3261
      %3263 = vrot.lane.b32.xlu0 %v3177, 24
      %v3264 = vpop.permute.xlu0 %3263
      %3265 = vrot.lane.b32.xlu0 %v3178, 24
      %v3266 = vpop.permute.xlu0 %3265
      %3267 = vrot.lane.b32.xlu0 %v3179, 24
      %v3268 = vpop.permute.xlu0 %3267
      %3269 = vrot.lane.b32.xlu0 %v3180, 24
      %v3270 = vpop.permute.xlu0 %3269
      %3271 = vrot.lane.b32.xlu0 %v3181, 24
      %v3272 = vpop.permute.xlu0 %3271
      %3273 = vrot.lane.b32.xlu0 %v3182, 24
      %v3274 = vpop.permute.xlu0 %3273
      %3275 = vrot.lane.b32.xlu0 %v3183, 24
      %v3276 = vpop.permute.xlu0 %3275
      %3277 = vrot.lane.b32.xlu0 %v3184, 24
      %v3278 = vpop.permute.xlu0 %3277
      %3279 = vrot.lane.b32.xlu0 %v3185, 24
      %v3280 = vpop.permute.xlu0 %3279
      %3281 = vrot.lane.b32.xlu0 %v3186, 24
      %v3282 = vpop.permute.xlu0 %3281
      %3283 = vrot.lane.b32.xlu0 %v3187, 24
      %v3284 = vpop.permute.xlu0 %3283
      %3285 = vrot.lane.b32.xlu0 %v3188, 24
      %v3286 = vpop.permute.xlu0 %3285
      %3321 = vrot.lane.b32.xlu0 %v3159, 48
      %v3322 = vpop.permute.xlu0 %3321
      %3323 = vrot.lane.b32.xlu0 %v3160, 48
      %v3324 = vpop.permute.xlu0 %3323
      %3325 = vrot.lane.b32.xlu0 %v3161, 48
      %v3326 = vpop.permute.xlu0 %3325
      %3327 = vrot.lane.b32.xlu0 %v3162, 48
      %v3328 = vpop.permute.xlu0 %3327
      %3329 = vrot.lane.b32.xlu0 %v3163, 48
      %v3330 = vpop.permute.xlu0 %3329
      %3331 = vrot.lane.b32.xlu0 %v3164, 48
      %v3332 = vpop.permute.xlu0 %3331
      %3333 = vrot.lane.b32.xlu0 %v3165, 48
      %v3334 = vpop.permute.xlu0 %3333
      %3335 = vrot.lane.b32.xlu0 %v3166, 48
      %v3336 = vpop.permute.xlu0 %3335
      %3337 = vrot.lane.b32.xlu0 %v3167, 48
      %v3338 = vpop.permute.xlu0 %3337
      %3339 = vrot.lane.b32.xlu0 %v3168, 48
      %v3340 = vpop.permute.xlu0 %3339
      %3341 = vrot.lane.b32.xlu0 %v3169, 48
      %v3342 = vpop.permute.xlu0 %3341
      %3343 = vrot.lane.b32.xlu0 %v3170, 48
      %v3344 = vpop.permute.xlu0 %3343
      %3345 = vrot.lane.b32.xlu0 %v3171, 48
      %v3346 = vpop.permute.xlu0 %3345
      %3347 = vrot.lane.b32.xlu0 %v3172, 48
      %v3348 = vpop.permute.xlu0 %3347
      %3349 = vrot.lane.b32.xlu0 %v3173, 48
      %v3350 = vpop.permute.xlu0 %3349
      %3351 = vrot.lane.b32.xlu0 %v3174, 48
      %v3352 = vpop.permute.xlu0 %3351
      %3353 = vrot.lane.b32.xlu0 %v3175, 48
      %v3354 = vpop.permute.xlu0 %3353
      %3355 = vrot.lane.b32.xlu0 %v3176, 48
      %v3356 = vpop.permute.xlu0 %3355
      %3357 = vrot.lane.b32.xlu0 %v3177, 48
      %v3358 = vpop.permute.xlu0 %3357
      %3359 = vrot.lane.b32.xlu0 %v3178, 48
      %v3360 = vpop.permute.xlu0 %3359
      %3361 = vrot.lane.b32.xlu0 %v3179, 48
      %v3362 = vpop.permute.xlu0 %3361
      %3363 = vrot.lane.b32.xlu0 %v3180, 48
      %v3364 = vpop.permute.xlu0 %3363
      %3365 = vrot.lane.b32.xlu0 %v3181, 48
      %v3366 = vpop.permute.xlu0 %3365
      %3367 = vrot.lane.b32.xlu0 %v3182, 48
      %v3368 = vpop.permute.xlu0 %3367
      %3369 = vrot.lane.b32.xlu0 %v3183, 48
      %v3370 = vpop.permute.xlu0 %3369
      %3371 = vrot.lane.b32.xlu0 %v3184, 48
      %v3372 = vpop.permute.xlu0 %3371
      %3373 = vrot.lane.b32.xlu0 %v3185, 48
      %v3374 = vpop.permute.xlu0 %3373
      %3375 = vrot.lane.b32.xlu0 %v3186, 48
      %v3376 = vpop.permute.xlu0 %3375
      %3377 = vrot.lane.b32.xlu0 %v3187, 48
      %v3378 = vpop.permute.xlu0 %3377
      %3379 = vrot.lane.b32.xlu0 %v3188, 48
      %v3380 = vpop.permute.xlu0 %3379
      %3381 = vrot.lane.b32.xlu0 %v3189, 48
      %v3382 = vpop.permute.xlu0 %3381
      %3383 = vrot.lane.b32.xlu0 %v3190, 48
      %v3384 = vpop.permute.xlu0 %3383
      %v3417 = vsel %vm1873, %v3155, %v3224
      %v3418 = vsel %vm1873, %v3156, %v3226
      %v3419 = vsel %vm1873, %v3157, %v3228
      %v3420 = vsel %vm1873, %v3158, %v3230
      %v3421 = vsel %vm1873, %v3159, %v3232
      %v3422 = vsel %vm1873, %v3160, %v3234
      %v3423 = vsel %vm1873, %v3161, %v3236
      %v3424 = vsel %vm1873, %v3162, %v3238
      %v3425 = vsel %vm1873, %v3163, %v3240
      %v3426 = vsel %vm1873, %v3164, %v3242
      %v3427 = vsel %vm1873, %v3165, %v3244
      %v3428 = vsel %vm1873, %v3166, %v3246
      %v3429 = vsel %vm1873, %v3167, %v3248
      %v3430 = vsel %vm1873, %v3168, %v3250
      %v3431 = vsel %vm1873, %v3169, %v3252
      %v3432 = vsel %vm1873, %v3170, %v3254
      %v3433 = vsel %vm1873, %v3171, %v3256
      %v3434 = vsel %vm1873, %v3172, %v3258
      %v3435 = vsel %vm1873, %v3173, %v3260
      %v3436 = vsel %vm1873, %v3174, %v3262
      %v3437 = vsel %vm1873, %v3175, %v3264
      %v3438 = vsel %vm1873, %v3176, %v3266
      %v3439 = vsel %vm1873, %v3177, %v3268
      %v3440 = vsel %vm1873, %v3178, %v3270
      %v3441 = vsel %vm1873, %v3179, %v3272
      %v3442 = vsel %vm1873, %v3180, %v3274
      %v3443 = vsel %vm1873, %v3181, %v3276
      %v3444 = vsel %vm1873, %v3182, %v3278
      %v3445 = vsel %vm1873, %v3183, %v3280
      %v3446 = vsel %vm1873, %v3184, %v3282
      %v3447 = vsel %vm1873, %v3185, %v3284
      %v3448 = vsel %vm1873, %v3186, %v3286
      %vm3449 = vcmask 392192
      %v3450 = vsel %vm3449, %v3417, %v3322
      %v3451 = vsel %vm3449, %v3418, %v3324
      %v3452 = vsel %vm3449, %v3419, %v3326
      %v3453 = vsel %vm3449, %v3420, %v3328
      %v3454 = vsel %vm3449, %v3421, %v3330
      %v3455 = vsel %vm3449, %v3422, %v3332
      %v3456 = vsel %vm3449, %v3423, %v3334
      %v3457 = vsel %vm3449, %v3424, %v3336
      %v3458 = vsel %vm3449, %v3425, %v3338
      %v3459 = vsel %vm3449, %v3426, %v3340
      %v3460 = vsel %vm3449, %v3427, %v3342
      %v3461 = vsel %vm3449, %v3428, %v3344
      %v3462 = vsel %vm3449, %v3429, %v3346
      %v3463 = vsel %vm3449, %v3430, %v3348
      %v3464 = vsel %vm3449, %v3431, %v3350
      %v3465 = vsel %vm3449, %v3432, %v3352
      %v3466 = vsel %vm3449, %v3433, %v3354
      %v3467 = vsel %vm3449, %v3434, %v3356
      %v3468 = vsel %vm3449, %v3435, %v3358
      %v3469 = vsel %vm3449, %v3436, %v3360
      %v3470 = vsel %vm3449, %v3437, %v3362
      %v3471 = vsel %vm3449, %v3438, %v3364
      %v3472 = vsel %vm3449, %v3439, %v3366
      %v3473 = vsel %vm3449, %v3440, %v3368
      %v3474 = vsel %vm3449, %v3441, %v3370
      %v3475 = vsel %vm3449, %v3442, %v3372
      %v3476 = vsel %vm3449, %v3443, %v3374
      %v3477 = vsel %vm3449, %v3444, %v3376
      %v3478 = vsel %vm3449, %v3445, %v3378
      %v3479 = vsel %vm3449, %v3446, %v3380
      %v3480 = vsel %vm3449, %v3447, %v3382
      %v3481 = vsel %vm3449, %v3448, %v3384
      %v3482 = vld [vmem:[%s5] sm:$0xff]
      %v3483 = vld [vmem:[%s5 + $0x8] sm:$0xff]
      %v3484 = vld [vmem:[%s5 + $0x10] sm:$0xff]
      %v3485 = vld [vmem:[%s5 + $0x18] sm:$0xff]
      %v3486 = vld [vmem:[%s5 + $0x20] sm:$0xff]
      %v3487 = vld [vmem:[%s5 + $0x28] sm:$0xff]
      %v3488 = vld [vmem:[%s5 + $0x30] sm:$0xff]
      %v3489 = vld [vmem:[%s5 + $0x38] sm:$0xff]
      %v3490 = vld [vmem:[%s5 + $0x40] sm:$0xff]
      %v3491 = vld [vmem:[%s6] sm:$0x1]
      %v3493 = vlaneseq
      %v3494 = vshrl.u32 %v3493, 7
      %v3495 = vsub.s32 0, %v3494
      %v3496 = vrot.slane %v3491, %v3495
      %v3499 = vsel %vm2169, %v3450, 0
      %v3502 = vsel %vm2169, %v3451, 0
      %v3505 = vsel %vm2169, %v3452, 0
      %v3508 = vsel %vm2169, %v3453, 0
      %v3511 = vsel %vm2169, %v3454, 0
      %v3514 = vsel %vm2169, %v3455, 0
      %v3517 = vsel %vm2169, %v3456, 0
      %v3520 = vsel %vm2169, %v3457, 0
      %v3523 = vsel %vm2169, %v3458, 0
      %v3526 = vsel %vm2169, %v3459, 0
      %v3529 = vsel %vm2169, %v3460, 0
      %v3532 = vsel %vm2169, %v3461, 0
      %v3535 = vsel %vm2169, %v3462, 0
      %v3538 = vsel %vm2169, %v3463, 0
      %v3541 = vsel %vm2169, %v3464, 0
      %v3544 = vsel %vm2169, %v3465, 0
      %v3547 = vsel %vm2169, %v3466, 0
      %v3550 = vsel %vm2169, %v3467, 0
      %v3553 = vsel %vm2169, %v3468, 0
      %v3556 = vsel %vm2169, %v3469, 0
      %v3559 = vsel %vm2169, %v3470, 0
      %v3562 = vsel %vm2169, %v3471, 0
      %v3565 = vsel %vm2169, %v3472, 0
      %v3568 = vsel %vm2169, %v3473, 0
      %v3571 = vsel %vm2169, %v3474, 0
      %v3574 = vsel %vm2169, %v3475, 0
      %v3577 = vsel %vm2169, %v3476, 0
      %v3580 = vsel %vm2169, %v3477, 0
      %v3583 = vsel %vm2169, %v3478, 0
      %v3586 = vsel %vm2169, %v3479, 0
      %v3589 = vsel %vm2169, %v3480, 0
      %v3592 = vsel %vm2169, %v3481, 0
      %3594 = vmatprep.subr.mxu0 0.0
      %3595 = vmatpush1.msra.mxu0 0.0
      %3596 = vmatprep.subr.mxu0 0.0
      %3597 = vmatpush1.msra.mxu0 0.0
      %3598 = vmatprep.subr.mxu0 0.0
      %3599 = vmatpush1.msra.mxu0 0.0
      %3600 = vmatprep.subr.mxu0 0.0
      %3601 = vmatpush1.msra.mxu0 0.0
      %3602 = vmatprep.subr.mxu0 0.0
      %3603 = vmatpush1.msra.mxu0 0.0
      %3604 = vmatprep.subr.mxu0 0.0
      %3605 = vmatpush1.msra.mxu0 0.0
      %3606 = vmatprep.subr.mxu0 0.0
      %3607 = vmatpush1.msra.mxu0 0.0
      %3608 = vmatprep.subr.mxu0 0.0
      %3609 = vmatpush1.msra.mxu0 %v3490
      %3610 = vmatprep.subr.mxu0 0.0
      %3611 = vmatpush1.msra.mxu0 %v3489
      %3612 = vmatprep.subr.mxu0 0.0
      %3613 = vmatpush1.msra.mxu0 %v3488
      %3614 = vmatprep.subr.mxu0 0.0
      %3615 = vmatpush1.msra.mxu0 %v3487
      %3616 = vmatprep.subr.mxu0 0.0
      %3617 = vmatpush1.msra.mxu0 %v3486
      %3618 = vmatprep.subr.mxu0 0.0
      %3619 = vmatpush1.msra.mxu0 %v3485
      %3620 = vmatprep.subr.mxu0 0.0
      %3621 = vmatpush1.msra.mxu0 %v3484
      %3622 = vmatprep.subr.mxu0 0.0
      %3623 = vmatpush1.msra.mxu0 %v3483
      %3624 = vmatprep.subr.mxu0 0.0
      %3625 = vmatpush1.msra.mxu0 %v3482
      %3626 = vmatprep.subr.mxu0 0.0
      %3627 = vmatpush2.msra.mxu0 0.0
      %3628 = vmatprep.subr.mxu0 0.0
      %3629 = vmatpush2.msra.mxu0 0.0
      %3630 = vmatprep.subr.mxu0 0.0
      %3631 = vmatpush2.msra.mxu0 0.0
      %3632 = vmatprep.subr.mxu0 0.0
      %3633 = vmatpush2.msra.mxu0 0.0
      %3634 = vmatprep.subr.mxu0 0.0
      %3635 = vmatpush2.msra.mxu0 0.0
      %3636 = vmatprep.subr.mxu0 0.0
      %3637 = vmatpush2.msra.mxu0 0.0
      %3638 = vmatprep.subr.mxu0 0.0
      %3639 = vmatpush2.msra.mxu0 0.0
      %3640 = vmatprep.subr.mxu0 0.0
      %3641 = vmatpush2.msra.mxu0 0.0
      %3642 = vmatprep.subr.mxu0 0.0
      %3643 = vmatpush2.msra.mxu0 0.0
      %3644 = vmatprep.subr.mxu0 0.0
      %3645 = vmatpush2.msra.mxu0 0.0
      %3646 = vmatprep.subr.mxu0 0.0
      %3647 = vmatpush2.msra.mxu0 0.0
      %3648 = vmatprep.subr.mxu0 0.0
      %3649 = vmatpush2.msra.mxu0 0.0
      %3650 = vmatprep.subr.mxu0 0.0
      %3651 = vmatpush2.msra.mxu0 0.0
      %3652 = vmatprep.subr.mxu0 0.0
      %3653 = vmatpush2.msra.mxu0 0.0
      %3654 = vmatprep.subr.mxu0 0.0
      %3655 = vmatpush2.msra.mxu0 0.0
      %3656 = vmatprep.subr.mxu0 0.0
      %3657 = vmatpush2.msra.mxu0 0.0
      %3658 = vmatprep.mubr.f32.mxu0 0.0
      %3659 = vmatmul.mubr.f32.gmra.mxu0 %v3499
      %v3660 = vpop.f32.mrf.mxu0
      %v3661 = vadd.f32 %v3496, %v3660
      %v3662 = vpop.f32.mrf.mxu0
      %3663 = vmatprep.mubr.f32.mxu0 0.0
      %3664 = vmatmul.mubr.f32.gmra.mxu0 %v3502
      %v3665 = vpop.f32.mrf.mxu0
      %v3666 = vadd.f32 %v3496, %v3665
      %v3667 = vpop.f32.mrf.mxu0
      %3668 = vmatprep.mubr.f32.mxu0 0.0
      %3669 = vmatmul.mubr.f32.gmra.mxu0 %v3505
      %v3670 = vpop.f32.mrf.mxu0
      %v3671 = vadd.f32 %v3496, %v3670
      %v3672 = vpop.f32.mrf.mxu0
      %3673 = vmatprep.mubr.f32.mxu0 0.0
      %3674 = vmatmul.mubr.f32.gmra.mxu0 %v3508
      %v3675 = vpop.f32.mrf.mxu0
      %v3676 = vadd.f32 %v3496, %v3675
      %v3677 = vpop.f32.mrf.mxu0
      %3678 = vmatprep.mubr.f32.mxu0 0.0
      %3679 = vmatmul.mubr.f32.gmra.mxu0 %v3511
      %v3680 = vpop.f32.mrf.mxu0
      %v3681 = vadd.f32 %v3496, %v3680
      %v3682 = vpop.f32.mrf.mxu0
      %3683 = vmatprep.mubr.f32.mxu0 0.0
      %3684 = vmatmul.mubr.f32.gmra.mxu0 %v3514
      %v3685 = vpop.f32.mrf.mxu0
      %v3686 = vadd.f32 %v3496, %v3685
      %v3687 = vpop.f32.mrf.mxu0
      %3688 = vmatprep.mubr.f32.mxu0 0.0
      %3689 = vmatmul.mubr.f32.gmra.mxu0 %v3517
      %v3690 = vpop.f32.mrf.mxu0
      %v3691 = vadd.f32 %v3496, %v3690
      %v3692 = vpop.f32.mrf.mxu0
      %3693 = vmatprep.mubr.f32.mxu0 0.0
      %3694 = vmatmul.mubr.f32.gmra.mxu0 %v3520
      %v3695 = vpop.f32.mrf.mxu0
      %v3696 = vadd.f32 %v3496, %v3695
      %v3697 = vpop.f32.mrf.mxu0
      %3698 = vmatprep.mubr.f32.mxu0 0.0
      %3699 = vmatmul.mubr.f32.gmra.mxu0 %v3523
      %v3700 = vpop.f32.mrf.mxu0
      %v3701 = vadd.f32 %v3496, %v3700
      %v3702 = vpop.f32.mrf.mxu0
      %3703 = vmatprep.mubr.f32.mxu0 0.0
      %3704 = vmatmul.mubr.f32.gmra.mxu0 %v3526
      %v3705 = vpop.f32.mrf.mxu0
      %v3706 = vadd.f32 %v3496, %v3705
      %v3707 = vpop.f32.mrf.mxu0
      %3708 = vmatprep.mubr.f32.mxu0 0.0
      %3709 = vmatmul.mubr.f32.gmra.mxu0 %v3529
      %v3710 = vpop.f32.mrf.mxu0
      %v3711 = vadd.f32 %v3496, %v3710
      %v3712 = vpop.f32.mrf.mxu0
      %3713 = vmatprep.mubr.f32.mxu0 0.0
      %3714 = vmatmul.mubr.f32.gmra.mxu0 %v3532
      %v3715 = vpop.f32.mrf.mxu0
      %v3716 = vadd.f32 %v3496, %v3715
      %v3717 = vpop.f32.mrf.mxu0
      %3718 = vmatprep.mubr.f32.mxu0 0.0
      %3719 = vmatmul.mubr.f32.gmra.mxu0 %v3535
      %v3720 = vpop.f32.mrf.mxu0
      %v3721 = vadd.f32 %v3496, %v3720
      %v3722 = vpop.f32.mrf.mxu0
      %3723 = vmatprep.mubr.f32.mxu0 0.0
      %3724 = vmatmul.mubr.f32.gmra.mxu0 %v3538
      %v3725 = vpop.f32.mrf.mxu0
      %v3726 = vadd.f32 %v3496, %v3725
      %v3727 = vpop.f32.mrf.mxu0
      %3728 = vmatprep.mubr.f32.mxu0 0.0
      %3729 = vmatmul.mubr.f32.gmra.mxu0 %v3541
      %v3730 = vpop.f32.mrf.mxu0
      %v3731 = vadd.f32 %v3496, %v3730
      %v3732 = vpop.f32.mrf.mxu0
      %3733 = vmatprep.mubr.f32.mxu0 0.0
      %3734 = vmatmul.mubr.f32.gmra.mxu0 %v3544
      %v3735 = vpop.f32.mrf.mxu0
      %v3736 = vadd.f32 %v3496, %v3735
      %v3737 = vpop.f32.mrf.mxu0
      %3738 = vmatprep.mubr.f32.mxu0 0.0
      %3739 = vmatmul.mubr.f32.gmra.mxu0 %v3547
      %v3740 = vpop.f32.mrf.mxu0
      %v3741 = vadd.f32 %v3496, %v3740
      %v3742 = vpop.f32.mrf.mxu0
      %3743 = vmatprep.mubr.f32.mxu0 0.0
      %3744 = vmatmul.mubr.f32.gmra.mxu0 %v3550
      %v3745 = vpop.f32.mrf.mxu0
      %v3746 = vadd.f32 %v3496, %v3745
      %v3747 = vpop.f32.mrf.mxu0
      %3748 = vmatprep.mubr.f32.mxu0 0.0
      %3749 = vmatmul.mubr.f32.gmra.mxu0 %v3553
      %v3750 = vpop.f32.mrf.mxu0
      %v3751 = vadd.f32 %v3496, %v3750
      %v3752 = vpop.f32.mrf.mxu0
      %3753 = vmatprep.mubr.f32.mxu0 0.0
      %3754 = vmatmul.mubr.f32.gmra.mxu0 %v3556
      %v3755 = vpop.f32.mrf.mxu0
      %v3756 = vadd.f32 %v3496, %v3755
      %v3757 = vpop.f32.mrf.mxu0
      %3758 = vmatprep.mubr.f32.mxu0 0.0
      %3759 = vmatmul.mubr.f32.gmra.mxu0 %v3559
      %v3760 = vpop.f32.mrf.mxu0
      %v3761 = vadd.f32 %v3496, %v3760
      %v3762 = vpop.f32.mrf.mxu0
      %3763 = vmatprep.mubr.f32.mxu0 0.0
      %3764 = vmatmul.mubr.f32.gmra.mxu0 %v3562
      %v3765 = vpop.f32.mrf.mxu0
      %v3766 = vadd.f32 %v3496, %v3765
      %v3767 = vpop.f32.mrf.mxu0
      %3768 = vmatprep.mubr.f32.mxu0 0.0
      %3769 = vmatmul.mubr.f32.gmra.mxu0 %v3565
      %v3770 = vpop.f32.mrf.mxu0
      %v3771 = vadd.f32 %v3496, %v3770
      %v3772 = vpop.f32.mrf.mxu0
      %3773 = vmatprep.mubr.f32.mxu0 0.0
      %3774 = vmatmul.mubr.f32.gmra.mxu0 %v3568
      %v3775 = vpop.f32.mrf.mxu0
      %v3776 = vadd.f32 %v3496, %v3775
      %v3777 = vpop.f32.mrf.mxu0
      %3778 = vmatprep.mubr.f32.mxu0 0.0
      %3779 = vmatmul.mubr.f32.gmra.mxu0 %v3571
      %v3780 = vpop.f32.mrf.mxu0
      %v3781 = vadd.f32 %v3496, %v3780
      %v3782 = vpop.f32.mrf.mxu0
      %3783 = vmatprep.mubr.f32.mxu0 0.0
      %3784 = vmatmul.mubr.f32.gmra.mxu0 %v3574
      %v3785 = vpop.f32.mrf.mxu0
      %v3786 = vadd.f32 %v3496, %v3785
      %v3787 = vpop.f32.mrf.mxu0
      %3788 = vmatprep.mubr.f32.mxu0 0.0
      %3789 = vmatmul.mubr.f32.gmra.mxu0 %v3577
      %v3790 = vpop.f32.mrf.mxu0
      %v3791 = vadd.f32 %v3496, %v3790
      %v3792 = vpop.f32.mrf.mxu0
      %3793 = vmatprep.mubr.f32.mxu0 0.0
      %3794 = vmatmul.mubr.f32.gmra.mxu0 %v3580
      %v3795 = vpop.f32.mrf.mxu0
      %v3796 = vadd.f32 %v3496, %v3795
      %v3797 = vpop.f32.mrf.mxu0
      %3798 = vmatprep.mubr.f32.mxu0 0.0
      %3799 = vmatmul.mubr.f32.gmra.mxu0 %v3583
      %v3800 = vpop.f32.mrf.mxu0
      %v3801 = vadd.f32 %v3496, %v3800
      %v3802 = vpop.f32.mrf.mxu0
      %3803 = vmatprep.mubr.f32.mxu0 0.0
      %3804 = vmatmul.mubr.f32.gmra.mxu0 %v3586
      %v3805 = vpop.f32.mrf.mxu0
      %v3806 = vadd.f32 %v3496, %v3805
      %v3807 = vpop.f32.mrf.mxu0
      %3808 = vmatprep.mubr.f32.mxu0 0.0
      %3809 = vmatmul.mubr.f32.gmra.mxu0 %v3589
      %v3810 = vpop.f32.mrf.mxu0
      %v3811 = vadd.f32 %v3496, %v3810
      %v3812 = vpop.f32.mrf.mxu0
      %3813 = vmatprep.mubr.f32.mxu0 0.0
      %3814 = vmatmul.mubr.f32.gmra.mxu0 %v3592
      %v3815 = vpop.f32.mrf.mxu0
      %v3816 = vadd.f32 %v3496, %v3815
      %v3817 = vpop.f32.mrf.mxu0
      %3818 = vdwg.mxu0
      %v3819 = vmax.f32 %v3661, 0.0
      %v3820 = vmax.f32 %v3666, 0.0
      %v3821 = vmax.f32 %v3671, 0.0
      %v3822 = vmax.f32 %v3676, 0.0
      %v3823 = vmax.f32 %v3681, 0.0
      %v3824 = vmax.f32 %v3686, 0.0
      %v3825 = vmax.f32 %v3691, 0.0
      %v3826 = vmax.f32 %v3696, 0.0
      %v3827 = vmax.f32 %v3701, 0.0
      %v3828 = vmax.f32 %v3706, 0.0
      %v3829 = vmax.f32 %v3711, 0.0
      %v3830 = vmax.f32 %v3716, 0.0
      %v3831 = vmax.f32 %v3721, 0.0
      %v3832 = vmax.f32 %v3726, 0.0
      %v3833 = vmax.f32 %v3731, 0.0
      %v3834 = vmax.f32 %v3736, 0.0
      %v3835 = vmax.f32 %v3741, 0.0
      %v3836 = vmax.f32 %v3746, 0.0
      %v3837 = vmax.f32 %v3751, 0.0
      %v3838 = vmax.f32 %v3756, 0.0
      %v3839 = vmax.f32 %v3761, 0.0
      %v3840 = vmax.f32 %v3766, 0.0
      %v3841 = vmax.f32 %v3771, 0.0
      %v3842 = vmax.f32 %v3776, 0.0
      %v3843 = vmax.f32 %v3781, 0.0
      %v3844 = vmax.f32 %v3786, 0.0
      %v3845 = vmax.f32 %v3791, 0.0
      %v3846 = vmax.f32 %v3796, 0.0
      %v3847 = vmax.f32 %v3801, 0.0
      %v3848 = vmax.f32 %v3806, 0.0
      %v3849 = vmax.f32 %v3811, 0.0
      %v3850 = vmax.f32 %v3816, 0.0
      %3851 = vst.msk [vmem:[%s298] sm:$0xff] %vm345, %v3819
      %3852 = vst.msk [vmem:[%s298 + $0x8] sm:$0xff] %vm345, %v3820
      %3853 = vst.msk [vmem:[%s298 + $0x10] sm:$0xff] %vm345, %v3821
      %3854 = vst.msk [vmem:[%s298 + $0x18] sm:$0xff] %vm345, %v3822
      %3855 = vst.msk [vmem:[%s298 + $0x20] sm:$0xff] %vm345, %v3823
      %3856 = vst.msk [vmem:[%s298 + $0x28] sm:$0xff] %vm345, %v3824
      %3857 = vst.msk [vmem:[%s298 + $0x30] sm:$0xff] %vm345, %v3825
      %3858 = vst.msk [vmem:[%s298 + $0x38] sm:$0xff] %vm345, %v3826
      %3859 = vst.msk [vmem:[%s298 + $0x40] sm:$0xff] %vm345, %v3827
      %3860 = vst.msk [vmem:[%s298 + $0x48] sm:$0xff] %vm345, %v3828
      %3861 = vst.msk [vmem:[%s298 + $0x50] sm:$0xff] %vm345, %v3829
      %3862 = vst.msk [vmem:[%s298 + $0x58] sm:$0xff] %vm345, %v3830
      %3863 = vst.msk [vmem:[%s298 + $0x60] sm:$0xff] %vm345, %v3831
      %3864 = vst.msk [vmem:[%s298 + $0x68] sm:$0xff] %vm345, %v3832
      %3865 = vst.msk [vmem:[%s298 + $0x70] sm:$0xff] %vm345, %v3833
      %3866 = vst.msk [vmem:[%s298 + $0x78] sm:$0xff] %vm345, %v3834
      %3867 = vst.msk [vmem:[%s298 + $0x80] sm:$0xff] %vm345, %v3835
      %3868 = vst.msk [vmem:[%s298 + $0x88] sm:$0xff] %vm345, %v3836
      %3869 = vst.msk [vmem:[%s298 + $0x90] sm:$0xff] %vm345, %v3837
      %3870 = vst.msk [vmem:[%s298 + $0x98] sm:$0xff] %vm345, %v3838
      %3871 = vst.msk [vmem:[%s298 + $0xa0] sm:$0xff] %vm345, %v3839
      %3872 = vst.msk [vmem:[%s298 + $0xa8] sm:$0xff] %vm345, %v3840
      %3873 = vst.msk [vmem:[%s298 + $0xb0] sm:$0xff] %vm345, %v3841
      %3874 = vst.msk [vmem:[%s298 + $0xb8] sm:$0xff] %vm345, %v3842
      %3875 = vst.msk [vmem:[%s298 + $0xc0] sm:$0xff] %vm345, %v3843
      %3876 = vst.msk [vmem:[%s298 + $0xc8] sm:$0xff] %vm345, %v3844
      %3877 = vst.msk [vmem:[%s298 + $0xd0] sm:$0xff] %vm345, %v3845
      %3878 = vst.msk [vmem:[%s298 + $0xd8] sm:$0xff] %vm345, %v3846
      %3879 = vst.msk [vmem:[%s298 + $0xe0] sm:$0xff] %vm345, %v3847
      %3880 = vst.msk [vmem:[%s298 + $0xe8] sm:$0xff] %vm345, %v3848
      %3881 = vst.msk [vmem:[%s298 + $0xf0] sm:$0xff] %vm345, %v3849
      %3882 = vst.msk [vmem:[%s298 + $0xf8] sm:$0xff] %vm345, %v3850
      %p3883 = scmp.lt.s32.totalorder %s18, 1
      %s3884 = scalar_select %p3883, %s18, 1
      %s3885 = smul.addr %s3884, 32
      %s3886 = smul.addr %s3885, 8
      %s3887 = scalar_lea.vmem %s7, %s3886
      // Predicated region
      $region49: #{uup_forward.1} parent=47 // pred_check
        %p3888 = pneg %p193
      $region50: #{uup_forward.1} parent=47 // pred_check_branch
        %3890 = sbr.rel (%p3888) target = $region52
      $region51: #{uup_forward.1} parent=47 // pred_region
        _
      $region52: #{uup_forward.1} parent=47 // pred_fallthru
        _
    $region48: #{uup_forward.1} parent=5 // pred_fallthru
      _
    %p3891 = scmp.le.s32.totalorder 2, %s13
    // Predicated region
    $region53: #{uup_forward.1} parent=5 // pred_check
      %p3892 = pneg %p3891
    $region54: #{uup_forward.1} parent=5 // pred_check_branch
      %3894 = sbr.rel (%p3892) target = $region56
    $region55: #{uup_forward.1} parent=5 // pred_region
      %s3895 = ssub.s32 %s13, 2
      // Predicated region
      $region57: #{uup_forward.1} parent=55 // pred_check
        %p3896 = pneg %p199
      $region58: #{uup_forward.1} parent=55 // pred_check_branch
        %3898 = sbr.rel (%p3896) target = $region60
      $region59: #{uup_forward.1} parent=55 // pred_region
        %p3899 = scmp.lt.s32.totalorder %s19, 1
        %s3900 = scalar_select %p3899, %s19, 1
        %s3901 = smul.addr %s3900, 32
        %s3902 = smul.addr %s3901, 8
        %s3903 = scalar_lea.vmem %s7, %s3902
      $region60: #{uup_forward.1} parent=55 // pred_fallthru
        _
    $region56: #{uup_forward.1} parent=5 // pred_fallthru
      _
  $region6: #{uup_forward.1} parent=0 // loop_footer
    %s17 = sadd.s32 1, %s13
  $region7: #{uup_forward.1} parent=0 // loop_footer_branch
    %12 = sbr.rel target = $region3
  $region8: #{uup_forward.1} parent=0 // loop_exit
    _

</llo_original>
